<compile_context>
chip_gen: v5e
topology: v5e:2x2
jax: 0.10.0
libtpu: 0.0.40
codegen_flags: <defaults>
</compile_context>

<pallas_src>
import functools

import jax
import jax.numpy as jnp
import numpy as np
from jax import lax
from jax.experimental import pallas as pl
from jax.experimental.pallas import tpu as pltpu

C1, C2, C3 = 32, 64, 128      # conv channel widths from Critic.__init__
FC1 = 64                      # cri_fc1 output width
LANES = 128                   # lane width of the packed constants slab
TAP_LANES = 128               # one lane-tile per 3x3 tap in the im2col slab


def _rup(x, m):
    return (x + m - 1) // m * m


def _taps(w):
    """(O, I, 3, 3) conv weight -> 9 tap matrices (I, O), tap-major (dy, dx)."""
    w = np.asarray(w, np.float32)
    return [w[:, :, dy, dx].T for dy in range(3) for dx in range(3)]


# ----------------------------------------------------------------------------
# Fused Pallas kernel: whole Critic forward pass
# ----------------------------------------------------------------------------
def _critic_kernel(x_ref, c_ref, o_ref, xg_ref, a1_ref, a2_ref, im_ref, *,
                   R, G, Rimg, batch, offsets, nin, a_dim,
                   off_w1, off_w2, off_w3, off_wmap, off_sel, off_vec, off_fc2):
    f32 = jnp.float32
    K2 = 9 * TAP_LANES

    # ---- packed-constant views (static slices of the single DMA'd slab) ----
    P = c_ref[off_sel:off_sel + R, 0:nin]            # (R, nin) input->padded-row scatter
    vec = c_ref[off_vec:off_vec + 8, :]              # biases etc., one aligned load
    b1, b2, b3 = vec[0:1, 0:C1], vec[1:2, 0:C2], vec[2:3, 0:C3]
    w1x1, b1x1 = vec[3:4, 0:C3], vec[4:5, 0:1]
    fc1b, fc2b = vec[5:6, 0:FC1], vec[6:7, 0:a_dim]

    # ---- build the zero-padded input column entirely in-kernel (no host pads)
    xin = x_ref[...]                                 # (1, nin)
    xcol = jnp.sum(P * xin, axis=-1, keepdims=True)  # (R, 1) padded / flattened input
    mask = jnp.sum(P, axis=-1, keepdims=True)        # (R, 1) interior-position mask

    # Zero ONLY the guard rows of the guarded scratches (interiors are always
    # fully overwritten below).  Zero the im2col slab once so its K-padding
    # lanes (which carry zero weight rows) can never inject stale-VMEM NaNs.
    for ref, width in ((xg_ref, 1), (a1_ref, C1), (a2_ref, C2)):
        zg = jnp.zeros((G, width), f32)
        ref[0:G, :] = zg
        ref[G + R:G + R + G, :] = zg
    im_ref[...] = jnp.zeros((R, K2), f32)
    xg_ref[G:G + R, :] = xcol

    # ---- conv1 (Cin=1): 9-tap broadcast multiply on the VPU + bias + ReLU ----
    acc = None
    for t, off in enumerate(offsets):
        xs = xg_ref[G + off:G + off + R, :]                       # (R, 1) shifted window
        wt = c_ref[off_w1 + t:off_w1 + t + 1, 0:C1]               # (1, C1) tap weights
        term = xs * wt
        acc = term if acc is None else acc + term
    a1 = jnp.maximum(acc + b1, 0.0) * mask                        # zero padding rows
    a1_ref[G:G + R, :] = a1

    # ---- conv2 / conv3: implicit GEMM, ONE MXU matmul each over the im2col
    # slab.  Each tap owns a 128-lane tile, so every store is tile-aligned.
    def conv_gemm(src_ref, cin, w_off, cout, bias):
        for t, off in enumerate(offsets):
            im_ref[:, t * TAP_LANES:t * TAP_LANES + cin] = \
                src_ref[G + off:G + off + R, :]
        w = c_ref[w_off:w_off + K2, 0:cout]                       # (9*128, cout)
        y = jnp.dot(im_ref[...], w, preferred_element_type=f32) + bias
        return jnp.maximum(y, 0.0)

    a2 = conv_gemm(a1_ref, C1, off_w2, C2, b2) * mask             # (R, C2)
    a2_ref[G:G + R, :] = a2
    a3 = conv_gemm(a2_ref, C2, off_w3, C3, b3)                    # (R, C3); pad rows die in wmap

    # ---- cri_conv1 (1x1, 128 -> 1): VPU multiply + lane reduction + ReLU ----
    x_cri = jnp.maximum(
        jnp.sum(a3 * w1x1, axis=-1, keepdims=True) + b1x1, 0.0)   # (R, 1)

    # ---- fc1 folded via per-row weight map + per-image segmented sums ----
    wmap = c_ref[off_wmap:off_wmap + R, 0:FC1]                    # (R, 64), zero on pad rows
    contrib = x_cri * wmap                                        # (R, 64)
    h = jnp.concatenate(
        [jnp.sum(contrib[b * Rimg:(b + 1) * Rimg, :], axis=0, keepdims=True)
         for b in range(batch)], axis=0)                          # (batch, 64)
    h = jnp.maximum(h + fc1b, 0.0)

    # ---- fc2 ----
    fc2wT = c_ref[off_fc2:off_fc2 + FC1, 0:a_dim]                 # (64, a_dim)
    out = jnp.dot(h, fc2wT, preferred_element_type=f32) + fc2b
    o_ref[...] = out.astype(o_ref.dtype)


# ----------------------------------------------------------------------------
# One-time weight / layout preparation (hoisted out of the per-call path)
# ----------------------------------------------------------------------------
def prepare_inputs(params, s_dim, a_dim, batch, H, W):
    assert H * W == s_dim * 5, "Critic's .view(-1, s_dim*5) requires H*W == s_dim*5"
    nin = batch * H * W
    # TODO(synk): lift this by tiling batch over a parallel grid axis.
    assert nin <= LANES, "batch*H*W must fit one lane tile for the in-kernel pad"

    Hp = H + 2
    Wp = _rup(W + 2, 8)          # pad padded width: dy tap shifts stay sublane-aligned
    Rimg = Hp * Wp
    R = batch * Rimg
    G = _rup(Wp + 1, 8)          # guard rows >= max |tap offset|, 8-aligned
    offsets = tuple((dy - 1) * Wp + (dx - 1) for dy in range(3) for dx in range(3))

    # Per-padded-row spatial bookkeeping.
    rows = np.arange(R)
    b_idx = rows // Rimg
    rem = rows % Rimg
    hp, wp = rem // Wp, rem % Wp
    interior = (hp >= 1) & (hp <= H) & (wp >= 1) & (wp <= W)

    # P: one-hot map from the flat input vector to interior padded rows.
    src = b_idx * (H * W) + (hp - 1) * W + (wp - 1)
    P = np.zeros((R, nin), np.float32)
    P[rows[interior], src[interior]] = 1.0

    # fc1 folded into a per-row weight map (PyTorch .view order per image).
    fc1_w = np.asarray(params["cri_fc1_w"], np.float32)           # (64, s_dim*5)
    j = (hp - 1) * W + (wp - 1)
    wmap = np.zeros((R, FC1), np.float32)
    wmap[interior] = fc1_w[:, j[interior]].T

    # ---- pack every constant into one lane-dense (rows, 128) f32 slab ----
    off_w1 = 0
    off_w2 = _rup(off_w1 + 9, 8)
    off_w3 = _rup(off_w2 + 9 * TAP_LANES, 8)
    off_wmap = _rup(off_w3 + 9 * TAP_LANES, 8)
    off_sel = _rup(off_wmap + R, 8)
    off_vec = _rup(off_sel + R, 8)
    off_fc2 = _rup(off_vec + 8, 8)
    nrows = _rup(off_fc2 + FC1, 8)

    slab = np.zeros((nrows, LANES), np.float32)
    for t, tap in enumerate(_taps(params["conv1_w"])):            # (1, 32)
        slab[off_w1 + t, :C1] = tap[0]
    for t, tap in enumerate(_taps(params["conv2_w"])):            # (32, 64)
        slab[off_w2 + t * TAP_LANES:off_w2 + t * TAP_LANES + C1, :C2] = tap
    for t, tap in enumerate(_taps(params["conv3_w"])):            # (64, 128)
        slab[off_w3 + t * TAP_LANES:off_w3 + t * TAP_LANES + C2, :C3] = tap
    slab[off_wmap:off_wmap + R, :FC1] = wmap
    slab[off_sel:off_sel + R, :nin] = P
    slab[off_vec + 0, :C1] = np.asarray(params["conv1_b"], np.float32)
    slab[off_vec + 1, :C2] = np.asarray(params["conv2_b"], np.float32)
    slab[off_vec + 2, :C3] = np.asarray(params["conv3_b"], np.float32)
    slab[off_vec + 3, :C3] = np.asarray(params["cri_conv1_w"], np.float32).reshape(-1)
    slab[off_vec + 4, 0] = float(np.asarray(params["cri_conv1_b"], np.float32)[0])
    slab[off_vec + 5, :FC1] = np.asarray(params["cri_fc1_b"], np.float32)
    slab[off_vec + 6, :a_dim] = np.asarray(params["cri_fc2_b"], np.float32)
    slab[off_fc2:off_fc2 + FC1, :a_dim] = np.asarray(params["cri_fc2_w"], np.float32).T

    cfg = dict(R=R, G=G, Rimg=Rimg, batch=batch, offsets=offsets, nin=nin,
               a_dim=a_dim, off_w1=off_w1, off_w2=off_w2, off_w3=off_w3,
               off_wmap=off_wmap, off_sel=off_sel, off_vec=off_vec, off_fc2=off_fc2)
    return slab, cfg


def build_critic_forward(params, s_dim, a_dim, batch, H, W):
    slab, cfg = prepare_inputs(params, s_dim, a_dim, batch, H, W)
    R, G, nin = cfg["R"], cfg["G"], cfg["nin"]
    Rg = R + 2 * G

    kernel = functools.partial(_critic_kernel, **cfg)
    fused = pl.pallas_call(
        kernel,
        out_shape=jax.ShapeDtypeStruct((batch, a_dim), jnp.float32),
        # Two whole-array VMEM operands (input row + packed constants), no grid.
        in_specs=[pl.BlockSpec(memory_space=pltpu.MemorySpace.VMEM)] * 2,
        out_specs=pl.BlockSpec(memory_space=pltpu.MemorySpace.VMEM),
        scratch_shapes=[
            pltpu.VMEM((Rg, 1), jnp.float32),            # guarded padded input column
            pltpu.VMEM((Rg, C1), jnp.float32),           # guarded conv1 output
            pltpu.VMEM((Rg, C2), jnp.float32),           # guarded conv2 output
            pltpu.VMEM((R, 9 * TAP_LANES), jnp.float32),  # shared tap-tiled im2col slab
        ],
    )
    cslab = jnp.asarray(slab)

    def forward(x_nchw):
        # Only glue left on the host: a metadata-only reshape to one lane row.
        xrow = x_nchw.astype(jnp.float32).reshape(1, nin)
        return fused(xrow, cslab)

    return jax.jit(forward)


# ----------------------------------------------------------------------------
# Pure-JAX reference (for correctness checking only)
# ----------------------------------------------------------------------------
def critic_reference(params, x_nchw, s_dim, a_dim):
    dn = ("NCHW", "OIHW", "NCHW")

    def conv(x, w, b, pad):
        y = lax.conv_general_dilated(x, w, (1, 1), ((pad, pad), (pad, pad)),
                                     dimension_numbers=dn)
        return y + b.reshape(1, -1, 1, 1)

    x = jnp.maximum(conv(x_nchw, params["conv1_w"], params["conv1_b"], 1), 0.0)
    x = jnp.maximum(conv(x, params["conv2_w"], params["conv2_b"], 1), 0.0)
    x = jnp.maximum(conv(x, params["conv3_w"], params["conv3_b"], 1), 0.0)
    x = jnp.maximum(conv(x, params["cri_conv1_w"], params["cri_conv1_b"], 0), 0.0)
    x = x.reshape(-1, s_dim * 5)
    x = jnp.maximum(x @ params["cri_fc1_w"].T + params["cri_fc1_b"], 0.0)
    return x @ params["cri_fc2_w"].T + params["cri_fc2_b"]


# ----------------------------------------------------------------------------
# Deterministic parameter construction (shapes from Critic.__init__)
# ----------------------------------------------------------------------------
def init_params(s_dim, a_dim, key):
    ks = jax.random.split(key, 12)
    scale = 0.05

    def w(k, shape):
        return scale * jax.random.normal(k, shape, dtype=jnp.float32)

    return {
        "conv1_w": w(ks[0], (32, 1, 3, 3)),   "conv1_b": w(ks[1], (32,)),
        "conv2_w": w(ks[2], (64, 32, 3, 3)),  "conv2_b": w(ks[3], (64,)),
        "conv3_w": w(ks[4], (128, 64, 3, 3)), "conv3_b": w(ks[5], (128,)),
        "cri_conv1_w": w(ks[6], (1, 128, 1, 1)), "cri_conv1_b": w(ks[7], (1,)),
        "cri_fc1_w": w(ks[8], (64, s_dim * 5)),  "cri_fc1_b": w(ks[9], (64,)),
        "cri_fc2_w": w(ks[10], (a_dim, 64)),     "cri_fc2_b": w(ks[11], (a_dim,)),
    }


if __name__ == "__main__":
    s_dim, a_dim = 8, 4
    batch = 2
    H, W = s_dim, 5            # H*W must equal s_dim*5 for the .view() to hold

    x = jax.random.normal(jax.random.PRNGKey(0), (batch, 1, H, W), jnp.float32)
    params = init_params(s_dim, a_dim, jax.random.PRNGKey(1))

    forward = build_critic_forward(params, s_dim, a_dim, batch, H, W)
    values = jax.block_until_ready(forward(x))
    assert values.shape == (batch, a_dim), values.shape

    ref = jax.block_until_ready(critic_reference(params, x, s_dim, a_dim))
    assert jnp.allclose(values, ref, rtol=1e-4, atol=1e-4), (
        float(jnp.max(jnp.abs(values - ref))))

    print("KERNEL_OK")
</pallas_src>

<mosaic_0001>
module attributes {stable_mosaic.version = 11 : i64} {
  func.func @_critic_kernel(%arg0: memref<1x80xf32, #tpu.memory_space<vmem>>, %arg1: memref<2712x128xf32, #tpu.memory_space<vmem>>, %arg2: memref<2x4xf32, #tpu.memory_space<vmem>>, %arg3: memref<192x1xf32, #tpu.memory_space<vmem>>, %arg4: memref<192x32xf32, #tpu.memory_space<vmem>>, %arg5: memref<192x64xf32, #tpu.memory_space<vmem>>, %arg6: memref<160x1152xf32, #tpu.memory_space<vmem>>) attributes {dimension_semantics = [], scalar_prefetch = 0 : i64, scratch_operands = 4 : i64, tpu.core_type = #tpu.core_type<tc>} {
    %c2480 = arith.constant 2480 : index
    %c0 = arith.constant 0 : index
    %0 = vector.load %arg1[%c2480, %c0] : memref<2712x128xf32, #tpu.memory_space<vmem>>, vector<160x80xf32>
    %c2640 = arith.constant 2640 : index
    %c0_0 = arith.constant 0 : index
    %1 = vector.load %arg1[%c2640, %c0_0] : memref<2712x128xf32, #tpu.memory_space<vmem>>, vector<8x128xf32>
    %2 = vector.extract_strided_slice %1 {offsets = [0, 0], sizes = [1, 32], strides = [1, 1]} : vector<8x128xf32> to vector<1x32xf32>
    %3 = vector.extract_strided_slice %1 {offsets = [1, 0], sizes = [1, 64], strides = [1, 1]} : vector<8x128xf32> to vector<1x64xf32>
    %4 = vector.extract_strided_slice %1 {offsets = [2, 0], sizes = [1, 128], strides = [1, 1]} : vector<8x128xf32> to vector<1x128xf32>
    %5 = vector.extract_strided_slice %1 {offsets = [3, 0], sizes = [1, 128], strides = [1, 1]} : vector<8x128xf32> to vector<1x128xf32>
    %6 = vector.extract_strided_slice %1 {offsets = [4, 0], sizes = [1, 1], strides = [1, 1]} : vector<8x128xf32> to vector<1x1xf32>
    %7 = vector.extract_strided_slice %1 {offsets = [5, 0], sizes = [1, 64], strides = [1, 1]} : vector<8x128xf32> to vector<1x64xf32>
    %8 = vector.extract_strided_slice %1 {offsets = [6, 0], sizes = [1, 4], strides = [1, 1]} : vector<8x128xf32> to vector<1x4xf32>
    %c0_1 = arith.constant 0 : index
    %c0_2 = arith.constant 0 : index
    %9 = vector.load %arg0[%c0_1, %c0_2] : memref<1x80xf32, #tpu.memory_space<vmem>>, vector<1x80xf32>
    %10 = vector.broadcast %9 : vector<1x80xf32> to vector<160x80xf32>
    %11 = arith.mulf %0, %10 : vector<160x80xf32>
    %cst = arith.constant dense<0.000000e+00> : vector<160xf32>
    %12 = vector.multi_reduction <add>, %11, %cst [1] : vector<160x80xf32> to vector<160xf32>
    %13 = vector.shape_cast %12 : vector<160xf32> to vector<160x1xf32>
    %cst_3 = arith.constant dense<0.000000e+00> : vector<160xf32>
    %14 = vector.multi_reduction <add>, %0, %cst_3 [1] : vector<160x80xf32> to vector<160xf32>
    %15 = vector.shape_cast %14 : vector<160xf32> to vector<160x1xf32>
    %cst_4 = arith.constant 0.000000e+00 : f32
    %16 = vector.broadcast %cst_4 : f32 to vector<16x1xf32>
    %c0_5 = arith.constant 0 : index
    %c0_6 = arith.constant 0 : index
    %17 = vector.load %arg3[%c0_5, %c0_6] : memref<192x1xf32, #tpu.memory_space<vmem>>, vector<16x1xf32>
    tpu.vector_store %arg3[%c0_5, %c0_6], %16 {strides = array<i32>} : memref<192x1xf32, #tpu.memory_space<vmem>>, vector<16x1xf32>,
    %c176 = arith.constant 176 : index
    %c0_7 = arith.constant 0 : index
    %18 = vector.load %arg3[%c176, %c0_7] : memref<192x1xf32, #tpu.memory_space<vmem>>, vector<16x1xf32>
    tpu.vector_store %arg3[%c176, %c0_7], %16 {strides = array<i32>} : memref<192x1xf32, #tpu.memory_space<vmem>>, vector<16x1xf32>,
    %cst_8 = arith.constant 0.000000e+00 : f32
    %19 = vector.broadcast %cst_8 : f32 to vector<16x32xf32>
    %c0_9 = arith.constant 0 : index
    %c0_10 = arith.constant 0 : index
    %20 = vector.load %arg4[%c0_9, %c0_10] : memref<192x32xf32, #tpu.memory_space<vmem>>, vector<16x32xf32>
    tpu.vector_store %arg4[%c0_9, %c0_10], %19 {strides = array<i32>} : memref<192x32xf32, #tpu.memory_space<vmem>>, vector<16x32xf32>,
    %c176_11 = arith.constant 176 : index
    %c0_12 = arith.constant 0 : index
    %21 = vector.load %arg4[%c176_11, %c0_12] : memref<192x32xf32, #tpu.memory_space<vmem>>, vector<16x32xf32>
    tpu.vector_store %arg4[%c176_11, %c0_12], %19 {strides = array<i32>} : memref<192x32xf32, #tpu.memory_space<vmem>>, vector<16x32xf32>,
    %cst_13 = arith.constant 0.000000e+00 : f32
    %22 = vector.broadcast %cst_13 : f32 to vector<16x64xf32>
    %c0_14 = arith.constant 0 : index
    %c0_15 = arith.constant 0 : index
    %23 = vector.load %arg5[%c0_14, %c0_15] : memref<192x64xf32, #tpu.memory_space<vmem>>, vector<16x64xf32>
    tpu.vector_store %arg5[%c0_14, %c0_15], %22 {strides = array<i32>} : memref<192x64xf32, #tpu.memory_space<vmem>>, vector<16x64xf32>,
    %c176_16 = arith.constant 176 : index
    %c0_17 = arith.constant 0 : index
    %24 = vector.load %arg5[%c176_16, %c0_17] : memref<192x64xf32, #tpu.memory_space<vmem>>, vector<16x64xf32>
    tpu.vector_store %arg5[%c176_16, %c0_17], %22 {strides = array<i32>} : memref<192x64xf32, #tpu.memory_space<vmem>>, vector<16x64xf32>,
    %cst_18 = arith.constant 0.000000e+00 : f32
    %25 = vector.broadcast %cst_18 : f32 to vector<160x1152xf32>
    %c0_19 = arith.constant 0 : index
    %c0_20 = arith.constant 0 : index
    %26 = vector.load %arg6[%c0_19, %c0_20] : memref<160x1152xf32, #tpu.memory_space<vmem>>, vector<160x1152xf32>
    tpu.vector_store %arg6[%c0_19, %c0_20], %25 {strides = array<i32>} : memref<160x1152xf32, #tpu.memory_space<vmem>>, vector<160x1152xf32>,
    %c16 = arith.constant 16 : index
    %c0_21 = arith.constant 0 : index
    %27 = vector.load %arg3[%c16, %c0_21] : memref<192x1xf32, #tpu.memory_space<vmem>>, vector<160x1xf32>
    tpu.vector_store %arg3[%c16, %c0_21], %13 {strides = array<i32>} : memref<192x1xf32, #tpu.memory_space<vmem>>, vector<160x1xf32>,
    %c7 = arith.constant 7 : index
    %c0_22 = arith.constant 0 : index
    %28 = vector.load %arg3[%c7, %c0_22] : memref<192x1xf32, #tpu.memory_space<vmem>>, vector<160x1xf32>
    %c0_23 = arith.constant 0 : index
    %c0_24 = arith.constant 0 : index
    %29 = vector.load %arg1[%c0_23, %c0_24] : memref<2712x128xf32, #tpu.memory_space<vmem>>, vector<1x32xf32>
    %30 = vector.broadcast %28 : vector<160x1xf32> to vector<160x32xf32>
    %31 = vector.broadcast %29 : vector<1x32xf32> to vector<160x32xf32>
    %32 = arith.mulf %30, %31 : vector<160x32xf32>
    %c8 = arith.constant 8 : index
    %c0_25 = arith.constant 0 : index
    %33 = vector.load %arg3[%c8, %c0_25] : memref<192x1xf32, #tpu.memory_space<vmem>>, vector<160x1xf32>
    %c1 = arith.constant 1 : index
    %c0_26 = arith.constant 0 : index
    %34 = vector.load %arg1[%c1, %c0_26] : memref<2712x128xf32, #tpu.memory_space<vmem>>, vector<1x32xf32>
    %35 = vector.broadcast %33 : vector<160x1xf32> to vector<160x32xf32>
    %36 = vector.broadcast %34 : vector<1x32xf32> to vector<160x32xf32>
    %37 = arith.mulf %35, %36 : vector<160x32xf32>
    %38 = arith.addf %32, %37 : vector<160x32xf32>
    %c9 = arith.constant 9 : index
    %c0_27 = arith.constant 0 : index
    %39 = vector.load %arg3[%c9, %c0_27] : memref<192x1xf32, #tpu.memory_space<vmem>>, vector<160x1xf32>
    %c2 = arith.constant 2 : index
    %c0_28 = arith.constant 0 : index
    %40 = vector.load %arg1[%c2, %c0_28] : memref<2712x128xf32, #tpu.memory_space<vmem>>, vector<1x32xf32>
    %41 = vector.broadcast %39 : vector<160x1xf32> to vector<160x32xf32>
    %42 = vector.broadcast %40 : vector<1x32xf32> to vector<160x32xf32>
    %43 = arith.mulf %41, %42 : vector<160x32xf32>
    %44 = arith.addf %38, %43 : vector<160x32xf32>
    %c15 = arith.constant 15 : index
    %c0_29 = arith.constant 0 : index
    %45 = vector.load %arg3[%c15, %c0_29] : memref<192x1xf32, #tpu.memory_space<vmem>>, vector<160x1xf32>
    %c3 = arith.constant 3 : index
    %c0_30 = arith.constant 0 : index
    %46 = vector.load %arg1[%c3, %c0_30] : memref<2712x128xf32, #tpu.memory_space<vmem>>, vector<1x32xf32>
    %47 = vector.broadcast %45 : vector<160x1xf32> to vector<160x32xf32>
    %48 = vector.broadcast %46 : vector<1x32xf32> to vector<160x32xf32>
    %49 = arith.mulf %47, %48 : vector<160x32xf32>
    %50 = arith.addf %44, %49 : vector<160x32xf32>
    %c16_31 = arith.constant 16 : index
    %c0_32 = arith.constant 0 : index
    %51 = vector.load %arg3[%c16_31, %c0_32] : memref<192x1xf32, #tpu.memory_space<vmem>>, vector<160x1xf32>
    %c4 = arith.constant 4 : index
    %c0_33 = arith.constant 0 : index
    %52 = vector.load %arg1[%c4, %c0_33] : memref<2712x128xf32, #tpu.memory_space<vmem>>, vector<1x32xf32>
    %53 = vector.broadcast %51 : vector<160x1xf32> to vector<160x32xf32>
    %54 = vector.broadcast %52 : vector<1x32xf32> to vector<160x32xf32>
    %55 = arith.mulf %53, %54 : vector<160x32xf32>
    %56 = arith.addf %50, %55 : vector<160x32xf32>
    %c17 = arith.constant 17 : index
    %c0_34 = arith.constant 0 : index
    %57 = vector.load %arg3[%c17, %c0_34] : memref<192x1xf32, #tpu.memory_space<vmem>>, vector<160x1xf32>
    %c5 = arith.constant 5 : index
    %c0_35 = arith.constant 0 : index
    %58 = vector.load %arg1[%c5, %c0_35] : memref<2712x128xf32, #tpu.memory_space<vmem>>, vector<1x32xf32>
    %59 = vector.broadcast %57 : vector<160x1xf32> to vector<160x32xf32>
    %60 = vector.broadcast %58 : vector<1x32xf32> to vector<160x32xf32>
    %61 = arith.mulf %59, %60 : vector<160x32xf32>
    %62 = arith.addf %56, %61 : vector<160x32xf32>
    %c23 = arith.constant 23 : index
    %c0_36 = arith.constant 0 : index
    %63 = vector.load %arg3[%c23, %c0_36] : memref<192x1xf32, #tpu.memory_space<vmem>>, vector<160x1xf32>
    %c6 = arith.constant 6 : index
    %c0_37 = arith.constant 0 : index
    %64 = vector.load %arg1[%c6, %c0_37] : memref<2712x128xf32, #tpu.memory_space<vmem>>, vector<1x32xf32>
    %65 = vector.broadcast %63 : vector<160x1xf32> to vector<160x32xf32>
    %66 = vector.broadcast %64 : vector<1x32xf32> to vector<160x32xf32>
    %67 = arith.mulf %65, %66 : vector<160x32xf32>
    %68 = arith.addf %62, %67 : vector<160x32xf32>
    %c24 = arith.constant 24 : index
    %c0_38 = arith.constant 0 : index
    %69 = vector.load %arg3[%c24, %c0_38] : memref<192x1xf32, #tpu.memory_space<vmem>>, vector<160x1xf32>
    %c7_39 = arith.constant 7 : index
    %c0_40 = arith.constant 0 : index
    %70 = vector.load %arg1[%c7_39, %c0_40] : memref<2712x128xf32, #tpu.memory_space<vmem>>, vector<1x32xf32>
    %71 = vector.broadcast %69 : vector<160x1xf32> to vector<160x32xf32>
    %72 = vector.broadcast %70 : vector<1x32xf32> to vector<160x32xf32>
    %73 = arith.mulf %71, %72 : vector<160x32xf32>
    %74 = arith.addf %68, %73 : vector<160x32xf32>
    %c25 = arith.constant 25 : index
    %c0_41 = arith.constant 0 : index
    %75 = vector.load %arg3[%c25, %c0_41] : memref<192x1xf32, #tpu.memory_space<vmem>>, vector<160x1xf32>
    %c8_42 = arith.constant 8 : index
    %c0_43 = arith.constant 0 : index
    %76 = vector.load %arg1[%c8_42, %c0_43] : memref<2712x128xf32, #tpu.memory_space<vmem>>, vector<1x32xf32>
    %77 = vector.broadcast %75 : vector<160x1xf32> to vector<160x32xf32>
    %78 = vector.broadcast %76 : vector<1x32xf32> to vector<160x32xf32>
    %79 = arith.mulf %77, %78 : vector<160x32xf32>
    %80 = arith.addf %74, %79 : vector<160x32xf32>
    %81 = vector.broadcast %2 : vector<1x32xf32> to vector<160x32xf32>
    %82 = arith.addf %80, %81 : vector<160x32xf32>
    %cst_44 = arith.constant 0.000000e+00 : f32
    %83 = vector.broadcast %cst_44 : f32 to vector<160x32xf32>
    %84 = arith.maximumf %82, %83 : vector<160x32xf32>
    %85 = vector.broadcast %15 : vector<160x1xf32> to vector<160x32xf32>
    %86 = arith.mulf %84, %85 : vector<160x32xf32>
    %c16_45 = arith.constant 16 : index
    %c0_46 = arith.constant 0 : index
    %87 = vector.load %arg4[%c16_45, %c0_46] : memref<192x32xf32, #tpu.memory_space<vmem>>, vector<160x32xf32>
    tpu.vector_store %arg4[%c16_45, %c0_46], %86 {strides = array<i32>} : memref<192x32xf32, #tpu.memory_space<vmem>>, vector<160x32xf32>,
    %c7_47 = arith.constant 7 : index
    %c0_48 = arith.constant 0 : index
    %88 = vector.load %arg4[%c7_47, %c0_48] : memref<192x32xf32, #tpu.memory_space<vmem>>, vector<160x32xf32>
    %c0_49 = arith.constant 0 : index
    %c0_50 = arith.constant 0 : index
    %89 = vector.load %arg6[%c0_49, %c0_50] : memref<160x1152xf32, #tpu.memory_space<vmem>>, vector<160x32xf32>
    tpu.vector_store %arg6[%c0_49, %c0_50], %88 {strides = array<i32>} : memref<160x1152xf32, #tpu.memory_space<vmem>>, vector<160x32xf32>,
    %c8_51 = arith.constant 8 : index
    %c0_52 = arith.constant 0 : index
    %90 = vector.load %arg4[%c8_51, %c0_52] : memref<192x32xf32, #tpu.memory_space<vmem>>, vector<160x32xf32>
    %c0_53 = arith.constant 0 : index
    %c128 = arith.constant 128 : index
    %91 = vector.load %arg6[%c0_53, %c128] : memref<160x1152xf32, #tpu.memory_space<vmem>>, vector<160x32xf32>
    tpu.vector_store %arg6[%c0_53, %c128], %90 {strides = array<i32>} : memref<160x1152xf32, #tpu.memory_space<vmem>>, vector<160x32xf32>,
    %c9_54 = arith.constant 9 : index
    %c0_55 = arith.constant 0 : index
    %92 = vector.load %arg4[%c9_54, %c0_55] : memref<192x32xf32, #tpu.memory_space<vmem>>, vector<160x32xf32>
    %c0_56 = arith.constant 0 : index
    %c256 = arith.constant 256 : index
    %93 = vector.load %arg6[%c0_56, %c256] : memref<160x1152xf32, #tpu.memory_space<vmem>>, vector<160x32xf32>
    tpu.vector_store %arg6[%c0_56, %c256], %92 {strides = array<i32>} : memref<160x1152xf32, #tpu.memory_space<vmem>>, vector<160x32xf32>,
    %c15_57 = arith.constant 15 : index
    %c0_58 = arith.constant 0 : index
    %94 = vector.load %arg4[%c15_57, %c0_58] : memref<192x32xf32, #tpu.memory_space<vmem>>, vector<160x32xf32>
    %c0_59 = arith.constant 0 : index
    %c384 = arith.constant 384 : index
    %95 = vector.load %arg6[%c0_59, %c384] : memref<160x1152xf32, #tpu.memory_space<vmem>>, vector<160x32xf32>
    tpu.vector_store %arg6[%c0_59, %c384], %94 {strides = array<i32>} : memref<160x1152xf32, #tpu.memory_space<vmem>>, vector<160x32xf32>,
    %c16_60 = arith.constant 16 : index
    %c0_61 = arith.constant 0 : index
    %96 = vector.load %arg4[%c16_60, %c0_61] : memref<192x32xf32, #tpu.memory_space<vmem>>, vector<160x32xf32>
    %c0_62 = arith.constant 0 : index
    %c512 = arith.constant 512 : index
    %97 = vector.load %arg6[%c0_62, %c512] : memref<160x1152xf32, #tpu.memory_space<vmem>>, vector<160x32xf32>
    tpu.vector_store %arg6[%c0_62, %c512], %96 {strides = array<i32>} : memref<160x1152xf32, #tpu.memory_space<vmem>>, vector<160x32xf32>,
    %c17_63 = arith.constant 17 : index
    %c0_64 = arith.constant 0 : index
    %98 = vector.load %arg4[%c17_63, %c0_64] : memref<192x32xf32, #tpu.memory_space<vmem>>, vector<160x32xf32>
    %c0_65 = arith.constant 0 : index
    %c640 = arith.constant 640 : index
    %99 = vector.load %arg6[%c0_65, %c640] : memref<160x1152xf32, #tpu.memory_space<vmem>>, vector<160x32xf32>
    tpu.vector_store %arg6[%c0_65, %c640], %98 {strides = array<i32>} : memref<160x1152xf32, #tpu.memory_space<vmem>>, vector<160x32xf32>,
    %c23_66 = arith.constant 23 : index
    %c0_67 = arith.constant 0 : index
    %100 = vector.load %arg4[%c23_66, %c0_67] : memref<192x32xf32, #tpu.memory_space<vmem>>, vector<160x32xf32>
    %c0_68 = arith.constant 0 : index
    %c768 = arith.constant 768 : index
    %101 = vector.load %arg6[%c0_68, %c768] : memref<160x1152xf32, #tpu.memory_space<vmem>>, vector<160x32xf32>
    tpu.vector_store %arg6[%c0_68, %c768], %100 {strides = array<i32>} : memref<160x1152xf32, #tpu.memory_space<vmem>>, vector<160x32xf32>,
    %c24_69 = arith.constant 24 : index
    %c0_70 = arith.constant 0 : index
    %102 = vector.load %arg4[%c24_69, %c0_70] : memref<192x32xf32, #tpu.memory_space<vmem>>, vector<160x32xf32>
    %c0_71 = arith.constant 0 : index
    %c896 = arith.constant 896 : index
    %103 = vector.load %arg6[%c0_71, %c896] : memref<160x1152xf32, #tpu.memory_space<vmem>>, vector<160x32xf32>
    tpu.vector_store %arg6[%c0_71, %c896], %102 {strides = array<i32>} : memref<160x1152xf32, #tpu.memory_space<vmem>>, vector<160x32xf32>,
    %c25_72 = arith.constant 25 : index
    %c0_73 = arith.constant 0 : index
    %104 = vector.load %arg4[%c25_72, %c0_73] : memref<192x32xf32, #tpu.memory_space<vmem>>, vector<160x32xf32>
    %c0_74 = arith.constant 0 : index
    %c1024 = arith.constant 1024 : index
    %105 = vector.load %arg6[%c0_74, %c1024] : memref<160x1152xf32, #tpu.memory_space<vmem>>, vector<160x32xf32>
    tpu.vector_store %arg6[%c0_74, %c1024], %104 {strides = array<i32>} : memref<160x1152xf32, #tpu.memory_space<vmem>>, vector<160x32xf32>,
    %c16_75 = arith.constant 16 : index
    %c0_76 = arith.constant 0 : index
    %106 = vector.load %arg1[%c16_75, %c0_76] : memref<2712x128xf32, #tpu.memory_space<vmem>>, vector<1152x64xf32>
    %c0_77 = arith.constant 0 : index
    %c0_78 = arith.constant 0 : index
    %107 = vector.load %arg6[%c0_77, %c0_78] : memref<160x1152xf32, #tpu.memory_space<vmem>>, vector<160x1152xf32>
    %cst_79 = arith.constant dense<0.000000e+00> : vector<160x64xf32>
    %108 = tpu.matmul %107, %106, %cst_79 {dimension_numbers = #tpu.dot_dimension_numbers<[1], [0], [0], [1], [0, 0, 1, 1], [], []>} : vector<160x1152xf32>, vector<1152x64xf32>, vector<160x64xf32> -> vector<160x64xf32>
    %109 = vector.broadcast %3 : vector<1x64xf32> to vector<160x64xf32>
    %110 = arith.addf %108, %109 : vector<160x64xf32>
    %cst_80 = arith.constant 0.000000e+00 : f32
    %111 = vector.broadcast %cst_80 : f32 to vector<160x64xf32>
    %112 = arith.maximumf %110, %111 : vector<160x64xf32>
    %113 = vector.broadcast %15 : vector<160x1xf32> to vector<160x64xf32>
    %114 = arith.mulf %112, %113 : vector<160x64xf32>
    %c16_81 = arith.constant 16 : index
    %c0_82 = arith.constant 0 : index
    %115 = vector.load %arg5[%c16_81, %c0_82] : memref<192x64xf32, #tpu.memory_space<vmem>>, vector<160x64xf32>
    tpu.vector_store %arg5[%c16_81, %c0_82], %114 {strides = array<i32>} : memref<192x64xf32, #tpu.memory_space<vmem>>, vector<160x64xf32>,
    %c7_83 = arith.constant 7 : index
    %c0_84 = arith.constant 0 : index
    %116 = vector.load %arg5[%c7_83, %c0_84] : memref<192x64xf32, #tpu.memory_space<vmem>>, vector<160x64xf32>
    %c0_85 = arith.constant 0 : index
    %c0_86 = arith.constant 0 : index
    %117 = vector.load %arg6[%c0_85, %c0_86] : memref<160x1152xf32, #tpu.memory_space<vmem>>, vector<160x64xf32>
    tpu.vector_store %arg6[%c0_85, %c0_86], %116 {strides = array<i32>} : memref<160x1152xf32, #tpu.memory_space<vmem>>, vector<160x64xf32>,
    %c8_87 = arith.constant 8 : index
    %c0_88 = arith.constant 0 : index
    %118 = vector.load %arg5[%c8_87, %c0_88] : memref<192x64xf32, #tpu.memory_space<vmem>>, vector<160x64xf32>
    %c0_89 = arith.constant 0 : index
    %c128_90 = arith.constant 128 : index
    %119 = vector.load %arg6[%c0_89, %c128_90] : memref<160x1152xf32, #tpu.memory_space<vmem>>, vector<160x64xf32>
    tpu.vector_store %arg6[%c0_89, %c128_90], %118 {strides = array<i32>} : memref<160x1152xf32, #tpu.memory_space<vmem>>, vector<160x64xf32>,
    %c9_91 = arith.constant 9 : index
    %c0_92 = arith.constant 0 : index
    %120 = vector.load %arg5[%c9_91, %c0_92] : memref<192x64xf32, #tpu.memory_space<vmem>>, vector<160x64xf32>
    %c0_93 = arith.constant 0 : index
    %c256_94 = arith.constant 256 : index
    %121 = vector.load %arg6[%c0_93, %c256_94] : memref<160x1152xf32, #tpu.memory_space<vmem>>, vector<160x64xf32>
    tpu.vector_store %arg6[%c0_93, %c256_94], %120 {strides = array<i32>} : memref<160x1152xf32, #tpu.memory_space<vmem>>, vector<160x64xf32>,
    %c15_95 = arith.constant 15 : index
    %c0_96 = arith.constant 0 : index
    %122 = vector.load %arg5[%c15_95, %c0_96] : memref<192x64xf32, #tpu.memory_space<vmem>>, vector<160x64xf32>
    %c0_97 = arith.constant 0 : index
    %c384_98 = arith.constant 384 : index
    %123 = vector.load %arg6[%c0_97, %c384_98] : memref<160x1152xf32, #tpu.memory_space<vmem>>, vector<160x64xf32>
    tpu.vector_store %arg6[%c0_97, %c384_98], %122 {strides = array<i32>} : memref<160x1152xf32, #tpu.memory_space<vmem>>, vector<160x64xf32>,
    %c16_99 = arith.constant 16 : index
    %c0_100 = arith.constant 0 : index
    %124 = vector.load %arg5[%c16_99, %c0_100] : memref<192x64xf32, #tpu.memory_space<vmem>>, vector<160x64xf32>
    %c0_101 = arith.constant 0 : index
    %c512_102 = arith.constant 512 : index
    %125 = vector.load %arg6[%c0_101, %c512_102] : memref<160x1152xf32, #tpu.memory_space<vmem>>, vector<160x64xf32>
    tpu.vector_store %arg6[%c0_101, %c512_102], %124 {strides = array<i32>} : memref<160x1152xf32, #tpu.memory_space<vmem>>, vector<160x64xf32>,
    %c17_103 = arith.constant 17 : index
    %c0_104 = arith.constant 0 : index
    %126 = vector.load %arg5[%c17_103, %c0_104] : memref<192x64xf32, #tpu.memory_space<vmem>>, vector<160x64xf32>
    %c0_105 = arith.constant 0 : index
    %c640_106 = arith.constant 640 : index
    %127 = vector.load %arg6[%c0_105, %c640_106] : memref<160x1152xf32, #tpu.memory_space<vmem>>, vector<160x64xf32>
    tpu.vector_store %arg6[%c0_105, %c640_106], %126 {strides = array<i32>} : memref<160x1152xf32, #tpu.memory_space<vmem>>, vector<160x64xf32>,
    %c23_107 = arith.constant 23 : index
    %c0_108 = arith.constant 0 : index
    %128 = vector.load %arg5[%c23_107, %c0_108] : memref<192x64xf32, #tpu.memory_space<vmem>>, vector<160x64xf32>
    %c0_109 = arith.constant 0 : index
    %c768_110 = arith.constant 768 : index
    %129 = vector.load %arg6[%c0_109, %c768_110] : memref<160x1152xf32, #tpu.memory_space<vmem>>, vector<160x64xf32>
    tpu.vector_store %arg6[%c0_109, %c768_110], %128 {strides = array<i32>} : memref<160x1152xf32, #tpu.memory_space<vmem>>, vector<160x64xf32>,
    %c24_111 = arith.constant 24 : index
    %c0_112 = arith.constant 0 : index
    %130 = vector.load %arg5[%c24_111, %c0_112] : memref<192x64xf32, #tpu.memory_space<vmem>>, vector<160x64xf32>
    %c0_113 = arith.constant 0 : index
    %c896_114 = arith.constant 896 : index
    %131 = vector.load %arg6[%c0_113, %c896_114] : memref<160x1152xf32, #tpu.memory_space<vmem>>, vector<160x64xf32>
    tpu.vector_store %arg6[%c0_113, %c896_114], %130 {strides = array<i32>} : memref<160x1152xf32, #tpu.memory_space<vmem>>, vector<160x64xf32>,
    %c25_115 = arith.constant 25 : index
    %c0_116 = arith.constant 0 : index
    %132 = vector.load %arg5[%c25_115, %c0_116] : memref<192x64xf32, #tpu.memory_space<vmem>>, vector<160x64xf32>
    %c0_117 = arith.constant 0 : index
    %c1024_118 = arith.constant 1024 : index
    %133 = vector.load %arg6[%c0_117, %c1024_118] : memref<160x1152xf32, #tpu.memory_space<vmem>>, vector<160x64xf32>
    tpu.vector_store %arg6[%c0_117, %c1024_118], %132 {strides = array<i32>} : memref<160x1152xf32, #tpu.memory_space<vmem>>, vector<160x64xf32>,
    %c1168 = arith.constant 1168 : index
    %c0_119 = arith.constant 0 : index
    %134 = vector.load %arg1[%c1168, %c0_119] : memref<2712x128xf32, #tpu.memory_space<vmem>>, vector<1152x128xf32>
    %c0_120 = arith.constant 0 : index
    %c0_121 = arith.constant 0 : index
    %135 = vector.load %arg6[%c0_120, %c0_121] : memref<160x1152xf32, #tpu.memory_space<vmem>>, vector<160x1152xf32>
    %cst_122 = arith.constant dense<0.000000e+00> : vector<160x128xf32>
    %136 = tpu.matmul %135, %134, %cst_122 {dimension_numbers = #tpu.dot_dimension_numbers<[1], [0], [0], [1], [0, 0, 1, 1], [], []>} : vector<160x1152xf32>, vector<1152x128xf32>, vector<160x128xf32> -> vector<160x128xf32>
    %137 = vector.broadcast %4 : vector<1x128xf32> to vector<160x128xf32>
    %138 = arith.addf %136, %137 : vector<160x128xf32>
    %cst_123 = arith.constant 0.000000e+00 : f32
    %139 = vector.broadcast %cst_123 : f32 to vector<160x128xf32>
    %140 = arith.maximumf %138, %139 : vector<160x128xf32>
    %141 = vector.broadcast %5 : vector<1x128xf32> to vector<160x128xf32>
    %142 = arith.mulf %140, %141 : vector<160x128xf32>
    %cst_124 = arith.constant dense<0.000000e+00> : vector<160xf32>
    %143 = vector.multi_reduction <add>, %142, %cst_124 [1] : vector<160x128xf32> to vector<160xf32>
    %144 = vector.shape_cast %143 : vector<160xf32> to vector<160x1xf32>
    %145 = vector.broadcast %6 : vector<1x1xf32> to vector<160x1xf32>
    %146 = arith.addf %144, %145 : vector<160x1xf32>
    %cst_125 = arith.constant 0.000000e+00 : f32
    %147 = vector.broadcast %cst_125 : f32 to vector<160x1xf32>
    %148 = arith.maximumf %146, %147 : vector<160x1xf32>
    %c2320 = arith.constant 2320 : index
    %c0_126 = arith.constant 0 : index
    %149 = vector.load %arg1[%c2320, %c0_126] : memref<2712x128xf32, #tpu.memory_space<vmem>>, vector<160x64xf32>
    %150 = vector.broadcast %148 : vector<160x1xf32> to vector<160x64xf32>
    %151 = arith.mulf %150, %149 : vector<160x64xf32>
    %152 = vector.extract_strided_slice %151 {offsets = [0, 0], sizes = [80, 64], strides = [1, 1]} : vector<160x64xf32> to vector<80x64xf32>
    %cst_127 = arith.constant dense<0.000000e+00> : vector<64xf32>
    %153 = vector.multi_reduction <add>, %152, %cst_127 [0] : vector<80x64xf32> to vector<64xf32>
    %154 = vector.shape_cast %153 : vector<64xf32> to vector<1x64xf32>
    %155 = vector.extract_strided_slice %151 {offsets = [80, 0], sizes = [80, 64], strides = [1, 1]} : vector<160x64xf32> to vector<80x64xf32>
    %cst_128 = arith.constant dense<0.000000e+00> : vector<64xf32>
    %156 = vector.multi_reduction <add>, %155, %cst_128 [0] : vector<80x64xf32> to vector<64xf32>
    %157 = vector.shape_cast %156 : vector<64xf32> to vector<1x64xf32>
    %158 = tpu.concatenate %154, %157 in 0 : vector<1x64xf32>, vector<1x64xf32> -> vector<2x64xf32>
    %159 = vector.broadcast %7 : vector<1x64xf32> to vector<2x64xf32>
    %160 = arith.addf %158, %159 : vector<2x64xf32>
    %cst_129 = arith.constant 0.000000e+00 : f32
    %161 = vector.broadcast %cst_129 : f32 to vector<2x64xf32>
    %162 = arith.maximumf %160, %161 : vector<2x64xf32>
    %c2648 = arith.constant 2648 : index
    %c0_130 = arith.constant 0 : index
    %163 = vector.load %arg1[%c2648, %c0_130] : memref<2712x128xf32, #tpu.memory_space<vmem>>, vector<64x4xf32>
    %cst_131 = arith.constant dense<0.000000e+00> : vector<2x4xf32>
    %164 = tpu.matmul %162, %163, %cst_131 {dimension_numbers = #tpu.dot_dimension_numbers<[1], [0], [0], [1], [0, 0, 1, 1], [], []>} : vector<2x64xf32>, vector<64x4xf32>, vector<2x4xf32> -> vector<2x4xf32>
    %165 = vector.broadcast %8 : vector<1x4xf32> to vector<2x4xf32>
    %166 = arith.addf %164, %165 : vector<2x4xf32>
    %c0_132 = arith.constant 0 : index
    %c0_133 = arith.constant 0 : index
    %167 = vector.load %arg2[%c0_132, %c0_133] : memref<2x4xf32, #tpu.memory_space<vmem>>, vector<2x4xf32>
    tpu.vector_store %arg2[%c0_132, %c0_133], %166 {strides = array<i32>} : memref<2x4xf32, #tpu.memory_space<vmem>>, vector<2x4xf32>,
    return
  }
}

</mosaic_0001>

<llo_original>
// kernel: forward.1
$region0: #{forward.1}
  #allocation0 [shape = 'u32[]', space=smem, size = 0x4, offset = 0x4, fixed_abs, tag = 'smem constant byte address 0x4 - core index']
  #allocation1 [shape = 'u32[72,128]{1,0:T(1,128)}', space=vmem, size = 0x9000, scoped, tag = 'internal scratch']
  #allocation2 [shape = 'f32[192,1]{1,0:T(8,128)}', space=vmem, size = 0x18000, scoped, tag = 'scratch operand']
  #allocation3 [shape = 'f32[192,32]{1,0:T(8,128)}', space=vmem, size = 0x18000, scoped, tag = 'scratch operand']
  #allocation4 [shape = 'f32[192,64]{1,0:T(8,128)}', space=vmem, size = 0x18000, scoped, tag = 'scratch operand']
  #allocation5 [shape = 'f32[160,1152]{1,0:T(8,128)}', space=vmem, size = 0xb4000, scoped, tag = 'scratch operand']
  %s0 = inlined_call_operand.vmem [shape: f32[1,80], index: 0, kind: input, shape index: {}]
  %s1 = inlined_call_operand.hbm [shape: f32[2712,128], index: 1, kind: input, shape index: {}]
  %s2 = inlined_call_operand.hbm [shape: f32[2,4], index: 2, kind: output, shape index: {}]
  %s3 = sld [smem:[#allocation0]]
  $region22: #{forward.1} parent=0
    _
  %s5 = ssub.s32 1, %s3
  %s6 = scalar_select 0, %s5, %s3
  $region1: #{forward.1} parent=0
    #allocation6 [shape = 'u8[1388544]{0}', space=vmem, size = 0x153000, scoped, tag = 'input window, operand 1, single buffered']
    #allocation7 [shape = 's32[1]{0}', space=sflag, size = 0x4, scoped, tag = 'scoped memory for forward.1']
    #allocation8 [shape = 's32[1]{0}', space=sflag, size = 0x4, scoped, tag = 'scoped memory for forward.1']
    #allocation9 [shape = 'u8[1024]{0}', space=vmem, size = 0x400, scoped, tag = 'output window, operand 0, single buffered']
    %7 = vsyncpa [#allocation7], 0
    %8 = vsyncpa [#allocation8], 0
    // Predicated region
    $region2: #{forward.1} parent=1 // pred_check
      _
    $region3: #{forward.1} parent=1 // pred_check_branch
      %10 = sbr.rel (0) target = $region5
    $region4: #{forward.1} parent=1 // pred_region
      _
    $region5: #{forward.1} parent=1 // pred_fallthru
      _
    // Predicated region
    $region6: #{forward.1} parent=1 // pred_check
      _
    $region7: #{forward.1} parent=1 // pred_check_branch
      %12 = sbr.rel (0) target = $region9
    $region8: #{forward.1} parent=1 // pred_region
      %14 = vsyncadd [#allocation7], 0
      %s15 = sshll.u32 %s1, 4
      %s16 = int_to_ptr.hbm [resolvable:$true] %s15
      %s17 = sshll.u32 [#allocation6], 4
      %s18 = int_to_ptr.vmem [resolvable:$true] %s17
      %23 = dma.hbm_to_vmem [thread:$0]  %s16, 43392, %s18, [#allocation7], 128, 128, 8
    $region9: #{forward.1} parent=1 // pred_fallthru
      _
    // Predicated region
    $region10: #{forward.1} parent=1 // pred_check
      _
    $region11: #{forward.1} parent=1 // pred_check_branch
      %25 = sbr.rel (0) target = $region13
    $region12: #{forward.1} parent=1 // pred_region
      %27 = dma.done [#allocation7], 43392
    $region13: #{forward.1} parent=1 // pred_fallthru
      _
    %v28 = vld [vmem:[#allocation6 + $0x9b0] sm:$0xff]
    %v29 = vld [vmem:[#allocation6 + $0x9b8] sm:$0xff]
    %v30 = vld [vmem:[#allocation6 + $0x9c0] sm:$0xff]
    %v31 = vld [vmem:[#allocation6 + $0x9c8] sm:$0xff]
    %v32 = vld [vmem:[#allocation6 + $0x9d0] sm:$0xff]
    %v33 = vld [vmem:[#allocation6 + $0x9d8] sm:$0xff]
    %v34 = vld [vmem:[#allocation6 + $0x9e0] sm:$0xff]
    %v35 = vld [vmem:[#allocation6 + $0x9e8] sm:$0xff]
    %v36 = vld [vmem:[#allocation6 + $0x9f0] sm:$0xff]
    %v37 = vld [vmem:[#allocation6 + $0x9f8] sm:$0xff]
    %v38 = vld [vmem:[#allocation6 + $0xa00] sm:$0xff]
    %v39 = vld [vmem:[#allocation6 + $0xa08] sm:$0xff]
    %v40 = vld [vmem:[#allocation6 + $0xa10] sm:$0xff]
    %v41 = vld [vmem:[#allocation6 + $0xa18] sm:$0xff]
    %v42 = vld [vmem:[#allocation6 + $0xa20] sm:$0xff]
    %v43 = vld [vmem:[#allocation6 + $0xa28] sm:$0xff]
    %v44 = vld [vmem:[#allocation6 + $0xa30] sm:$0xff]
    %v45 = vld [vmem:[#allocation6 + $0xa38] sm:$0xff]
    %v46 = vld [vmem:[#allocation6 + $0xa40] sm:$0xff]
    %v47 = vld [vmem:[#allocation6 + $0xa48] sm:$0xff]
    %v48 = vld [vmem:[#allocation6 + $0xa50] sm:$0xff]
    %v49 = vld [vmem:[%s0] sm:$0x1]
    %v51 = vperm.slane %v49, 0
    %v53 = vmul.f32 %v28, %v51
    %v54 = vmul.f32 %v29, %v51
    %v55 = vmul.f32 %v30, %v51
    %v56 = vmul.f32 %v31, %v51
    %v57 = vmul.f32 %v32, %v51
    %v58 = vmul.f32 %v33, %v51
    %v59 = vmul.f32 %v34, %v51
    %v60 = vmul.f32 %v35, %v51
    %v61 = vmul.f32 %v36, %v51
    %v62 = vmul.f32 %v37, %v51
    %v63 = vmul.f32 %v38, %v51
    %v64 = vmul.f32 %v39, %v51
    %v65 = vmul.f32 %v40, %v51
    %v66 = vmul.f32 %v41, %v51
    %v67 = vmul.f32 %v42, %v51
    %v68 = vmul.f32 %v43, %v51
    %v69 = vmul.f32 %v44, %v51
    %v70 = vmul.f32 %v45, %v51
    %v71 = vmul.f32 %v46, %v51
    %v72 = vmul.f32 %v47, %v51
    %vm73 = vcmask 654336
    %v74 = vsel %vm73, %v53, 0.0
    %75 = vadd.xlane.f32.xlu0 %v74
    %v76 = vpop.xlane.xlu0 %75
    %v77 = vsel %vm73, %v54, 0.0
    %78 = vadd.xlane.f32.xlu0 %v77
    %v79 = vpop.xlane.xlu0 %78
    %v80 = vsel %vm73, %v55, 0.0
    %81 = vadd.xlane.f32.xlu0 %v80
    %v82 = vpop.xlane.xlu0 %81
    %v83 = vsel %vm73, %v56, 0.0
    %84 = vadd.xlane.f32.xlu0 %v83
    %v85 = vpop.xlane.xlu0 %84
    %v86 = vsel %vm73, %v57, 0.0
    %87 = vadd.xlane.f32.xlu0 %v86
    %v88 = vpop.xlane.xlu0 %87
    %v89 = vsel %vm73, %v58, 0.0
    %90 = vadd.xlane.f32.xlu0 %v89
    %v91 = vpop.xlane.xlu0 %90
    %v92 = vsel %vm73, %v59, 0.0
    %93 = vadd.xlane.f32.xlu0 %v92
    %v94 = vpop.xlane.xlu0 %93
    %v95 = vsel %vm73, %v60, 0.0
    %96 = vadd.xlane.f32.xlu0 %v95
    %v97 = vpop.xlane.xlu0 %96
    %v98 = vsel %vm73, %v61, 0.0
    %99 = vadd.xlane.f32.xlu0 %v98
    %v100 = vpop.xlane.xlu0 %99
    %v101 = vsel %vm73, %v62, 0.0
    %102 = vadd.xlane.f32.xlu0 %v101
    %v103 = vpop.xlane.xlu0 %102
    %v104 = vsel %vm73, %v63, 0.0
    %105 = vadd.xlane.f32.xlu0 %v104
    %v106 = vpop.xlane.xlu0 %105
    %v107 = vsel %vm73, %v64, 0.0
    %108 = vadd.xlane.f32.xlu0 %v107
    %v109 = vpop.xlane.xlu0 %108
    %v110 = vsel %vm73, %v65, 0.0
    %111 = vadd.xlane.f32.xlu0 %v110
    %v112 = vpop.xlane.xlu0 %111
    %v113 = vsel %vm73, %v66, 0.0
    %114 = vadd.xlane.f32.xlu0 %v113
    %v115 = vpop.xlane.xlu0 %114
    %v116 = vsel %vm73, %v67, 0.0
    %117 = vadd.xlane.f32.xlu0 %v116
    %v118 = vpop.xlane.xlu0 %117
    %v119 = vsel %vm73, %v68, 0.0
    %120 = vadd.xlane.f32.xlu0 %v119
    %v121 = vpop.xlane.xlu0 %120
    %v122 = vsel %vm73, %v69, 0.0
    %123 = vadd.xlane.f32.xlu0 %v122
    %v124 = vpop.xlane.xlu0 %123
    %v125 = vsel %vm73, %v70, 0.0
    %126 = vadd.xlane.f32.xlu0 %v125
    %v127 = vpop.xlane.xlu0 %126
    %v128 = vsel %vm73, %v71, 0.0
    %129 = vadd.xlane.f32.xlu0 %v128
    %v130 = vpop.xlane.xlu0 %129
    %v131 = vsel %vm73, %v72, 0.0
    %132 = vadd.xlane.f32.xlu0 %v131
    %v133 = vpop.xlane.xlu0 %132
    %v134 = vsel %vm73, %v28, 0.0
    %135 = vadd.xlane.f32.xlu0 %v134
    %v136 = vpop.xlane.xlu0 %135
    %v137 = vsel %vm73, %v29, 0.0
    %138 = vadd.xlane.f32.xlu0 %v137
    %v139 = vpop.xlane.xlu0 %138
    %v140 = vsel %vm73, %v30, 0.0
    %141 = vadd.xlane.f32.xlu0 %v140
    %v142 = vpop.xlane.xlu0 %141
    %v143 = vsel %vm73, %v31, 0.0
    %144 = vadd.xlane.f32.xlu0 %v143
    %v145 = vpop.xlane.xlu0 %144
    %v146 = vsel %vm73, %v32, 0.0
    %147 = vadd.xlane.f32.xlu0 %v146
    %v148 = vpop.xlane.xlu0 %147
    %v149 = vsel %vm73, %v33, 0.0
    %150 = vadd.xlane.f32.xlu0 %v149
    %v151 = vpop.xlane.xlu0 %150
    %v152 = vsel %vm73, %v34, 0.0
    %153 = vadd.xlane.f32.xlu0 %v152
    %v154 = vpop.xlane.xlu0 %153
    %v155 = vsel %vm73, %v35, 0.0
    %156 = vadd.xlane.f32.xlu0 %v155
    %v157 = vpop.xlane.xlu0 %156
    %v158 = vsel %vm73, %v36, 0.0
    %159 = vadd.xlane.f32.xlu0 %v158
    %v160 = vpop.xlane.xlu0 %159
    %v161 = vsel %vm73, %v37, 0.0
    %162 = vadd.xlane.f32.xlu0 %v161
    %v163 = vpop.xlane.xlu0 %162
    %v164 = vsel %vm73, %v38, 0.0
    %165 = vadd.xlane.f32.xlu0 %v164
    %v166 = vpop.xlane.xlu0 %165
    %v167 = vsel %vm73, %v39, 0.0
    %168 = vadd.xlane.f32.xlu0 %v167
    %v169 = vpop.xlane.xlu0 %168
    %v170 = vsel %vm73, %v40, 0.0
    %171 = vadd.xlane.f32.xlu0 %v170
    %v172 = vpop.xlane.xlu0 %171
    %v173 = vsel %vm73, %v41, 0.0
    %174 = vadd.xlane.f32.xlu0 %v173
    %v175 = vpop.xlane.xlu0 %174
    %v176 = vsel %vm73, %v42, 0.0
    %177 = vadd.xlane.f32.xlu0 %v176
    %v178 = vpop.xlane.xlu0 %177
    %v179 = vsel %vm73, %v43, 0.0
    %180 = vadd.xlane.f32.xlu0 %v179
    %v181 = vpop.xlane.xlu0 %180
    %v182 = vsel %vm73, %v44, 0.0
    %183 = vadd.xlane.f32.xlu0 %v182
    %v184 = vpop.xlane.xlu0 %183
    %v185 = vsel %vm73, %v45, 0.0
    %186 = vadd.xlane.f32.xlu0 %v185
    %v187 = vpop.xlane.xlu0 %186
    %v188 = vsel %vm73, %v46, 0.0
    %189 = vadd.xlane.f32.xlu0 %v188
    %v190 = vpop.xlane.xlu0 %189
    %v191 = vsel %vm73, %v47, 0.0
    %192 = vadd.xlane.f32.xlu0 %v191
    %v193 = vpop.xlane.xlu0 %192
    %vm194 = vcmask 7168
    %195 = vst.msk [vmem:[#allocation2] sm:$0xff] %vm194, 0.0
    %196 = vst.msk [vmem:[#allocation2 + $0x8] sm:$0xff] %vm194, 0.0
    %197 = vst.msk [vmem:[#allocation2 + $0xb0] sm:$0xff] %vm194, 0.0
    %198 = vst.msk [vmem:[#allocation2 + $0xb8] sm:$0xff] %vm194, 0.0
    %vm199 = vcmask 261120
    %200 = vst.msk [vmem:[#allocation3] sm:$0xff] %vm199, 0.0
    %201 = vst.msk [vmem:[#allocation3 + $0x8] sm:$0xff] %vm199, 0.0
    %202 = vst.msk [vmem:[#allocation3 + $0xb0] sm:$0xff] %vm199, 0.0
    %203 = vst.msk [vmem:[#allocation3 + $0xb8] sm:$0xff] %vm199, 0.0
    %vm204 = vcmask 523264
    %205 = vst.msk [vmem:[#allocation4] sm:$0xff] %vm204, 0.0
    %206 = vst.msk [vmem:[#allocation4 + $0x8] sm:$0xff] %vm204, 0.0
    %207 = vst.msk [vmem:[#allocation4 + $0xb0] sm:$0xff] %vm204, 0.0
    %208 = vst.msk [vmem:[#allocation4 + $0xb8] sm:$0xff] %vm204, 0.0
    %209 = vst [vmem:[#allocation5] sm:$0xff] 0.0
    %210 = vst [vmem:[#allocation5 + $0x8] sm:$0xff] 0.0
    %211 = vst [vmem:[#allocation5 + $0x10] sm:$0xff] 0.0
    %212 = vst [vmem:[#allocation5 + $0x18] sm:$0xff] 0.0
    %213 = vst [vmem:[#allocation5 + $0x20] sm:$0xff] 0.0
    %214 = vst [vmem:[#allocation5 + $0x28] sm:$0xff] 0.0
    %215 = vst [vmem:[#allocation5 + $0x30] sm:$0xff] 0.0
    %216 = vst [vmem:[#allocation5 + $0x38] sm:$0xff] 0.0
    %217 = vst [vmem:[#allocation5 + $0x40] sm:$0xff] 0.0
    %218 = vst [vmem:[#allocation5 + $0x48] sm:$0xff] 0.0
    %219 = vst [vmem:[#allocation5 + $0x50] sm:$0xff] 0.0
    %220 = vst [vmem:[#allocation5 + $0x58] sm:$0xff] 0.0
    %221 = vst [vmem:[#allocation5 + $0x60] sm:$0xff] 0.0
    %222 = vst [vmem:[#allocation5 + $0x68] sm:$0xff] 0.0
    %223 = vst [vmem:[#allocation5 + $0x70] sm:$0xff] 0.0
    %224 = vst [vmem:[#allocation5 + $0x78] sm:$0xff] 0.0
    %225 = vst [vmem:[#allocation5 + $0x80] sm:$0xff] 0.0
    %226 = vst [vmem:[#allocation5 + $0x88] sm:$0xff] 0.0
    %227 = vst [vmem:[#allocation5 + $0x90] sm:$0xff] 0.0
    %228 = vst [vmem:[#allocation5 + $0x98] sm:$0xff] 0.0
    %229 = vst [vmem:[#allocation5 + $0xa0] sm:$0xff] 0.0
    %230 = vst [vmem:[#allocation5 + $0xa8] sm:$0xff] 0.0
    %231 = vst [vmem:[#allocation5 + $0xb0] sm:$0xff] 0.0
    %232 = vst [vmem:[#allocation5 + $0xb8] sm:$0xff] 0.0
    %233 = vst [vmem:[#allocation5 + $0xc0] sm:$0xff] 0.0
    %234 = vst [vmem:[#allocation5 + $0xc8] sm:$0xff] 0.0
    %235 = vst [vmem:[#allocation5 + $0xd0] sm:$0xff] 0.0
    %236 = vst [vmem:[#allocation5 + $0xd8] sm:$0xff] 0.0
    %237 = vst [vmem:[#allocation5 + $0xe0] sm:$0xff] 0.0
    %238 = vst [vmem:[#allocation5 + $0xe8] sm:$0xff] 0.0
    %239 = vst [vmem:[#allocation5 + $0xf0] sm:$0xff] 0.0
    %240 = vst [vmem:[#allocation5 + $0xf8] sm:$0xff] 0.0
    %241 = vst [vmem:[#allocation5 + $0x100] sm:$0xff] 0.0
    %242 = vst [vmem:[#allocation5 + $0x108] sm:$0xff] 0.0
    %243 = vst [vmem:[#allocation5 + $0x110] sm:$0xff] 0.0
    %244 = vst [vmem:[#allocation5 + $0x118] sm:$0xff] 0.0
    %245 = vst [vmem:[#allocation5 + $0x120] sm:$0xff] 0.0
    %246 = vst [vmem:[#allocation5 + $0x128] sm:$0xff] 0.0
    %247 = vst [vmem:[#allocation5 + $0x130] sm:$0xff] 0.0
    %248 = vst [vmem:[#allocation5 + $0x138] sm:$0xff] 0.0
    %249 = vst [vmem:[#allocation5 + $0x140] sm:$0xff] 0.0
    %250 = vst [vmem:[#allocation5 + $0x148] sm:$0xff] 0.0
    %251 = vst [vmem:[#allocation5 + $0x150] sm:$0xff] 0.0
    %252 = vst [vmem:[#allocation5 + $0x158] sm:$0xff] 0.0
    %253 = vst [vmem:[#allocation5 + $0x160] sm:$0xff] 0.0
    %254 = vst [vmem:[#allocation5 + $0x168] sm:$0xff] 0.0
    %255 = vst [vmem:[#allocation5 + $0x170] sm:$0xff] 0.0
    %256 = vst [vmem:[#allocation5 + $0x178] sm:$0xff] 0.0
    %257 = vst [vmem:[#allocation5 + $0x180] sm:$0xff] 0.0
    %258 = vst [vmem:[#allocation5 + $0x188] sm:$0xff] 0.0
    %259 = vst [vmem:[#allocation5 + $0x190] sm:$0xff] 0.0
    %260 = vst [vmem:[#allocation5 + $0x198] sm:$0xff] 0.0
    %261 = vst [vmem:[#allocation5 + $0x1a0] sm:$0xff] 0.0
    %262 = vst [vmem:[#allocation5 + $0x1a8] sm:$0xff] 0.0
    %263 = vst [vmem:[#allocation5 + $0x1b0] sm:$0xff] 0.0
    %264 = vst [vmem:[#allocation5 + $0x1b8] sm:$0xff] 0.0
    %265 = vst [vmem:[#allocation5 + $0x1c0] sm:$0xff] 0.0
    %266 = vst [vmem:[#allocation5 + $0x1c8] sm:$0xff] 0.0
    %267 = vst [vmem:[#allocation5 + $0x1d0] sm:$0xff] 0.0
    %268 = vst [vmem:[#allocation5 + $0x1d8] sm:$0xff] 0.0
    %269 = vst [vmem:[#allocation5 + $0x1e0] sm:$0xff] 0.0
    %270 = vst [vmem:[#allocation5 + $0x1e8] sm:$0xff] 0.0
    %271 = vst [vmem:[#allocation5 + $0x1f0] sm:$0xff] 0.0
    %272 = vst [vmem:[#allocation5 + $0x1f8] sm:$0xff] 0.0
    %273 = vst [vmem:[#allocation5 + $0x200] sm:$0xff] 0.0
    %274 = vst [vmem:[#allocation5 + $0x208] sm:$0xff] 0.0
    %275 = vst [vmem:[#allocation5 + $0x210] sm:$0xff] 0.0
    %276 = vst [vmem:[#allocation5 + $0x218] sm:$0xff] 0.0
    %277 = vst [vmem:[#allocation5 + $0x220] sm:$0xff] 0.0
    %278 = vst [vmem:[#allocation5 + $0x228] sm:$0xff] 0.0
    %279 = vst [vmem:[#allocation5 + $0x230] sm:$0xff] 0.0
    %280 = vst [vmem:[#allocation5 + $0x238] sm:$0xff] 0.0
    %281 = vst [vmem:[#allocation5 + $0x240] sm:$0xff] 0.0
    %282 = vst [vmem:[#allocation5 + $0x248] sm:$0xff] 0.0
    %283 = vst [vmem:[#allocation5 + $0x250] sm:$0xff] 0.0
    %284 = vst [vmem:[#allocation5 + $0x258] sm:$0xff] 0.0
    %285 = vst [vmem:[#allocation5 + $0x260] sm:$0xff] 0.0
    %286 = vst [vmem:[#allocation5 + $0x268] sm:$0xff] 0.0
    %287 = vst [vmem:[#allocation5 + $0x270] sm:$0xff] 0.0
    %288 = vst [vmem:[#allocation5 + $0x278] sm:$0xff] 0.0
    %289 = vst [vmem:[#allocation5 + $0x280] sm:$0xff] 0.0
    %290 = vst [vmem:[#allocation5 + $0x288] sm:$0xff] 0.0
    %291 = vst [vmem:[#allocation5 + $0x290] sm:$0xff] 0.0
    %292 = vst [vmem:[#allocation5 + $0x298] sm:$0xff] 0.0
    %293 = vst [vmem:[#allocation5 + $0x2a0] sm:$0xff] 0.0
    %294 = vst [vmem:[#allocation5 + $0x2a8] sm:$0xff] 0.0
    %295 = vst [vmem:[#allocation5 + $0x2b0] sm:$0xff] 0.0
    %296 = vst [vmem:[#allocation5 + $0x2b8] sm:$0xff] 0.0
    %297 = vst [vmem:[#allocation5 + $0x2c0] sm:$0xff] 0.0
    %298 = vst [vmem:[#allocation5 + $0x2c8] sm:$0xff] 0.0
    %299 = vst [vmem:[#allocation5 + $0x2d0] sm:$0xff] 0.0
    %300 = vst [vmem:[#allocation5 + $0x2d8] sm:$0xff] 0.0
    %301 = vst [vmem:[#allocation5 + $0x2e0] sm:$0xff] 0.0
    %302 = vst [vmem:[#allocation5 + $0x2e8] sm:$0xff] 0.0
    %303 = vst [vmem:[#allocation5 + $0x2f0] sm:$0xff] 0.0
    %304 = vst [vmem:[#allocation5 + $0x2f8] sm:$0xff] 0.0
    %305 = vst [vmem:[#allocation5 + $0x300] sm:$0xff] 0.0
    %306 = vst [vmem:[#allocation5 + $0x308] sm:$0xff] 0.0
    %307 = vst [vmem:[#allocation5 + $0x310] sm:$0xff] 0.0
    %308 = vst [vmem:[#allocation5 + $0x318] sm:$0xff] 0.0
    %309 = vst [vmem:[#allocation5 + $0x320] sm:$0xff] 0.0
    %310 = vst [vmem:[#allocation5 + $0x328] sm:$0xff] 0.0
    %311 = vst [vmem:[#allocation5 + $0x330] sm:$0xff] 0.0
    %312 = vst [vmem:[#allocation5 + $0x338] sm:$0xff] 0.0
    %313 = vst [vmem:[#allocation5 + $0x340] sm:$0xff] 0.0
    %314 = vst [vmem:[#allocation5 + $0x348] sm:$0xff] 0.0
    %315 = vst [vmem:[#allocation5 + $0x350] sm:$0xff] 0.0
    %316 = vst [vmem:[#allocation5 + $0x358] sm:$0xff] 0.0
    %317 = vst [vmem:[#allocation5 + $0x360] sm:$0xff] 0.0
    %318 = vst [vmem:[#allocation5 + $0x368] sm:$0xff] 0.0
    %319 = vst [vmem:[#allocation5 + $0x370] sm:$0xff] 0.0
    %320 = vst [vmem:[#allocation5 + $0x378] sm:$0xff] 0.0
    %321 = vst [vmem:[#allocation5 + $0x380] sm:$0xff] 0.0
    %322 = vst [vmem:[#allocation5 + $0x388] sm:$0xff] 0.0
    %323 = vst [vmem:[#allocation5 + $0x390] sm:$0xff] 0.0
    %324 = vst [vmem:[#allocation5 + $0x398] sm:$0xff] 0.0
    %325 = vst [vmem:[#allocation5 + $0x3a0] sm:$0xff] 0.0
    %326 = vst [vmem:[#allocation5 + $0x3a8] sm:$0xff] 0.0
    %327 = vst [vmem:[#allocation5 + $0x3b0] sm:$0xff] 0.0
    %328 = vst [vmem:[#allocation5 + $0x3b8] sm:$0xff] 0.0
    %329 = vst [vmem:[#allocation5 + $0x3c0] sm:$0xff] 0.0
    %330 = vst [vmem:[#allocation5 + $0x3c8] sm:$0xff] 0.0
    %331 = vst [vmem:[#allocation5 + $0x3d0] sm:$0xff] 0.0
    %332 = vst [vmem:[#allocation5 + $0x3d8] sm:$0xff] 0.0
    %333 = vst [vmem:[#allocation5 + $0x3e0] sm:$0xff] 0.0
    %334 = vst [vmem:[#allocation5 + $0x3e8] sm:$0xff] 0.0
    %335 = vst [vmem:[#allocation5 + $0x3f0] sm:$0xff] 0.0
    %336 = vst [vmem:[#allocation5 + $0x3f8] sm:$0xff] 0.0
    %337 = vst [vmem:[#allocation5 + $0x400] sm:$0xff] 0.0
    %338 = vst [vmem:[#allocation5 + $0x408] sm:$0xff] 0.0
    %339 = vst [vmem:[#allocation5 + $0x410] sm:$0xff] 0.0
    %340 = vst [vmem:[#allocation5 + $0x418] sm:$0xff] 0.0
    %341 = vst [vmem:[#allocation5 + $0x420] sm:$0xff] 0.0
    %342 = vst [vmem:[#allocation5 + $0x428] sm:$0xff] 0.0
    %343 = vst [vmem:[#allocation5 + $0x430] sm:$0xff] 0.0
    %344 = vst [vmem:[#allocation5 + $0x438] sm:$0xff] 0.0
    %345 = vst [vmem:[#allocation5 + $0x440] sm:$0xff] 0.0
    %346 = vst [vmem:[#allocation5 + $0x448] sm:$0xff] 0.0
    %347 = vst [vmem:[#allocation5 + $0x450] sm:$0xff] 0.0
    %348 = vst [vmem:[#allocation5 + $0x458] sm:$0xff] 0.0
    %349 = vst [vmem:[#allocation5 + $0x460] sm:$0xff] 0.0
    %350 = vst [vmem:[#allocation5 + $0x468] sm:$0xff] 0.0
    %351 = vst [vmem:[#allocation5 + $0x470] sm:$0xff] 0.0
    %352 = vst [vmem:[#allocation5 + $0x478] sm:$0xff] 0.0
    %353 = vst [vmem:[#allocation5 + $0x480] sm:$0xff] 0.0
    %354 = vst [vmem:[#allocation5 + $0x488] sm:$0xff] 0.0
    %355 = vst [vmem:[#allocation5 + $0x490] sm:$0xff] 0.0
    %356 = vst [vmem:[#allocation5 + $0x498] sm:$0xff] 0.0
    %357 = vst [vmem:[#allocation5 + $0x4a0] sm:$0xff] 0.0
    %358 = vst [vmem:[#allocation5 + $0x4a8] sm:$0xff] 0.0
    %359 = vst [vmem:[#allocation5 + $0x4b0] sm:$0xff] 0.0
    %360 = vst [vmem:[#allocation5 + $0x4b8] sm:$0xff] 0.0
    %361 = vst [vmem:[#allocation5 + $0x4c0] sm:$0xff] 0.0
    %362 = vst [vmem:[#allocation5 + $0x4c8] sm:$0xff] 0.0
    %363 = vst [vmem:[#allocation5 + $0x4d0] sm:$0xff] 0.0
    %364 = vst [vmem:[#allocation5 + $0x4d8] sm:$0xff] 0.0
    %365 = vst [vmem:[#allocation5 + $0x4e0] sm:$0xff] 0.0
    %366 = vst [vmem:[#allocation5 + $0x4e8] sm:$0xff] 0.0
    %367 = vst [vmem:[#allocation5 + $0x4f0] sm:$0xff] 0.0
    %368 = vst [vmem:[#allocation5 + $0x4f8] sm:$0xff] 0.0
    %369 = vst [vmem:[#allocation5 + $0x500] sm:$0xff] 0.0
    %370 = vst [vmem:[#allocation5 + $0x508] sm:$0xff] 0.0
    %371 = vst [vmem:[#allocation5 + $0x510] sm:$0xff] 0.0
    %372 = vst [vmem:[#allocation5 + $0x518] sm:$0xff] 0.0
    %373 = vst [vmem:[#allocation5 + $0x520] sm:$0xff] 0.0
    %374 = vst [vmem:[#allocation5 + $0x528] sm:$0xff] 0.0
    %375 = vst [vmem:[#allocation5 + $0x530] sm:$0xff] 0.0
    %376 = vst [vmem:[#allocation5 + $0x538] sm:$0xff] 0.0
    %377 = vst [vmem:[#allocation5 + $0x540] sm:$0xff] 0.0
    %378 = vst [vmem:[#allocation5 + $0x548] sm:$0xff] 0.0
    %379 = vst [vmem:[#allocation5 + $0x550] sm:$0xff] 0.0
    %380 = vst [vmem:[#allocation5 + $0x558] sm:$0xff] 0.0
    %381 = vst [vmem:[#allocation5 + $0x560] sm:$0xff] 0.0
    %382 = vst [vmem:[#allocation5 + $0x568] sm:$0xff] 0.0
    %383 = vst [vmem:[#allocation5 + $0x570] sm:$0xff] 0.0
    %384 = vst [vmem:[#allocation5 + $0x578] sm:$0xff] 0.0
    %385 = vst [vmem:[#allocation5 + $0x580] sm:$0xff] 0.0
    %386 = vst [vmem:[#allocation5 + $0x588] sm:$0xff] 0.0
    %387 = vst [vmem:[#allocation5 + $0x590] sm:$0xff] 0.0
    %388 = vst [vmem:[#allocation5 + $0x598] sm:$0xff] 0.0
    %389 = vst.msk [vmem:[#allocation2 + $0x10] sm:$0xff] %vm194, %v76
    %390 = vst.msk [vmem:[#allocation2 + $0x18] sm:$0xff] %vm194, %v79
    %391 = vst.msk [vmem:[#allocation2 + $0x20] sm:$0xff] %vm194, %v82
    %392 = vst.msk [vmem:[#allocation2 + $0x28] sm:$0xff] %vm194, %v85
    %393 = vst.msk [vmem:[#allocation2 + $0x30] sm:$0xff] %vm194, %v88
    %394 = vst.msk [vmem:[#allocation2 + $0x38] sm:$0xff] %vm194, %v91
    %395 = vst.msk [vmem:[#allocation2 + $0x40] sm:$0xff] %vm194, %v94
    %396 = vst.msk [vmem:[#allocation2 + $0x48] sm:$0xff] %vm194, %v97
    %397 = vst.msk [vmem:[#allocation2 + $0x50] sm:$0xff] %vm194, %v100
    %398 = vst.msk [vmem:[#allocation2 + $0x58] sm:$0xff] %vm194, %v103
    %399 = vst.msk [vmem:[#allocation2 + $0x60] sm:$0xff] %vm194, %v106
    %400 = vst.msk [vmem:[#allocation2 + $0x68] sm:$0xff] %vm194, %v109
    %401 = vst.msk [vmem:[#allocation2 + $0x70] sm:$0xff] %vm194, %v112
    %402 = vst.msk [vmem:[#allocation2 + $0x78] sm:$0xff] %vm194, %v115
    %403 = vst.msk [vmem:[#allocation2 + $0x80] sm:$0xff] %vm194, %v118
    %404 = vst.msk [vmem:[#allocation2 + $0x88] sm:$0xff] %vm194, %v121
    %405 = vst.msk [vmem:[#allocation2 + $0x90] sm:$0xff] %vm194, %v124
    %406 = vst.msk [vmem:[#allocation2 + $0x98] sm:$0xff] %vm194, %v127
    %407 = vst.msk [vmem:[#allocation2 + $0xa0] sm:$0xff] %vm194, %v130
    %408 = vst.msk [vmem:[#allocation2 + $0xa8] sm:$0xff] %vm194, %v133
    %v409 = vld [vmem:[#allocation2 + $0x7] sm:$0xff]
    %v410 = vld [vmem:[#allocation2 + $0xf] sm:$0xff]
    %v411 = vld [vmem:[#allocation2 + $0x17] sm:$0xff]
    %v412 = vld [vmem:[#allocation2 + $0x1f] sm:$0xff]
    %v413 = vld [vmem:[#allocation2 + $0x27] sm:$0xff]
    %v414 = vld [vmem:[#allocation2 + $0x2f] sm:$0xff]
    %v415 = vld [vmem:[#allocation2 + $0x37] sm:$0xff]
    %v416 = vld [vmem:[#allocation2 + $0x3f] sm:$0xff]
    %v417 = vld [vmem:[#allocation2 + $0x47] sm:$0xff]
    %v418 = vld [vmem:[#allocation2 + $0x4f] sm:$0xff]
    %v419 = vld [vmem:[#allocation2 + $0x57] sm:$0xff]
    %v420 = vld [vmem:[#allocation2 + $0x5f] sm:$0xff]
    %v421 = vld [vmem:[#allocation2 + $0x67] sm:$0xff]
    %v422 = vld [vmem:[#allocation2 + $0x6f] sm:$0xff]
    %v423 = vld [vmem:[#allocation2 + $0x77] sm:$0xff]
    %v424 = vld [vmem:[#allocation2 + $0x7f] sm:$0xff]
    %v425 = vld [vmem:[#allocation2 + $0x87] sm:$0xff]
    %v426 = vld [vmem:[#allocation2 + $0x8f] sm:$0xff]
    %v427 = vld [vmem:[#allocation2 + $0x97] sm:$0xff]
    %v428 = vld [vmem:[#allocation2 + $0x9f] sm:$0xff]
    %v429 = vld [vmem:[#allocation6] sm:$0x1]
    %431 = vset.pattern.permute.xlu0 0
    %432 = vperm.xlu0 %431, %v409
    %v433 = vpop.permute.xlu0 %432
    %436 = vset.pattern.permute.xlu0 0
    %437 = vperm.xlu0 %436, %v410
    %v438 = vpop.permute.xlu0 %437
    %441 = vset.pattern.permute.xlu0 0
    %442 = vperm.xlu0 %441, %v411
    %v443 = vpop.permute.xlu0 %442
    %446 = vset.pattern.permute.xlu0 0
    %447 = vperm.xlu0 %446, %v412
    %v448 = vpop.permute.xlu0 %447
    %451 = vset.pattern.permute.xlu0 0
    %452 = vperm.xlu0 %451, %v413
    %v453 = vpop.permute.xlu0 %452
    %456 = vset.pattern.permute.xlu0 0
    %457 = vperm.xlu0 %456, %v414
    %v458 = vpop.permute.xlu0 %457
    %461 = vset.pattern.permute.xlu0 0
    %462 = vperm.xlu0 %461, %v415
    %v463 = vpop.permute.xlu0 %462
    %466 = vset.pattern.permute.xlu0 0
    %467 = vperm.xlu0 %466, %v416
    %v468 = vpop.permute.xlu0 %467
    %471 = vset.pattern.permute.xlu0 0
    %472 = vperm.xlu0 %471, %v417
    %v473 = vpop.permute.xlu0 %472
    %476 = vset.pattern.permute.xlu0 0
    %477 = vperm.xlu0 %476, %v418
    %v478 = vpop.permute.xlu0 %477
    %481 = vset.pattern.permute.xlu0 0
    %482 = vperm.xlu0 %481, %v419
    %v483 = vpop.permute.xlu0 %482
    %486 = vset.pattern.permute.xlu0 0
    %487 = vperm.xlu0 %486, %v420
    %v488 = vpop.permute.xlu0 %487
    %491 = vset.pattern.permute.xlu0 0
    %492 = vperm.xlu0 %491, %v421
    %v493 = vpop.permute.xlu0 %492
    %496 = vset.pattern.permute.xlu0 0
    %497 = vperm.xlu0 %496, %v422
    %v498 = vpop.permute.xlu0 %497
    %501 = vset.pattern.permute.xlu0 0
    %502 = vperm.xlu0 %501, %v423
    %v503 = vpop.permute.xlu0 %502
    %506 = vset.pattern.permute.xlu0 0
    %507 = vperm.xlu0 %506, %v424
    %v508 = vpop.permute.xlu0 %507
    %511 = vset.pattern.permute.xlu0 0
    %512 = vperm.xlu0 %511, %v425
    %v513 = vpop.permute.xlu0 %512
    %516 = vset.pattern.permute.xlu0 0
    %517 = vperm.xlu0 %516, %v426
    %v518 = vpop.permute.xlu0 %517
    %521 = vset.pattern.permute.xlu0 0
    %522 = vperm.xlu0 %521, %v427
    %v523 = vpop.permute.xlu0 %522
    %526 = vset.pattern.permute.xlu0 0
    %527 = vperm.xlu0 %526, %v428
    %v528 = vpop.permute.xlu0 %527
    %v530 = vperm.slane %v429, 0
    %v531 = vmul.f32 %v433, %v530
    %v532 = vmul.f32 %v438, %v530
    %v533 = vmul.f32 %v443, %v530
    %v534 = vmul.f32 %v448, %v530
    %v535 = vmul.f32 %v453, %v530
    %v536 = vmul.f32 %v458, %v530
    %v537 = vmul.f32 %v463, %v530
    %v538 = vmul.f32 %v468, %v530
    %v539 = vmul.f32 %v473, %v530
    %v540 = vmul.f32 %v478, %v530
    %v541 = vmul.f32 %v483, %v530
    %v542 = vmul.f32 %v488, %v530
    %v543 = vmul.f32 %v493, %v530
    %v544 = vmul.f32 %v498, %v530
    %v545 = vmul.f32 %v503, %v530
    %v546 = vmul.f32 %v508, %v530
    %v547 = vmul.f32 %v513, %v530
    %v548 = vmul.f32 %v518, %v530
    %v549 = vmul.f32 %v523, %v530
    %v550 = vmul.f32 %v528, %v530
    %v551 = vld [vmem:[#allocation2 + $0x8] sm:$0xff]
    %v552 = vld [vmem:[#allocation2 + $0x10] sm:$0xff]
    %v553 = vld [vmem:[#allocation2 + $0x18] sm:$0xff]
    %v554 = vld [vmem:[#allocation2 + $0x20] sm:$0xff]
    %v555 = vld [vmem:[#allocation2 + $0x28] sm:$0xff]
    %v556 = vld [vmem:[#allocation2 + $0x30] sm:$0xff]
    %v557 = vld [vmem:[#allocation2 + $0x38] sm:$0xff]
    %v558 = vld [vmem:[#allocation2 + $0x40] sm:$0xff]
    %v559 = vld [vmem:[#allocation2 + $0x48] sm:$0xff]
    %v560 = vld [vmem:[#allocation2 + $0x50] sm:$0xff]
    %v561 = vld [vmem:[#allocation2 + $0x58] sm:$0xff]
    %v562 = vld [vmem:[#allocation2 + $0x60] sm:$0xff]
    %v563 = vld [vmem:[#allocation2 + $0x68] sm:$0xff]
    %v564 = vld [vmem:[#allocation2 + $0x70] sm:$0xff]
    %v565 = vld [vmem:[#allocation2 + $0x78] sm:$0xff]
    %v566 = vld [vmem:[#allocation2 + $0x80] sm:$0xff]
    %v567 = vld [vmem:[#allocation2 + $0x88] sm:$0xff]
    %v568 = vld [vmem:[#allocation2 + $0x90] sm:$0xff]
    %v569 = vld [vmem:[#allocation2 + $0x98] sm:$0xff]
    %v570 = vld [vmem:[#allocation2 + $0xa0] sm:$0xff]
    %v571 = vld [vmem:[#allocation6 + $0x1] sm:$0x1]
    %573 = vset.pattern.permute.xlu0 0
    %574 = vperm.xlu0 %573, %v551
    %v575 = vpop.permute.xlu0 %574
    %578 = vset.pattern.permute.xlu0 0
    %579 = vperm.xlu0 %578, %v552
    %v580 = vpop.permute.xlu0 %579
    %583 = vset.pattern.permute.xlu0 0
    %584 = vperm.xlu0 %583, %v553
    %v585 = vpop.permute.xlu0 %584
    %588 = vset.pattern.permute.xlu0 0
    %589 = vperm.xlu0 %588, %v554
    %v590 = vpop.permute.xlu0 %589
    %593 = vset.pattern.permute.xlu0 0
    %594 = vperm.xlu0 %593, %v555
    %v595 = vpop.permute.xlu0 %594
    %598 = vset.pattern.permute.xlu0 0
    %599 = vperm.xlu0 %598, %v556
    %v600 = vpop.permute.xlu0 %599
    %603 = vset.pattern.permute.xlu0 0
    %604 = vperm.xlu0 %603, %v557
    %v605 = vpop.permute.xlu0 %604
    %608 = vset.pattern.permute.xlu0 0
    %609 = vperm.xlu0 %608, %v558
    %v610 = vpop.permute.xlu0 %609
    %613 = vset.pattern.permute.xlu0 0
    %614 = vperm.xlu0 %613, %v559
    %v615 = vpop.permute.xlu0 %614
    %618 = vset.pattern.permute.xlu0 0
    %619 = vperm.xlu0 %618, %v560
    %v620 = vpop.permute.xlu0 %619
    %623 = vset.pattern.permute.xlu0 0
    %624 = vperm.xlu0 %623, %v561
    %v625 = vpop.permute.xlu0 %624
    %628 = vset.pattern.permute.xlu0 0
    %629 = vperm.xlu0 %628, %v562
    %v630 = vpop.permute.xlu0 %629
    %633 = vset.pattern.permute.xlu0 0
    %634 = vperm.xlu0 %633, %v563
    %v635 = vpop.permute.xlu0 %634
    %638 = vset.pattern.permute.xlu0 0
    %639 = vperm.xlu0 %638, %v564
    %v640 = vpop.permute.xlu0 %639
    %643 = vset.pattern.permute.xlu0 0
    %644 = vperm.xlu0 %643, %v565
    %v645 = vpop.permute.xlu0 %644
    %648 = vset.pattern.permute.xlu0 0
    %649 = vperm.xlu0 %648, %v566
    %v650 = vpop.permute.xlu0 %649
    %653 = vset.pattern.permute.xlu0 0
    %654 = vperm.xlu0 %653, %v567
    %v655 = vpop.permute.xlu0 %654
    %658 = vset.pattern.permute.xlu0 0
    %659 = vperm.xlu0 %658, %v568
    %v660 = vpop.permute.xlu0 %659
    %663 = vset.pattern.permute.xlu0 0
    %664 = vperm.xlu0 %663, %v569
    %v665 = vpop.permute.xlu0 %664
    %668 = vset.pattern.permute.xlu0 0
    %669 = vperm.xlu0 %668, %v570
    %v670 = vpop.permute.xlu0 %669
    %v672 = vperm.slane %v571, 0
    %v673 = vmul.f32 %v575, %v672
    %v674 = vmul.f32 %v580, %v672
    %v675 = vmul.f32 %v585, %v672
    %v676 = vmul.f32 %v590, %v672
    %v677 = vmul.f32 %v595, %v672
    %v678 = vmul.f32 %v600, %v672
    %v679 = vmul.f32 %v605, %v672
    %v680 = vmul.f32 %v610, %v672
    %v681 = vmul.f32 %v615, %v672
    %v682 = vmul.f32 %v620, %v672
    %v683 = vmul.f32 %v625, %v672
    %v684 = vmul.f32 %v630, %v672
    %v685 = vmul.f32 %v635, %v672
    %v686 = vmul.f32 %v640, %v672
    %v687 = vmul.f32 %v645, %v672
    %v688 = vmul.f32 %v650, %v672
    %v689 = vmul.f32 %v655, %v672
    %v690 = vmul.f32 %v660, %v672
    %v691 = vmul.f32 %v665, %v672
    %v692 = vmul.f32 %v670, %v672
    %v693 = vadd.f32 %v531, %v673
    %v694 = vadd.f32 %v532, %v674
    %v695 = vadd.f32 %v533, %v675
    %v696 = vadd.f32 %v534, %v676
    %v697 = vadd.f32 %v535, %v677
    %v698 = vadd.f32 %v536, %v678
    %v699 = vadd.f32 %v537, %v679
    %v700 = vadd.f32 %v538, %v680
    %v701 = vadd.f32 %v539, %v681
    %v702 = vadd.f32 %v540, %v682
    %v703 = vadd.f32 %v541, %v683
    %v704 = vadd.f32 %v542, %v684
    %v705 = vadd.f32 %v543, %v685
    %v706 = vadd.f32 %v544, %v686
    %v707 = vadd.f32 %v545, %v687
    %v708 = vadd.f32 %v546, %v688
    %v709 = vadd.f32 %v547, %v689
    %v710 = vadd.f32 %v548, %v690
    %v711 = vadd.f32 %v549, %v691
    %v712 = vadd.f32 %v550, %v692
    %v713 = vld [vmem:[#allocation2 + $0x9] sm:$0xff]
    %v714 = vld [vmem:[#allocation2 + $0x11] sm:$0xff]
    %v715 = vld [vmem:[#allocation2 + $0x19] sm:$0xff]
    %v716 = vld [vmem:[#allocation2 + $0x21] sm:$0xff]
    %v717 = vld [vmem:[#allocation2 + $0x29] sm:$0xff]
    %v718 = vld [vmem:[#allocation2 + $0x31] sm:$0xff]
    %v719 = vld [vmem:[#allocation2 + $0x39] sm:$0xff]
    %v720 = vld [vmem:[#allocation2 + $0x41] sm:$0xff]
    %v721 = vld [vmem:[#allocation2 + $0x49] sm:$0xff]
    %v722 = vld [vmem:[#allocation2 + $0x51] sm:$0xff]
    %v723 = vld [vmem:[#allocation2 + $0x59] sm:$0xff]
    %v724 = vld [vmem:[#allocation2 + $0x61] sm:$0xff]
    %v725 = vld [vmem:[#allocation2 + $0x69] sm:$0xff]
    %v726 = vld [vmem:[#allocation2 + $0x71] sm:$0xff]
    %v727 = vld [vmem:[#allocation2 + $0x79] sm:$0xff]
    %v728 = vld [vmem:[#allocation2 + $0x81] sm:$0xff]
    %v729 = vld [vmem:[#allocation2 + $0x89] sm:$0xff]
    %v730 = vld [vmem:[#allocation2 + $0x91] sm:$0xff]
    %v731 = vld [vmem:[#allocation2 + $0x99] sm:$0xff]
    %v732 = vld [vmem:[#allocation2 + $0xa1] sm:$0xff]
    %v733 = vld [vmem:[#allocation6 + $0x2] sm:$0x1]
    %735 = vset.pattern.permute.xlu0 0
    %736 = vperm.xlu0 %735, %v713
    %v737 = vpop.permute.xlu0 %736
    %740 = vset.pattern.permute.xlu0 0
    %741 = vperm.xlu0 %740, %v714
    %v742 = vpop.permute.xlu0 %741
    %745 = vset.pattern.permute.xlu0 0
    %746 = vperm.xlu0 %745, %v715
    %v747 = vpop.permute.xlu0 %746
    %750 = vset.pattern.permute.xlu0 0
    %751 = vperm.xlu0 %750, %v716
    %v752 = vpop.permute.xlu0 %751
    %755 = vset.pattern.permute.xlu0 0
    %756 = vperm.xlu0 %755, %v717
    %v757 = vpop.permute.xlu0 %756
    %760 = vset.pattern.permute.xlu0 0
    %761 = vperm.xlu0 %760, %v718
    %v762 = vpop.permute.xlu0 %761
    %765 = vset.pattern.permute.xlu0 0
    %766 = vperm.xlu0 %765, %v719
    %v767 = vpop.permute.xlu0 %766
    %770 = vset.pattern.permute.xlu0 0
    %771 = vperm.xlu0 %770, %v720
    %v772 = vpop.permute.xlu0 %771
    %775 = vset.pattern.permute.xlu0 0
    %776 = vperm.xlu0 %775, %v721
    %v777 = vpop.permute.xlu0 %776
    %780 = vset.pattern.permute.xlu0 0
    %781 = vperm.xlu0 %780, %v722
    %v782 = vpop.permute.xlu0 %781
    %785 = vset.pattern.permute.xlu0 0
    %786 = vperm.xlu0 %785, %v723
    %v787 = vpop.permute.xlu0 %786
    %790 = vset.pattern.permute.xlu0 0
    %791 = vperm.xlu0 %790, %v724
    %v792 = vpop.permute.xlu0 %791
    %795 = vset.pattern.permute.xlu0 0
    %796 = vperm.xlu0 %795, %v725
    %v797 = vpop.permute.xlu0 %796
    %800 = vset.pattern.permute.xlu0 0
    %801 = vperm.xlu0 %800, %v726
    %v802 = vpop.permute.xlu0 %801
    %805 = vset.pattern.permute.xlu0 0
    %806 = vperm.xlu0 %805, %v727
    %v807 = vpop.permute.xlu0 %806
    %810 = vset.pattern.permute.xlu0 0
    %811 = vperm.xlu0 %810, %v728
    %v812 = vpop.permute.xlu0 %811
    %815 = vset.pattern.permute.xlu0 0
    %816 = vperm.xlu0 %815, %v729
    %v817 = vpop.permute.xlu0 %816
    %820 = vset.pattern.permute.xlu0 0
    %821 = vperm.xlu0 %820, %v730
    %v822 = vpop.permute.xlu0 %821
    %825 = vset.pattern.permute.xlu0 0
    %826 = vperm.xlu0 %825, %v731
    %v827 = vpop.permute.xlu0 %826
    %830 = vset.pattern.permute.xlu0 0
    %831 = vperm.xlu0 %830, %v732
    %v832 = vpop.permute.xlu0 %831
    %v834 = vperm.slane %v733, 0
    %v835 = vmul.f32 %v737, %v834
    %v836 = vmul.f32 %v742, %v834
    %v837 = vmul.f32 %v747, %v834
    %v838 = vmul.f32 %v752, %v834
    %v839 = vmul.f32 %v757, %v834
    %v840 = vmul.f32 %v762, %v834
    %v841 = vmul.f32 %v767, %v834
    %v842 = vmul.f32 %v772, %v834
    %v843 = vmul.f32 %v777, %v834
    %v844 = vmul.f32 %v782, %v834
    %v845 = vmul.f32 %v787, %v834
    %v846 = vmul.f32 %v792, %v834
    %v847 = vmul.f32 %v797, %v834
    %v848 = vmul.f32 %v802, %v834
    %v849 = vmul.f32 %v807, %v834
    %v850 = vmul.f32 %v812, %v834
    %v851 = vmul.f32 %v817, %v834
    %v852 = vmul.f32 %v822, %v834
    %v853 = vmul.f32 %v827, %v834
    %v854 = vmul.f32 %v832, %v834
    %v855 = vadd.f32 %v693, %v835
    %v856 = vadd.f32 %v694, %v836
    %v857 = vadd.f32 %v695, %v837
    %v858 = vadd.f32 %v696, %v838
    %v859 = vadd.f32 %v697, %v839
    %v860 = vadd.f32 %v698, %v840
    %v861 = vadd.f32 %v699, %v841
    %v862 = vadd.f32 %v700, %v842
    %v863 = vadd.f32 %v701, %v843
    %v864 = vadd.f32 %v702, %v844
    %v865 = vadd.f32 %v703, %v845
    %v866 = vadd.f32 %v704, %v846
    %v867 = vadd.f32 %v705, %v847
    %v868 = vadd.f32 %v706, %v848
    %v869 = vadd.f32 %v707, %v849
    %v870 = vadd.f32 %v708, %v850
    %v871 = vadd.f32 %v709, %v851
    %v872 = vadd.f32 %v710, %v852
    %v873 = vadd.f32 %v711, %v853
    %v874 = vadd.f32 %v712, %v854
    %v875 = vld [vmem:[#allocation2 + $0xf] sm:$0xff]
    %v876 = vld [vmem:[#allocation2 + $0x17] sm:$0xff]
    %v877 = vld [vmem:[#allocation2 + $0x1f] sm:$0xff]
    %v878 = vld [vmem:[#allocation2 + $0x27] sm:$0xff]
    %v879 = vld [vmem:[#allocation2 + $0x2f] sm:$0xff]
    %v880 = vld [vmem:[#allocation2 + $0x37] sm:$0xff]
    %v881 = vld [vmem:[#allocation2 + $0x3f] sm:$0xff]
    %v882 = vld [vmem:[#allocation2 + $0x47] sm:$0xff]
    %v883 = vld [vmem:[#allocation2 + $0x4f] sm:$0xff]
    %v884 = vld [vmem:[#allocation2 + $0x57] sm:$0xff]
    %v885 = vld [vmem:[#allocation2 + $0x5f] sm:$0xff]
    %v886 = vld [vmem:[#allocation2 + $0x67] sm:$0xff]
    %v887 = vld [vmem:[#allocation2 + $0x6f] sm:$0xff]
    %v888 = vld [vmem:[#allocation2 + $0x77] sm:$0xff]
    %v889 = vld [vmem:[#allocation2 + $0x7f] sm:$0xff]
    %v890 = vld [vmem:[#allocation2 + $0x87] sm:$0xff]
    %v891 = vld [vmem:[#allocation2 + $0x8f] sm:$0xff]
    %v892 = vld [vmem:[#allocation2 + $0x97] sm:$0xff]
    %v893 = vld [vmem:[#allocation2 + $0x9f] sm:$0xff]
    %v894 = vld [vmem:[#allocation2 + $0xa7] sm:$0xff]
    %v895 = vld [vmem:[#allocation6 + $0x3] sm:$0x1]
    %897 = vset.pattern.permute.xlu0 0
    %898 = vperm.xlu0 %897, %v875
    %v899 = vpop.permute.xlu0 %898
    %902 = vset.pattern.permute.xlu0 0
    %903 = vperm.xlu0 %902, %v876
    %v904 = vpop.permute.xlu0 %903
    %907 = vset.pattern.permute.xlu0 0
    %908 = vperm.xlu0 %907, %v877
    %v909 = vpop.permute.xlu0 %908
    %912 = vset.pattern.permute.xlu0 0
    %913 = vperm.xlu0 %912, %v878
    %v914 = vpop.permute.xlu0 %913
    %917 = vset.pattern.permute.xlu0 0
    %918 = vperm.xlu0 %917, %v879
    %v919 = vpop.permute.xlu0 %918
    %922 = vset.pattern.permute.xlu0 0
    %923 = vperm.xlu0 %922, %v880
    %v924 = vpop.permute.xlu0 %923
    %927 = vset.pattern.permute.xlu0 0
    %928 = vperm.xlu0 %927, %v881
    %v929 = vpop.permute.xlu0 %928
    %932 = vset.pattern.permute.xlu0 0
    %933 = vperm.xlu0 %932, %v882
    %v934 = vpop.permute.xlu0 %933
    %937 = vset.pattern.permute.xlu0 0
    %938 = vperm.xlu0 %937, %v883
    %v939 = vpop.permute.xlu0 %938
    %942 = vset.pattern.permute.xlu0 0
    %943 = vperm.xlu0 %942, %v884
    %v944 = vpop.permute.xlu0 %943
    %947 = vset.pattern.permute.xlu0 0
    %948 = vperm.xlu0 %947, %v885
    %v949 = vpop.permute.xlu0 %948
    %952 = vset.pattern.permute.xlu0 0
    %953 = vperm.xlu0 %952, %v886
    %v954 = vpop.permute.xlu0 %953
    %957 = vset.pattern.permute.xlu0 0
    %958 = vperm.xlu0 %957, %v887
    %v959 = vpop.permute.xlu0 %958
    %962 = vset.pattern.permute.xlu0 0
    %963 = vperm.xlu0 %962, %v888
    %v964 = vpop.permute.xlu0 %963
    %967 = vset.pattern.permute.xlu0 0
    %968 = vperm.xlu0 %967, %v889
    %v969 = vpop.permute.xlu0 %968
    %972 = vset.pattern.permute.xlu0 0
    %973 = vperm.xlu0 %972, %v890
    %v974 = vpop.permute.xlu0 %973
    %977 = vset.pattern.permute.xlu0 0
    %978 = vperm.xlu0 %977, %v891
    %v979 = vpop.permute.xlu0 %978
    %982 = vset.pattern.permute.xlu0 0
    %983 = vperm.xlu0 %982, %v892
    %v984 = vpop.permute.xlu0 %983
    %987 = vset.pattern.permute.xlu0 0
    %988 = vperm.xlu0 %987, %v893
    %v989 = vpop.permute.xlu0 %988
    %992 = vset.pattern.permute.xlu0 0
    %993 = vperm.xlu0 %992, %v894
    %v994 = vpop.permute.xlu0 %993
    %v996 = vperm.slane %v895, 0
    %v997 = vmul.f32 %v899, %v996
    %v998 = vmul.f32 %v904, %v996
    %v999 = vmul.f32 %v909, %v996
    %v1000 = vmul.f32 %v914, %v996
    %v1001 = vmul.f32 %v919, %v996
    %v1002 = vmul.f32 %v924, %v996
    %v1003 = vmul.f32 %v929, %v996
    %v1004 = vmul.f32 %v934, %v996
    %v1005 = vmul.f32 %v939, %v996
    %v1006 = vmul.f32 %v944, %v996
    %v1007 = vmul.f32 %v949, %v996
    %v1008 = vmul.f32 %v954, %v996
    %v1009 = vmul.f32 %v959, %v996
    %v1010 = vmul.f32 %v964, %v996
    %v1011 = vmul.f32 %v969, %v996
    %v1012 = vmul.f32 %v974, %v996
    %v1013 = vmul.f32 %v979, %v996
    %v1014 = vmul.f32 %v984, %v996
    %v1015 = vmul.f32 %v989, %v996
    %v1016 = vmul.f32 %v994, %v996
    %v1017 = vadd.f32 %v855, %v997
    %v1018 = vadd.f32 %v856, %v998
    %v1019 = vadd.f32 %v857, %v999
    %v1020 = vadd.f32 %v858, %v1000
    %v1021 = vadd.f32 %v859, %v1001
    %v1022 = vadd.f32 %v860, %v1002
    %v1023 = vadd.f32 %v861, %v1003
    %v1024 = vadd.f32 %v862, %v1004
    %v1025 = vadd.f32 %v863, %v1005
    %v1026 = vadd.f32 %v864, %v1006
    %v1027 = vadd.f32 %v865, %v1007
    %v1028 = vadd.f32 %v866, %v1008
    %v1029 = vadd.f32 %v867, %v1009
    %v1030 = vadd.f32 %v868, %v1010
    %v1031 = vadd.f32 %v869, %v1011
    %v1032 = vadd.f32 %v870, %v1012
    %v1033 = vadd.f32 %v871, %v1013
    %v1034 = vadd.f32 %v872, %v1014
    %v1035 = vadd.f32 %v873, %v1015
    %v1036 = vadd.f32 %v874, %v1016
    %v1037 = vld [vmem:[#allocation2 + $0x10] sm:$0xff]
    %v1038 = vld [vmem:[#allocation2 + $0x18] sm:$0xff]
    %v1039 = vld [vmem:[#allocation2 + $0x20] sm:$0xff]
    %v1040 = vld [vmem:[#allocation2 + $0x28] sm:$0xff]
    %v1041 = vld [vmem:[#allocation2 + $0x30] sm:$0xff]
    %v1042 = vld [vmem:[#allocation2 + $0x38] sm:$0xff]
    %v1043 = vld [vmem:[#allocation2 + $0x40] sm:$0xff]
    %v1044 = vld [vmem:[#allocation2 + $0x48] sm:$0xff]
    %v1045 = vld [vmem:[#allocation2 + $0x50] sm:$0xff]
    %v1046 = vld [vmem:[#allocation2 + $0x58] sm:$0xff]
    %v1047 = vld [vmem:[#allocation2 + $0x60] sm:$0xff]
    %v1048 = vld [vmem:[#allocation2 + $0x68] sm:$0xff]
    %v1049 = vld [vmem:[#allocation2 + $0x70] sm:$0xff]
    %v1050 = vld [vmem:[#allocation2 + $0x78] sm:$0xff]
    %v1051 = vld [vmem:[#allocation2 + $0x80] sm:$0xff]
    %v1052 = vld [vmem:[#allocation2 + $0x88] sm:$0xff]
    %v1053 = vld [vmem:[#allocation2 + $0x90] sm:$0xff]
    %v1054 = vld [vmem:[#allocation2 + $0x98] sm:$0xff]
    %v1055 = vld [vmem:[#allocation2 + $0xa0] sm:$0xff]
    %v1056 = vld [vmem:[#allocation2 + $0xa8] sm:$0xff]
    %v1057 = vld [vmem:[#allocation6 + $0x4] sm:$0x1]
    %1059 = vset.pattern.permute.xlu0 0
    %1060 = vperm.xlu0 %1059, %v1037
    %v1061 = vpop.permute.xlu0 %1060
    %1064 = vset.pattern.permute.xlu0 0
    %1065 = vperm.xlu0 %1064, %v1038
    %v1066 = vpop.permute.xlu0 %1065
    %1069 = vset.pattern.permute.xlu0 0
    %1070 = vperm.xlu0 %1069, %v1039
    %v1071 = vpop.permute.xlu0 %1070
    %1074 = vset.pattern.permute.xlu0 0
    %1075 = vperm.xlu0 %1074, %v1040
    %v1076 = vpop.permute.xlu0 %1075
    %1079 = vset.pattern.permute.xlu0 0
    %1080 = vperm.xlu0 %1079, %v1041
    %v1081 = vpop.permute.xlu0 %1080
    %1084 = vset.pattern.permute.xlu0 0
    %1085 = vperm.xlu0 %1084, %v1042
    %v1086 = vpop.permute.xlu0 %1085
    %1089 = vset.pattern.permute.xlu0 0
    %1090 = vperm.xlu0 %1089, %v1043
    %v1091 = vpop.permute.xlu0 %1090
    %1094 = vset.pattern.permute.xlu0 0
    %1095 = vperm.xlu0 %1094, %v1044
    %v1096 = vpop.permute.xlu0 %1095
    %1099 = vset.pattern.permute.xlu0 0
    %1100 = vperm.xlu0 %1099, %v1045
    %v1101 = vpop.permute.xlu0 %1100
    %1104 = vset.pattern.permute.xlu0 0
    %1105 = vperm.xlu0 %1104, %v1046
    %v1106 = vpop.permute.xlu0 %1105
    %1109 = vset.pattern.permute.xlu0 0
    %1110 = vperm.xlu0 %1109, %v1047
    %v1111 = vpop.permute.xlu0 %1110
    %1114 = vset.pattern.permute.xlu0 0
    %1115 = vperm.xlu0 %1114, %v1048
    %v1116 = vpop.permute.xlu0 %1115
    %1119 = vset.pattern.permute.xlu0 0
    %1120 = vperm.xlu0 %1119, %v1049
    %v1121 = vpop.permute.xlu0 %1120
    %1124 = vset.pattern.permute.xlu0 0
    %1125 = vperm.xlu0 %1124, %v1050
    %v1126 = vpop.permute.xlu0 %1125
    %1129 = vset.pattern.permute.xlu0 0
    %1130 = vperm.xlu0 %1129, %v1051
    %v1131 = vpop.permute.xlu0 %1130
    %1134 = vset.pattern.permute.xlu0 0
    %1135 = vperm.xlu0 %1134, %v1052
    %v1136 = vpop.permute.xlu0 %1135
    %1139 = vset.pattern.permute.xlu0 0
    %1140 = vperm.xlu0 %1139, %v1053
    %v1141 = vpop.permute.xlu0 %1140
    %1144 = vset.pattern.permute.xlu0 0
    %1145 = vperm.xlu0 %1144, %v1054
    %v1146 = vpop.permute.xlu0 %1145
    %1149 = vset.pattern.permute.xlu0 0
    %1150 = vperm.xlu0 %1149, %v1055
    %v1151 = vpop.permute.xlu0 %1150
    %1154 = vset.pattern.permute.xlu0 0
    %1155 = vperm.xlu0 %1154, %v1056
    %v1156 = vpop.permute.xlu0 %1155
    %v1158 = vperm.slane %v1057, 0
    %v1159 = vmul.f32 %v1061, %v1158
    %v1160 = vmul.f32 %v1066, %v1158
    %v1161 = vmul.f32 %v1071, %v1158
    %v1162 = vmul.f32 %v1076, %v1158
    %v1163 = vmul.f32 %v1081, %v1158
    %v1164 = vmul.f32 %v1086, %v1158
    %v1165 = vmul.f32 %v1091, %v1158
    %v1166 = vmul.f32 %v1096, %v1158
    %v1167 = vmul.f32 %v1101, %v1158
    %v1168 = vmul.f32 %v1106, %v1158
    %v1169 = vmul.f32 %v1111, %v1158
    %v1170 = vmul.f32 %v1116, %v1158
    %v1171 = vmul.f32 %v1121, %v1158
    %v1172 = vmul.f32 %v1126, %v1158
    %v1173 = vmul.f32 %v1131, %v1158
    %v1174 = vmul.f32 %v1136, %v1158
    %v1175 = vmul.f32 %v1141, %v1158
    %v1176 = vmul.f32 %v1146, %v1158
    %v1177 = vmul.f32 %v1151, %v1158
    %v1178 = vmul.f32 %v1156, %v1158
    %v1179 = vadd.f32 %v1017, %v1159
    %v1180 = vadd.f32 %v1018, %v1160
    %v1181 = vadd.f32 %v1019, %v1161
    %v1182 = vadd.f32 %v1020, %v1162
    %v1183 = vadd.f32 %v1021, %v1163
    %v1184 = vadd.f32 %v1022, %v1164
    %v1185 = vadd.f32 %v1023, %v1165
    %v1186 = vadd.f32 %v1024, %v1166
    %v1187 = vadd.f32 %v1025, %v1167
    %v1188 = vadd.f32 %v1026, %v1168
    %v1189 = vadd.f32 %v1027, %v1169
    %v1190 = vadd.f32 %v1028, %v1170
    %v1191 = vadd.f32 %v1029, %v1171
    %v1192 = vadd.f32 %v1030, %v1172
    %v1193 = vadd.f32 %v1031, %v1173
    %v1194 = vadd.f32 %v1032, %v1174
    %v1195 = vadd.f32 %v1033, %v1175
    %v1196 = vadd.f32 %v1034, %v1176
    %v1197 = vadd.f32 %v1035, %v1177
    %v1198 = vadd.f32 %v1036, %v1178
    %v1199 = vld [vmem:[#allocation2 + $0x11] sm:$0xff]
    %v1200 = vld [vmem:[#allocation2 + $0x19] sm:$0xff]
    %v1201 = vld [vmem:[#allocation2 + $0x21] sm:$0xff]
    %v1202 = vld [vmem:[#allocation2 + $0x29] sm:$0xff]
    %v1203 = vld [vmem:[#allocation2 + $0x31] sm:$0xff]
    %v1204 = vld [vmem:[#allocation2 + $0x39] sm:$0xff]
    %v1205 = vld [vmem:[#allocation2 + $0x41] sm:$0xff]
    %v1206 = vld [vmem:[#allocation2 + $0x49] sm:$0xff]
    %v1207 = vld [vmem:[#allocation2 + $0x51] sm:$0xff]
    %v1208 = vld [vmem:[#allocation2 + $0x59] sm:$0xff]
    %v1209 = vld [vmem:[#allocation2 + $0x61] sm:$0xff]
    %v1210 = vld [vmem:[#allocation2 + $0x69] sm:$0xff]
    %v1211 = vld [vmem:[#allocation2 + $0x71] sm:$0xff]
    %v1212 = vld [vmem:[#allocation2 + $0x79] sm:$0xff]
    %v1213 = vld [vmem:[#allocation2 + $0x81] sm:$0xff]
    %v1214 = vld [vmem:[#allocation2 + $0x89] sm:$0xff]
    %v1215 = vld [vmem:[#allocation2 + $0x91] sm:$0xff]
    %v1216 = vld [vmem:[#allocation2 + $0x99] sm:$0xff]
    %v1217 = vld [vmem:[#allocation2 + $0xa1] sm:$0xff]
    %v1218 = vld [vmem:[#allocation2 + $0xa9] sm:$0xff]
    %v1219 = vld [vmem:[#allocation6 + $0x5] sm:$0x1]
    %1221 = vset.pattern.permute.xlu0 0
    %1222 = vperm.xlu0 %1221, %v1199
    %v1223 = vpop.permute.xlu0 %1222
    %1226 = vset.pattern.permute.xlu0 0
    %1227 = vperm.xlu0 %1226, %v1200
    %v1228 = vpop.permute.xlu0 %1227
    %1231 = vset.pattern.permute.xlu0 0
    %1232 = vperm.xlu0 %1231, %v1201
    %v1233 = vpop.permute.xlu0 %1232
    %1236 = vset.pattern.permute.xlu0 0
    %1237 = vperm.xlu0 %1236, %v1202
    %v1238 = vpop.permute.xlu0 %1237
    %1241 = vset.pattern.permute.xlu0 0
    %1242 = vperm.xlu0 %1241, %v1203
    %v1243 = vpop.permute.xlu0 %1242
    %1246 = vset.pattern.permute.xlu0 0
    %1247 = vperm.xlu0 %1246, %v1204
    %v1248 = vpop.permute.xlu0 %1247
    %1251 = vset.pattern.permute.xlu0 0
    %1252 = vperm.xlu0 %1251, %v1205
    %v1253 = vpop.permute.xlu0 %1252
    %1256 = vset.pattern.permute.xlu0 0
    %1257 = vperm.xlu0 %1256, %v1206
    %v1258 = vpop.permute.xlu0 %1257
    %1261 = vset.pattern.permute.xlu0 0
    %1262 = vperm.xlu0 %1261, %v1207
    %v1263 = vpop.permute.xlu0 %1262
    %1266 = vset.pattern.permute.xlu0 0
    %1267 = vperm.xlu0 %1266, %v1208
    %v1268 = vpop.permute.xlu0 %1267
    %1271 = vset.pattern.permute.xlu0 0
    %1272 = vperm.xlu0 %1271, %v1209
    %v1273 = vpop.permute.xlu0 %1272
    %1276 = vset.pattern.permute.xlu0 0
    %1277 = vperm.xlu0 %1276, %v1210
    %v1278 = vpop.permute.xlu0 %1277
    %1281 = vset.pattern.permute.xlu0 0
    %1282 = vperm.xlu0 %1281, %v1211
    %v1283 = vpop.permute.xlu0 %1282
    %1286 = vset.pattern.permute.xlu0 0
    %1287 = vperm.xlu0 %1286, %v1212
    %v1288 = vpop.permute.xlu0 %1287
    %1291 = vset.pattern.permute.xlu0 0
    %1292 = vperm.xlu0 %1291, %v1213
    %v1293 = vpop.permute.xlu0 %1292
    %1296 = vset.pattern.permute.xlu0 0
    %1297 = vperm.xlu0 %1296, %v1214
    %v1298 = vpop.permute.xlu0 %1297
    %1301 = vset.pattern.permute.xlu0 0
    %1302 = vperm.xlu0 %1301, %v1215
    %v1303 = vpop.permute.xlu0 %1302
    %1306 = vset.pattern.permute.xlu0 0
    %1307 = vperm.xlu0 %1306, %v1216
    %v1308 = vpop.permute.xlu0 %1307
    %1311 = vset.pattern.permute.xlu0 0
    %1312 = vperm.xlu0 %1311, %v1217
    %v1313 = vpop.permute.xlu0 %1312
    %1316 = vset.pattern.permute.xlu0 0
    %1317 = vperm.xlu0 %1316, %v1218
    %v1318 = vpop.permute.xlu0 %1317
    %v1320 = vperm.slane %v1219, 0
    %v1321 = vmul.f32 %v1223, %v1320
    %v1322 = vmul.f32 %v1228, %v1320
    %v1323 = vmul.f32 %v1233, %v1320
    %v1324 = vmul.f32 %v1238, %v1320
    %v1325 = vmul.f32 %v1243, %v1320
    %v1326 = vmul.f32 %v1248, %v1320
    %v1327 = vmul.f32 %v1253, %v1320
    %v1328 = vmul.f32 %v1258, %v1320
    %v1329 = vmul.f32 %v1263, %v1320
    %v1330 = vmul.f32 %v1268, %v1320
    %v1331 = vmul.f32 %v1273, %v1320
    %v1332 = vmul.f32 %v1278, %v1320
    %v1333 = vmul.f32 %v1283, %v1320
    %v1334 = vmul.f32 %v1288, %v1320
    %v1335 = vmul.f32 %v1293, %v1320
    %v1336 = vmul.f32 %v1298, %v1320
    %v1337 = vmul.f32 %v1303, %v1320
    %v1338 = vmul.f32 %v1308, %v1320
    %v1339 = vmul.f32 %v1313, %v1320
    %v1340 = vmul.f32 %v1318, %v1320
    %v1341 = vadd.f32 %v1179, %v1321
    %v1342 = vadd.f32 %v1180, %v1322
    %v1343 = vadd.f32 %v1181, %v1323
    %v1344 = vadd.f32 %v1182, %v1324
    %v1345 = vadd.f32 %v1183, %v1325
    %v1346 = vadd.f32 %v1184, %v1326
    %v1347 = vadd.f32 %v1185, %v1327
    %v1348 = vadd.f32 %v1186, %v1328
    %v1349 = vadd.f32 %v1187, %v1329
    %v1350 = vadd.f32 %v1188, %v1330
    %v1351 = vadd.f32 %v1189, %v1331
    %v1352 = vadd.f32 %v1190, %v1332
    %v1353 = vadd.f32 %v1191, %v1333
    %v1354 = vadd.f32 %v1192, %v1334
    %v1355 = vadd.f32 %v1193, %v1335
    %v1356 = vadd.f32 %v1194, %v1336
    %v1357 = vadd.f32 %v1195, %v1337
    %v1358 = vadd.f32 %v1196, %v1338
    %v1359 = vadd.f32 %v1197, %v1339
    %v1360 = vadd.f32 %v1198, %v1340
    %v1361 = vld [vmem:[#allocation2 + $0x17] sm:$0xff]
    %v1362 = vld [vmem:[#allocation2 + $0x1f] sm:$0xff]
    %v1363 = vld [vmem:[#allocation2 + $0x27] sm:$0xff]
    %v1364 = vld [vmem:[#allocation2 + $0x2f] sm:$0xff]
    %v1365 = vld [vmem:[#allocation2 + $0x37] sm:$0xff]
    %v1366 = vld [vmem:[#allocation2 + $0x3f] sm:$0xff]
    %v1367 = vld [vmem:[#allocation2 + $0x47] sm:$0xff]
    %v1368 = vld [vmem:[#allocation2 + $0x4f] sm:$0xff]
    %v1369 = vld [vmem:[#allocation2 + $0x57] sm:$0xff]
    %v1370 = vld [vmem:[#allocation2 + $0x5f] sm:$0xff]
    %v1371 = vld [vmem:[#allocation2 + $0x67] sm:$0xff]
    %v1372 = vld [vmem:[#allocation2 + $0x6f] sm:$0xff]
    %v1373 = vld [vmem:[#allocation2 + $0x77] sm:$0xff]
    %v1374 = vld [vmem:[#allocation2 + $0x7f] sm:$0xff]
    %v1375 = vld [vmem:[#allocation2 + $0x87] sm:$0xff]
    %v1376 = vld [vmem:[#allocation2 + $0x8f] sm:$0xff]
    %v1377 = vld [vmem:[#allocation2 + $0x97] sm:$0xff]
    %v1378 = vld [vmem:[#allocation2 + $0x9f] sm:$0xff]
    %v1379 = vld [vmem:[#allocation2 + $0xa7] sm:$0xff]
    %v1380 = vld [vmem:[#allocation2 + $0xaf] sm:$0xff]
    %v1381 = vld [vmem:[#allocation6 + $0x6] sm:$0x1]
    %1383 = vset.pattern.permute.xlu0 0
    %1384 = vperm.xlu0 %1383, %v1361
    %v1385 = vpop.permute.xlu0 %1384
    %1388 = vset.pattern.permute.xlu0 0
    %1389 = vperm.xlu0 %1388, %v1362
    %v1390 = vpop.permute.xlu0 %1389
    %1393 = vset.pattern.permute.xlu0 0
    %1394 = vperm.xlu0 %1393, %v1363
    %v1395 = vpop.permute.xlu0 %1394
    %1398 = vset.pattern.permute.xlu0 0
    %1399 = vperm.xlu0 %1398, %v1364
    %v1400 = vpop.permute.xlu0 %1399
    %1403 = vset.pattern.permute.xlu0 0
    %1404 = vperm.xlu0 %1403, %v1365
    %v1405 = vpop.permute.xlu0 %1404
    %1408 = vset.pattern.permute.xlu0 0
    %1409 = vperm.xlu0 %1408, %v1366
    %v1410 = vpop.permute.xlu0 %1409
    %1413 = vset.pattern.permute.xlu0 0
    %1414 = vperm.xlu0 %1413, %v1367
    %v1415 = vpop.permute.xlu0 %1414
    %1418 = vset.pattern.permute.xlu0 0
    %1419 = vperm.xlu0 %1418, %v1368
    %v1420 = vpop.permute.xlu0 %1419
    %1423 = vset.pattern.permute.xlu0 0
    %1424 = vperm.xlu0 %1423, %v1369
    %v1425 = vpop.permute.xlu0 %1424
    %1428 = vset.pattern.permute.xlu0 0
    %1429 = vperm.xlu0 %1428, %v1370
    %v1430 = vpop.permute.xlu0 %1429
    %1433 = vset.pattern.permute.xlu0 0
    %1434 = vperm.xlu0 %1433, %v1371
    %v1435 = vpop.permute.xlu0 %1434
    %1438 = vset.pattern.permute.xlu0 0
    %1439 = vperm.xlu0 %1438, %v1372
    %v1440 = vpop.permute.xlu0 %1439
    %1443 = vset.pattern.permute.xlu0 0
    %1444 = vperm.xlu0 %1443, %v1373
    %v1445 = vpop.permute.xlu0 %1444
    %1448 = vset.pattern.permute.xlu0 0
    %1449 = vperm.xlu0 %1448, %v1374
    %v1450 = vpop.permute.xlu0 %1449
    %1453 = vset.pattern.permute.xlu0 0
    %1454 = vperm.xlu0 %1453, %v1375
    %v1455 = vpop.permute.xlu0 %1454
    %1458 = vset.pattern.permute.xlu0 0
    %1459 = vperm.xlu0 %1458, %v1376
    %v1460 = vpop.permute.xlu0 %1459
    %1463 = vset.pattern.permute.xlu0 0
    %1464 = vperm.xlu0 %1463, %v1377
    %v1465 = vpop.permute.xlu0 %1464
    %1468 = vset.pattern.permute.xlu0 0
    %1469 = vperm.xlu0 %1468, %v1378
    %v1470 = vpop.permute.xlu0 %1469
    %1473 = vset.pattern.permute.xlu0 0
    %1474 = vperm.xlu0 %1473, %v1379
    %v1475 = vpop.permute.xlu0 %1474
    %1478 = vset.pattern.permute.xlu0 0
    %1479 = vperm.xlu0 %1478, %v1380
    %v1480 = vpop.permute.xlu0 %1479
    %v1482 = vperm.slane %v1381, 0
    %v1483 = vmul.f32 %v1385, %v1482
    %v1484 = vmul.f32 %v1390, %v1482
    %v1485 = vmul.f32 %v1395, %v1482
    %v1486 = vmul.f32 %v1400, %v1482
    %v1487 = vmul.f32 %v1405, %v1482
    %v1488 = vmul.f32 %v1410, %v1482
    %v1489 = vmul.f32 %v1415, %v1482
    %v1490 = vmul.f32 %v1420, %v1482
    %v1491 = vmul.f32 %v1425, %v1482
    %v1492 = vmul.f32 %v1430, %v1482
    %v1493 = vmul.f32 %v1435, %v1482
    %v1494 = vmul.f32 %v1440, %v1482
    %v1495 = vmul.f32 %v1445, %v1482
    %v1496 = vmul.f32 %v1450, %v1482
    %v1497 = vmul.f32 %v1455, %v1482
    %v1498 = vmul.f32 %v1460, %v1482
    %v1499 = vmul.f32 %v1465, %v1482
    %v1500 = vmul.f32 %v1470, %v1482
    %v1501 = vmul.f32 %v1475, %v1482
    %v1502 = vmul.f32 %v1480, %v1482
    %v1503 = vadd.f32 %v1341, %v1483
    %v1504 = vadd.f32 %v1342, %v1484
    %v1505 = vadd.f32 %v1343, %v1485
    %v1506 = vadd.f32 %v1344, %v1486
    %v1507 = vadd.f32 %v1345, %v1487
    %v1508 = vadd.f32 %v1346, %v1488
    %v1509 = vadd.f32 %v1347, %v1489
    %v1510 = vadd.f32 %v1348, %v1490
    %v1511 = vadd.f32 %v1349, %v1491
    %v1512 = vadd.f32 %v1350, %v1492
    %v1513 = vadd.f32 %v1351, %v1493
    %v1514 = vadd.f32 %v1352, %v1494
    %v1515 = vadd.f32 %v1353, %v1495
    %v1516 = vadd.f32 %v1354, %v1496
    %v1517 = vadd.f32 %v1355, %v1497
    %v1518 = vadd.f32 %v1356, %v1498
    %v1519 = vadd.f32 %v1357, %v1499
    %v1520 = vadd.f32 %v1358, %v1500
    %v1521 = vadd.f32 %v1359, %v1501
    %v1522 = vadd.f32 %v1360, %v1502
    %v1523 = vld [vmem:[#allocation2 + $0x18] sm:$0xff]
    %v1524 = vld [vmem:[#allocation2 + $0x20] sm:$0xff]
    %v1525 = vld [vmem:[#allocation2 + $0x28] sm:$0xff]
    %v1526 = vld [vmem:[#allocation2 + $0x30] sm:$0xff]
    %v1527 = vld [vmem:[#allocation2 + $0x38] sm:$0xff]
    %v1528 = vld [vmem:[#allocation2 + $0x40] sm:$0xff]
    %v1529 = vld [vmem:[#allocation2 + $0x48] sm:$0xff]
    %v1530 = vld [vmem:[#allocation2 + $0x50] sm:$0xff]
    %v1531 = vld [vmem:[#allocation2 + $0x58] sm:$0xff]
    %v1532 = vld [vmem:[#allocation2 + $0x60] sm:$0xff]
    %v1533 = vld [vmem:[#allocation2 + $0x68] sm:$0xff]
    %v1534 = vld [vmem:[#allocation2 + $0x70] sm:$0xff]
    %v1535 = vld [vmem:[#allocation2 + $0x78] sm:$0xff]
    %v1536 = vld [vmem:[#allocation2 + $0x80] sm:$0xff]
    %v1537 = vld [vmem:[#allocation2 + $0x88] sm:$0xff]
    %v1538 = vld [vmem:[#allocation2 + $0x90] sm:$0xff]
    %v1539 = vld [vmem:[#allocation2 + $0x98] sm:$0xff]
    %v1540 = vld [vmem:[#allocation2 + $0xa0] sm:$0xff]
    %v1541 = vld [vmem:[#allocation2 + $0xa8] sm:$0xff]
    %v1542 = vld [vmem:[#allocation2 + $0xb0] sm:$0xff]
    %v1543 = vld [vmem:[#allocation6 + $0x7] sm:$0x1]
    %1545 = vset.pattern.permute.xlu0 0
    %1546 = vperm.xlu0 %1545, %v1523
    %v1547 = vpop.permute.xlu0 %1546
    %1550 = vset.pattern.permute.xlu0 0
    %1551 = vperm.xlu0 %1550, %v1524
    %v1552 = vpop.permute.xlu0 %1551
    %1555 = vset.pattern.permute.xlu0 0
    %1556 = vperm.xlu0 %1555, %v1525
    %v1557 = vpop.permute.xlu0 %1556
    %1560 = vset.pattern.permute.xlu0 0
    %1561 = vperm.xlu0 %1560, %v1526
    %v1562 = vpop.permute.xlu0 %1561
    %1565 = vset.pattern.permute.xlu0 0
    %1566 = vperm.xlu0 %1565, %v1527
    %v1567 = vpop.permute.xlu0 %1566
    %1570 = vset.pattern.permute.xlu0 0
    %1571 = vperm.xlu0 %1570, %v1528
    %v1572 = vpop.permute.xlu0 %1571
    %1575 = vset.pattern.permute.xlu0 0
    %1576 = vperm.xlu0 %1575, %v1529
    %v1577 = vpop.permute.xlu0 %1576
    %1580 = vset.pattern.permute.xlu0 0
    %1581 = vperm.xlu0 %1580, %v1530
    %v1582 = vpop.permute.xlu0 %1581
    %1585 = vset.pattern.permute.xlu0 0
    %1586 = vperm.xlu0 %1585, %v1531
    %v1587 = vpop.permute.xlu0 %1586
    %1590 = vset.pattern.permute.xlu0 0
    %1591 = vperm.xlu0 %1590, %v1532
    %v1592 = vpop.permute.xlu0 %1591
    %1595 = vset.pattern.permute.xlu0 0
    %1596 = vperm.xlu0 %1595, %v1533
    %v1597 = vpop.permute.xlu0 %1596
    %1600 = vset.pattern.permute.xlu0 0
    %1601 = vperm.xlu0 %1600, %v1534
    %v1602 = vpop.permute.xlu0 %1601
    %1605 = vset.pattern.permute.xlu0 0
    %1606 = vperm.xlu0 %1605, %v1535
    %v1607 = vpop.permute.xlu0 %1606
    %1610 = vset.pattern.permute.xlu0 0
    %1611 = vperm.xlu0 %1610, %v1536
    %v1612 = vpop.permute.xlu0 %1611
    %1615 = vset.pattern.permute.xlu0 0
    %1616 = vperm.xlu0 %1615, %v1537
    %v1617 = vpop.permute.xlu0 %1616
    %1620 = vset.pattern.permute.xlu0 0
    %1621 = vperm.xlu0 %1620, %v1538
    %v1622 = vpop.permute.xlu0 %1621
    %1625 = vset.pattern.permute.xlu0 0
    %1626 = vperm.xlu0 %1625, %v1539
    %v1627 = vpop.permute.xlu0 %1626
    %1630 = vset.pattern.permute.xlu0 0
    %1631 = vperm.xlu0 %1630, %v1540
    %v1632 = vpop.permute.xlu0 %1631
    %1635 = vset.pattern.permute.xlu0 0
    %1636 = vperm.xlu0 %1635, %v1541
    %v1637 = vpop.permute.xlu0 %1636
    %1640 = vset.pattern.permute.xlu0 0
    %1641 = vperm.xlu0 %1640, %v1542
    %v1642 = vpop.permute.xlu0 %1641
    %v1644 = vperm.slane %v1543, 0
    %v1645 = vmul.f32 %v1547, %v1644
    %v1646 = vmul.f32 %v1552, %v1644
    %v1647 = vmul.f32 %v1557, %v1644
    %v1648 = vmul.f32 %v1562, %v1644
    %v1649 = vmul.f32 %v1567, %v1644
    %v1650 = vmul.f32 %v1572, %v1644
    %v1651 = vmul.f32 %v1577, %v1644
    %v1652 = vmul.f32 %v1582, %v1644
    %v1653 = vmul.f32 %v1587, %v1644
    %v1654 = vmul.f32 %v1592, %v1644
    %v1655 = vmul.f32 %v1597, %v1644
    %v1656 = vmul.f32 %v1602, %v1644
    %v1657 = vmul.f32 %v1607, %v1644
    %v1658 = vmul.f32 %v1612, %v1644
    %v1659 = vmul.f32 %v1617, %v1644
    %v1660 = vmul.f32 %v1622, %v1644
    %v1661 = vmul.f32 %v1627, %v1644
    %v1662 = vmul.f32 %v1632, %v1644
    %v1663 = vmul.f32 %v1637, %v1644
    %v1664 = vmul.f32 %v1642, %v1644
    %v1665 = vadd.f32 %v1503, %v1645
    %v1666 = vadd.f32 %v1504, %v1646
    %v1667 = vadd.f32 %v1505, %v1647
    %v1668 = vadd.f32 %v1506, %v1648
    %v1669 = vadd.f32 %v1507, %v1649
    %v1670 = vadd.f32 %v1508, %v1650
    %v1671 = vadd.f32 %v1509, %v1651
    %v1672 = vadd.f32 %v1510, %v1652
    %v1673 = vadd.f32 %v1511, %v1653
    %v1674 = vadd.f32 %v1512, %v1654
    %v1675 = vadd.f32 %v1513, %v1655
    %v1676 = vadd.f32 %v1514, %v1656
    %v1677 = vadd.f32 %v1515, %v1657
    %v1678 = vadd.f32 %v1516, %v1658
    %v1679 = vadd.f32 %v1517, %v1659
    %v1680 = vadd.f32 %v1518, %v1660
    %v1681 = vadd.f32 %v1519, %v1661
    %v1682 = vadd.f32 %v1520, %v1662
    %v1683 = vadd.f32 %v1521, %v1663
    %v1684 = vadd.f32 %v1522, %v1664
    %v1685 = vld [vmem:[#allocation2 + $0x19] sm:$0xff]
    %v1686 = vld [vmem:[#allocation2 + $0x21] sm:$0xff]
    %v1687 = vld [vmem:[#allocation2 + $0x29] sm:$0xff]
    %v1688 = vld [vmem:[#allocation2 + $0x31] sm:$0xff]
    %v1689 = vld [vmem:[#allocation2 + $0x39] sm:$0xff]
    %v1690 = vld [vmem:[#allocation2 + $0x41] sm:$0xff]
    %v1691 = vld [vmem:[#allocation2 + $0x49] sm:$0xff]
    %v1692 = vld [vmem:[#allocation2 + $0x51] sm:$0xff]
    %v1693 = vld [vmem:[#allocation2 + $0x59] sm:$0xff]
    %v1694 = vld [vmem:[#allocation2 + $0x61] sm:$0xff]
    %v1695 = vld [vmem:[#allocation2 + $0x69] sm:$0xff]
    %v1696 = vld [vmem:[#allocation2 + $0x71] sm:$0xff]
    %v1697 = vld [vmem:[#allocation2 + $0x79] sm:$0xff]
    %v1698 = vld [vmem:[#allocation2 + $0x81] sm:$0xff]
    %v1699 = vld [vmem:[#allocation2 + $0x89] sm:$0xff]
    %v1700 = vld [vmem:[#allocation2 + $0x91] sm:$0xff]
    %v1701 = vld [vmem:[#allocation2 + $0x99] sm:$0xff]
    %v1702 = vld [vmem:[#allocation2 + $0xa1] sm:$0xff]
    %v1703 = vld [vmem:[#allocation2 + $0xa9] sm:$0xff]
    %v1704 = vld [vmem:[#allocation2 + $0xb1] sm:$0xff]
    %v1705 = vld [vmem:[#allocation6 + $0x8] sm:$0x1]
    %1707 = vset.pattern.permute.xlu0 0
    %1708 = vperm.xlu0 %1707, %v1685
    %v1709 = vpop.permute.xlu0 %1708
    %1712 = vset.pattern.permute.xlu0 0
    %1713 = vperm.xlu0 %1712, %v1686
    %v1714 = vpop.permute.xlu0 %1713
    %1717 = vset.pattern.permute.xlu0 0
    %1718 = vperm.xlu0 %1717, %v1687
    %v1719 = vpop.permute.xlu0 %1718
    %1722 = vset.pattern.permute.xlu0 0
    %1723 = vperm.xlu0 %1722, %v1688
    %v1724 = vpop.permute.xlu0 %1723
    %1727 = vset.pattern.permute.xlu0 0
    %1728 = vperm.xlu0 %1727, %v1689
    %v1729 = vpop.permute.xlu0 %1728
    %1732 = vset.pattern.permute.xlu0 0
    %1733 = vperm.xlu0 %1732, %v1690
    %v1734 = vpop.permute.xlu0 %1733
    %1737 = vset.pattern.permute.xlu0 0
    %1738 = vperm.xlu0 %1737, %v1691
    %v1739 = vpop.permute.xlu0 %1738
    %1742 = vset.pattern.permute.xlu0 0
    %1743 = vperm.xlu0 %1742, %v1692
    %v1744 = vpop.permute.xlu0 %1743
    %1747 = vset.pattern.permute.xlu0 0
    %1748 = vperm.xlu0 %1747, %v1693
    %v1749 = vpop.permute.xlu0 %1748
    %1752 = vset.pattern.permute.xlu0 0
    %1753 = vperm.xlu0 %1752, %v1694
    %v1754 = vpop.permute.xlu0 %1753
    %1757 = vset.pattern.permute.xlu0 0
    %1758 = vperm.xlu0 %1757, %v1695
    %v1759 = vpop.permute.xlu0 %1758
    %1762 = vset.pattern.permute.xlu0 0
    %1763 = vperm.xlu0 %1762, %v1696
    %v1764 = vpop.permute.xlu0 %1763
    %1767 = vset.pattern.permute.xlu0 0
    %1768 = vperm.xlu0 %1767, %v1697
    %v1769 = vpop.permute.xlu0 %1768
    %1772 = vset.pattern.permute.xlu0 0
    %1773 = vperm.xlu0 %1772, %v1698
    %v1774 = vpop.permute.xlu0 %1773
    %1777 = vset.pattern.permute.xlu0 0
    %1778 = vperm.xlu0 %1777, %v1699
    %v1779 = vpop.permute.xlu0 %1778
    %1782 = vset.pattern.permute.xlu0 0
    %1783 = vperm.xlu0 %1782, %v1700
    %v1784 = vpop.permute.xlu0 %1783
    %1787 = vset.pattern.permute.xlu0 0
    %1788 = vperm.xlu0 %1787, %v1701
    %v1789 = vpop.permute.xlu0 %1788
    %1792 = vset.pattern.permute.xlu0 0
    %1793 = vperm.xlu0 %1792, %v1702
    %v1794 = vpop.permute.xlu0 %1793
    %1797 = vset.pattern.permute.xlu0 0
    %1798 = vperm.xlu0 %1797, %v1703
    %v1799 = vpop.permute.xlu0 %1798
    %1802 = vset.pattern.permute.xlu0 0
    %1803 = vperm.xlu0 %1802, %v1704
    %v1804 = vpop.permute.xlu0 %1803
    %v1806 = vperm.slane %v1705, 0
    %v1807 = vmul.f32 %v1709, %v1806
    %v1808 = vmul.f32 %v1714, %v1806
    %v1809 = vmul.f32 %v1719, %v1806
    %v1810 = vmul.f32 %v1724, %v1806
    %v1811 = vmul.f32 %v1729, %v1806
    %v1812 = vmul.f32 %v1734, %v1806
    %v1813 = vmul.f32 %v1739, %v1806
    %v1814 = vmul.f32 %v1744, %v1806
    %v1815 = vmul.f32 %v1749, %v1806
    %v1816 = vmul.f32 %v1754, %v1806
    %v1817 = vmul.f32 %v1759, %v1806
    %v1818 = vmul.f32 %v1764, %v1806
    %v1819 = vmul.f32 %v1769, %v1806
    %v1820 = vmul.f32 %v1774, %v1806
    %v1821 = vmul.f32 %v1779, %v1806
    %v1822 = vmul.f32 %v1784, %v1806
    %v1823 = vmul.f32 %v1789, %v1806
    %v1824 = vmul.f32 %v1794, %v1806
    %v1825 = vmul.f32 %v1799, %v1806
    %v1826 = vmul.f32 %v1804, %v1806
    %v1827 = vadd.f32 %v1665, %v1807
    %v1828 = vadd.f32 %v1666, %v1808
    %v1829 = vadd.f32 %v1667, %v1809
    %v1830 = vadd.f32 %v1668, %v1810
    %v1831 = vadd.f32 %v1669, %v1811
    %v1832 = vadd.f32 %v1670, %v1812
    %v1833 = vadd.f32 %v1671, %v1813
    %v1834 = vadd.f32 %v1672, %v1814
    %v1835 = vadd.f32 %v1673, %v1815
    %v1836 = vadd.f32 %v1674, %v1816
    %v1837 = vadd.f32 %v1675, %v1817
    %v1838 = vadd.f32 %v1676, %v1818
    %v1839 = vadd.f32 %v1677, %v1819
    %v1840 = vadd.f32 %v1678, %v1820
    %v1841 = vadd.f32 %v1679, %v1821
    %v1842 = vadd.f32 %v1680, %v1822
    %v1843 = vadd.f32 %v1681, %v1823
    %v1844 = vadd.f32 %v1682, %v1824
    %v1845 = vadd.f32 %v1683, %v1825
    %v1846 = vadd.f32 %v1684, %v1826
    %v1847 = vperm.slane %v48, 0
    %v1848 = vadd.f32 %v1827, %v1847
    %v1849 = vadd.f32 %v1828, %v1847
    %v1850 = vadd.f32 %v1829, %v1847
    %v1851 = vadd.f32 %v1830, %v1847
    %v1852 = vadd.f32 %v1831, %v1847
    %v1853 = vadd.f32 %v1832, %v1847
    %v1854 = vadd.f32 %v1833, %v1847
    %v1855 = vadd.f32 %v1834, %v1847
    %v1856 = vadd.f32 %v1835, %v1847
    %v1857 = vadd.f32 %v1836, %v1847
    %v1858 = vadd.f32 %v1837, %v1847
    %v1859 = vadd.f32 %v1838, %v1847
    %v1860 = vadd.f32 %v1839, %v1847
    %v1861 = vadd.f32 %v1840, %v1847
    %v1862 = vadd.f32 %v1841, %v1847
    %v1863 = vadd.f32 %v1842, %v1847
    %v1864 = vadd.f32 %v1843, %v1847
    %v1865 = vadd.f32 %v1844, %v1847
    %v1866 = vadd.f32 %v1845, %v1847
    %v1867 = vadd.f32 %v1846, %v1847
    %v1868 = vmax.f32 %v1848, 0.0
    %v1869 = vmax.f32 %v1849, 0.0
    %v1870 = vmax.f32 %v1850, 0.0
    %v1871 = vmax.f32 %v1851, 0.0
    %v1872 = vmax.f32 %v1852, 0.0
    %v1873 = vmax.f32 %v1853, 0.0
    %v1874 = vmax.f32 %v1854, 0.0
    %v1875 = vmax.f32 %v1855, 0.0
    %v1876 = vmax.f32 %v1856, 0.0
    %v1877 = vmax.f32 %v1857, 0.0
    %v1878 = vmax.f32 %v1858, 0.0
    %v1879 = vmax.f32 %v1859, 0.0
    %v1880 = vmax.f32 %v1860, 0.0
    %v1881 = vmax.f32 %v1861, 0.0
    %v1882 = vmax.f32 %v1862, 0.0
    %v1883 = vmax.f32 %v1863, 0.0
    %v1884 = vmax.f32 %v1864, 0.0
    %v1885 = vmax.f32 %v1865, 0.0
    %v1886 = vmax.f32 %v1866, 0.0
    %v1887 = vmax.f32 %v1867, 0.0
    %v1888 = vmul.f32 %v1868, %v136
    %v1889 = vmul.f32 %v1869, %v139
    %v1890 = vmul.f32 %v1870, %v142
    %v1891 = vmul.f32 %v1871, %v145
    %v1892 = vmul.f32 %v1872, %v148
    %v1893 = vmul.f32 %v1873, %v151
    %v1894 = vmul.f32 %v1874, %v154
    %v1895 = vmul.f32 %v1875, %v157
    %v1896 = vmul.f32 %v1876, %v160
    %v1897 = vmul.f32 %v1877, %v163
    %v1898 = vmul.f32 %v1878, %v166
    %v1899 = vmul.f32 %v1879, %v169
    %v1900 = vmul.f32 %v1880, %v172
    %v1901 = vmul.f32 %v1881, %v175
    %v1902 = vmul.f32 %v1882, %v178
    %v1903 = vmul.f32 %v1883, %v181
    %v1904 = vmul.f32 %v1884, %v184
    %v1905 = vmul.f32 %v1885, %v187
    %v1906 = vmul.f32 %v1886, %v190
    %v1907 = vmul.f32 %v1887, %v193
    %1908 = vst.msk [vmem:[#allocation3 + $0x10] sm:$0xff] %vm199, %v1888
    %1909 = vst.msk [vmem:[#allocation3 + $0x18] sm:$0xff] %vm199, %v1889
    %1910 = vst.msk [vmem:[#allocation3 + $0x20] sm:$0xff] %vm199, %v1890
    %1911 = vst.msk [vmem:[#allocation3 + $0x28] sm:$0xff] %vm199, %v1891
    %1912 = vst.msk [vmem:[#allocation3 + $0x30] sm:$0xff] %vm199, %v1892
    %1913 = vst.msk [vmem:[#allocation3 + $0x38] sm:$0xff] %vm199, %v1893
    %1914 = vst.msk [vmem:[#allocation3 + $0x40] sm:$0xff] %vm199, %v1894
    %1915 = vst.msk [vmem:[#allocation3 + $0x48] sm:$0xff] %vm199, %v1895
    %1916 = vst.msk [vmem:[#allocation3 + $0x50] sm:$0xff] %vm199, %v1896
    %1917 = vst.msk [vmem:[#allocation3 + $0x58] sm:$0xff] %vm199, %v1897
    %1918 = vst.msk [vmem:[#allocation3 + $0x60] sm:$0xff] %vm199, %v1898
    %1919 = vst.msk [vmem:[#allocation3 + $0x68] sm:$0xff] %vm199, %v1899
    %1920 = vst.msk [vmem:[#allocation3 + $0x70] sm:$0xff] %vm199, %v1900
    %1921 = vst.msk [vmem:[#allocation3 + $0x78] sm:$0xff] %vm199, %v1901
    %1922 = vst.msk [vmem:[#allocation3 + $0x80] sm:$0xff] %vm199, %v1902
    %1923 = vst.msk [vmem:[#allocation3 + $0x88] sm:$0xff] %vm199, %v1903
    %1924 = vst.msk [vmem:[#allocation3 + $0x90] sm:$0xff] %vm199, %v1904
    %1925 = vst.msk [vmem:[#allocation3 + $0x98] sm:$0xff] %vm199, %v1905
    %1926 = vst.msk [vmem:[#allocation3 + $0xa0] sm:$0xff] %vm199, %v1906
    %1927 = vst.msk [vmem:[#allocation3 + $0xa8] sm:$0xff] %vm199, %v1907
    %v1928 = vld [vmem:[#allocation3 + $0x7] sm:$0xff]
    %v1929 = vld [vmem:[#allocation3 + $0xf] sm:$0xff]
    %v1930 = vld [vmem:[#allocation3 + $0x17] sm:$0xff]
    %v1931 = vld [vmem:[#allocation3 + $0x1f] sm:$0xff]
    %v1932 = vld [vmem:[#allocation3 + $0x27] sm:$0xff]
    %v1933 = vld [vmem:[#allocation3 + $0x2f] sm:$0xff]
    %v1934 = vld [vmem:[#allocation3 + $0x37] sm:$0xff]
    %v1935 = vld [vmem:[#allocation3 + $0x3f] sm:$0xff]
    %v1936 = vld [vmem:[#allocation3 + $0x47] sm:$0xff]
    %v1937 = vld [vmem:[#allocation3 + $0x4f] sm:$0xff]
    %v1938 = vld [vmem:[#allocation3 + $0x57] sm:$0xff]
    %v1939 = vld [vmem:[#allocation3 + $0x5f] sm:$0xff]
    %v1940 = vld [vmem:[#allocation3 + $0x67] sm:$0xff]
    %v1941 = vld [vmem:[#allocation3 + $0x6f] sm:$0xff]
    %v1942 = vld [vmem:[#allocation3 + $0x77] sm:$0xff]
    %v1943 = vld [vmem:[#allocation3 + $0x7f] sm:$0xff]
    %v1944 = vld [vmem:[#allocation3 + $0x87] sm:$0xff]
    %v1945 = vld [vmem:[#allocation3 + $0x8f] sm:$0xff]
    %v1946 = vld [vmem:[#allocation3 + $0x97] sm:$0xff]
    %v1947 = vld [vmem:[#allocation3 + $0x9f] sm:$0xff]
    %1948 = vst.msk [vmem:[#allocation5] sm:$0xff] %vm199, %v1928
    %1949 = vst.msk [vmem:[#allocation5 + $0x48] sm:$0xff] %vm199, %v1929
    %1950 = vst.msk [vmem:[#allocation5 + $0x90] sm:$0xff] %vm199, %v1930
    %1951 = vst.msk [vmem:[#allocation5 + $0xd8] sm:$0xff] %vm199, %v1931
    %1952 = vst.msk [vmem:[#allocation5 + $0x120] sm:$0xff] %vm199, %v1932
    %1953 = vst.msk [vmem:[#allocation5 + $0x168] sm:$0xff] %vm199, %v1933
    %1954 = vst.msk [vmem:[#allocation5 + $0x1b0] sm:$0xff] %vm199, %v1934
    %1955 = vst.msk [vmem:[#allocation5 + $0x1f8] sm:$0xff] %vm199, %v1935
    %1956 = vst.msk [vmem:[#allocation5 + $0x240] sm:$0xff] %vm199, %v1936
    %1957 = vst.msk [vmem:[#allocation5 + $0x288] sm:$0xff] %vm199, %v1937
    %1958 = vst.msk [vmem:[#allocation5 + $0x2d0] sm:$0xff] %vm199, %v1938
    %1959 = vst.msk [vmem:[#allocation5 + $0x318] sm:$0xff] %vm199, %v1939
    %1960 = vst.msk [vmem:[#allocation5 + $0x360] sm:$0xff] %vm199, %v1940
    %1961 = vst.msk [vmem:[#allocation5 + $0x3a8] sm:$0xff] %vm199, %v1941
    %1962 = vst.msk [vmem:[#allocation5 + $0x3f0] sm:$0xff] %vm199, %v1942
    %1963 = vst.msk [vmem:[#allocation5 + $0x438] sm:$0xff] %vm199, %v1943
    %1964 = vst.msk [vmem:[#allocation5 + $0x480] sm:$0xff] %vm199, %v1944
    %1965 = vst.msk [vmem:[#allocation5 + $0x4c8] sm:$0xff] %vm199, %v1945
    %1966 = vst.msk [vmem:[#allocation5 + $0x510] sm:$0xff] %vm199, %v1946
    %1967 = vst.msk [vmem:[#allocation5 + $0x558] sm:$0xff] %vm199, %v1947
    %v1968 = vld [vmem:[#allocation3 + $0x8] sm:$0xff]
    %v1969 = vld [vmem:[#allocation3 + $0x10] sm:$0xff]
    %v1970 = vld [vmem:[#allocation3 + $0x18] sm:$0xff]
    %v1971 = vld [vmem:[#allocation3 + $0x20] sm:$0xff]
    %v1972 = vld [vmem:[#allocation3 + $0x28] sm:$0xff]
    %v1973 = vld [vmem:[#allocation3 + $0x30] sm:$0xff]
    %v1974 = vld [vmem:[#allocation3 + $0x38] sm:$0xff]
    %v1975 = vld [vmem:[#allocation3 + $0x40] sm:$0xff]
    %v1976 = vld [vmem:[#allocation3 + $0x48] sm:$0xff]
    %v1977 = vld [vmem:[#allocation3 + $0x50] sm:$0xff]
    %v1978 = vld [vmem:[#allocation3 + $0x58] sm:$0xff]
    %v1979 = vld [vmem:[#allocation3 + $0x60] sm:$0xff]
    %v1980 = vld [vmem:[#allocation3 + $0x68] sm:$0xff]
    %v1981 = vld [vmem:[#allocation3 + $0x70] sm:$0xff]
    %v1982 = vld [vmem:[#allocation3 + $0x78] sm:$0xff]
    %v1983 = vld [vmem:[#allocation3 + $0x80] sm:$0xff]
    %v1984 = vld [vmem:[#allocation3 + $0x88] sm:$0xff]
    %v1985 = vld [vmem:[#allocation3 + $0x90] sm:$0xff]
    %v1986 = vld [vmem:[#allocation3 + $0x98] sm:$0xff]
    %v1987 = vld [vmem:[#allocation3 + $0xa0] sm:$0xff]
    %1988 = vst.msk [vmem:[#allocation5 + $0x8] sm:$0xff] %vm199, %v1968
    %1989 = vst.msk [vmem:[#allocation5 + $0x50] sm:$0xff] %vm199, %v1969
    %1990 = vst.msk [vmem:[#allocation5 + $0x98] sm:$0xff] %vm199, %v1970
    %1991 = vst.msk [vmem:[#allocation5 + $0xe0] sm:$0xff] %vm199, %v1971
    %1992 = vst.msk [vmem:[#allocation5 + $0x128] sm:$0xff] %vm199, %v1972
    %1993 = vst.msk [vmem:[#allocation5 + $0x170] sm:$0xff] %vm199, %v1973
    %1994 = vst.msk [vmem:[#allocation5 + $0x1b8] sm:$0xff] %vm199, %v1974
    %1995 = vst.msk [vmem:[#allocation5 + $0x200] sm:$0xff] %vm199, %v1975
    %1996 = vst.msk [vmem:[#allocation5 + $0x248] sm:$0xff] %vm199, %v1976
    %1997 = vst.msk [vmem:[#allocation5 + $0x290] sm:$0xff] %vm199, %v1977
    %1998 = vst.msk [vmem:[#allocation5 + $0x2d8] sm:$0xff] %vm199, %v1978
    %1999 = vst.msk [vmem:[#allocation5 + $0x320] sm:$0xff] %vm199, %v1979
    %2000 = vst.msk [vmem:[#allocation5 + $0x368] sm:$0xff] %vm199, %v1980
    %2001 = vst.msk [vmem:[#allocation5 + $0x3b0] sm:$0xff] %vm199, %v1981
    %2002 = vst.msk [vmem:[#allocation5 + $0x3f8] sm:$0xff] %vm199, %v1982
    %2003 = vst.msk [vmem:[#allocation5 + $0x440] sm:$0xff] %vm199, %v1983
    %2004 = vst.msk [vmem:[#allocation5 + $0x488] sm:$0xff] %vm199, %v1984
    %2005 = vst.msk [vmem:[#allocation5 + $0x4d0] sm:$0xff] %vm199, %v1985
    %2006 = vst.msk [vmem:[#allocation5 + $0x518] sm:$0xff] %vm199, %v1986
    %2007 = vst.msk [vmem:[#allocation5 + $0x560] sm:$0xff] %vm199, %v1987
    %v2008 = vld [vmem:[#allocation3 + $0x9] sm:$0xff]
    %v2009 = vld [vmem:[#allocation3 + $0x11] sm:$0xff]
    %v2010 = vld [vmem:[#allocation3 + $0x19] sm:$0xff]
    %v2011 = vld [vmem:[#allocation3 + $0x21] sm:$0xff]
    %v2012 = vld [vmem:[#allocation3 + $0x29] sm:$0xff]
    %v2013 = vld [vmem:[#allocation3 + $0x31] sm:$0xff]
    %v2014 = vld [vmem:[#allocation3 + $0x39] sm:$0xff]
    %v2015 = vld [vmem:[#allocation3 + $0x41] sm:$0xff]
    %v2016 = vld [vmem:[#allocation3 + $0x49] sm:$0xff]
    %v2017 = vld [vmem:[#allocation3 + $0x51] sm:$0xff]
    %v2018 = vld [vmem:[#allocation3 + $0x59] sm:$0xff]
    %v2019 = vld [vmem:[#allocation3 + $0x61] sm:$0xff]
    %v2020 = vld [vmem:[#allocation3 + $0x69] sm:$0xff]
    %v2021 = vld [vmem:[#allocation3 + $0x71] sm:$0xff]
    %v2022 = vld [vmem:[#allocation3 + $0x79] sm:$0xff]
    %v2023 = vld [vmem:[#allocation3 + $0x81] sm:$0xff]
    %v2024 = vld [vmem:[#allocation3 + $0x89] sm:$0xff]
    %v2025 = vld [vmem:[#allocation3 + $0x91] sm:$0xff]
    %v2026 = vld [vmem:[#allocation3 + $0x99] sm:$0xff]
    %v2027 = vld [vmem:[#allocation3 + $0xa1] sm:$0xff]
    %2028 = vst.msk [vmem:[#allocation5 + $0x10] sm:$0xff] %vm199, %v2008
    %2029 = vst.msk [vmem:[#allocation5 + $0x58] sm:$0xff] %vm199, %v2009
    %2030 = vst.msk [vmem:[#allocation5 + $0xa0] sm:$0xff] %vm199, %v2010
    %2031 = vst.msk [vmem:[#allocation5 + $0xe8] sm:$0xff] %vm199, %v2011
    %2032 = vst.msk [vmem:[#allocation5 + $0x130] sm:$0xff] %vm199, %v2012
    %2033 = vst.msk [vmem:[#allocation5 + $0x178] sm:$0xff] %vm199, %v2013
    %2034 = vst.msk [vmem:[#allocation5 + $0x1c0] sm:$0xff] %vm199, %v2014
    %2035 = vst.msk [vmem:[#allocation5 + $0x208] sm:$0xff] %vm199, %v2015
    %2036 = vst.msk [vmem:[#allocation5 + $0x250] sm:$0xff] %vm199, %v2016
    %2037 = vst.msk [vmem:[#allocation5 + $0x298] sm:$0xff] %vm199, %v2017
    %2038 = vst.msk [vmem:[#allocation5 + $0x2e0] sm:$0xff] %vm199, %v2018
    %2039 = vst.msk [vmem:[#allocation5 + $0x328] sm:$0xff] %vm199, %v2019
    %2040 = vst.msk [vmem:[#allocation5 + $0x370] sm:$0xff] %vm199, %v2020
    %2041 = vst.msk [vmem:[#allocation5 + $0x3b8] sm:$0xff] %vm199, %v2021
    %2042 = vst.msk [vmem:[#allocation5 + $0x400] sm:$0xff] %vm199, %v2022
    %2043 = vst.msk [vmem:[#allocation5 + $0x448] sm:$0xff] %vm199, %v2023
    %2044 = vst.msk [vmem:[#allocation5 + $0x490] sm:$0xff] %vm199, %v2024
    %2045 = vst.msk [vmem:[#allocation5 + $0x4d8] sm:$0xff] %vm199, %v2025
    %2046 = vst.msk [vmem:[#allocation5 + $0x520] sm:$0xff] %vm199, %v2026
    %2047 = vst.msk [vmem:[#allocation5 + $0x568] sm:$0xff] %vm199, %v2027
    %v2048 = vld [vmem:[#allocation3 + $0xf] sm:$0xff]
    %v2049 = vld [vmem:[#allocation3 + $0x17] sm:$0xff]
    %v2050 = vld [vmem:[#allocation3 + $0x1f] sm:$0xff]
    %v2051 = vld [vmem:[#allocation3 + $0x27] sm:$0xff]
    %v2052 = vld [vmem:[#allocation3 + $0x2f] sm:$0xff]
    %v2053 = vld [vmem:[#allocation3 + $0x37] sm:$0xff]
    %v2054 = vld [vmem:[#allocation3 + $0x3f] sm:$0xff]
    %v2055 = vld [vmem:[#allocation3 + $0x47] sm:$0xff]
    %v2056 = vld [vmem:[#allocation3 + $0x4f] sm:$0xff]
    %v2057 = vld [vmem:[#allocation3 + $0x57] sm:$0xff]
    %v2058 = vld [vmem:[#allocation3 + $0x5f] sm:$0xff]
    %v2059 = vld [vmem:[#allocation3 + $0x67] sm:$0xff]
    %v2060 = vld [vmem:[#allocation3 + $0x6f] sm:$0xff]
    %v2061 = vld [vmem:[#allocation3 + $0x77] sm:$0xff]
    %v2062 = vld [vmem:[#allocation3 + $0x7f] sm:$0xff]
    %v2063 = vld [vmem:[#allocation3 + $0x87] sm:$0xff]
    %v2064 = vld [vmem:[#allocation3 + $0x8f] sm:$0xff]
    %v2065 = vld [vmem:[#allocation3 + $0x97] sm:$0xff]
    %v2066 = vld [vmem:[#allocation3 + $0x9f] sm:$0xff]
    %v2067 = vld [vmem:[#allocation3 + $0xa7] sm:$0xff]
    %2068 = vst.msk [vmem:[#allocation5 + $0x18] sm:$0xff] %vm199, %v2048
    %2069 = vst.msk [vmem:[#allocation5 + $0x60] sm:$0xff] %vm199, %v2049
    %2070 = vst.msk [vmem:[#allocation5 + $0xa8] sm:$0xff] %vm199, %v2050
    %2071 = vst.msk [vmem:[#allocation5 + $0xf0] sm:$0xff] %vm199, %v2051
    %2072 = vst.msk [vmem:[#allocation5 + $0x138] sm:$0xff] %vm199, %v2052
    %2073 = vst.msk [vmem:[#allocation5 + $0x180] sm:$0xff] %vm199, %v2053
    %2074 = vst.msk [vmem:[#allocation5 + $0x1c8] sm:$0xff] %vm199, %v2054
    %2075 = vst.msk [vmem:[#allocation5 + $0x210] sm:$0xff] %vm199, %v2055
    %2076 = vst.msk [vmem:[#allocation5 + $0x258] sm:$0xff] %vm199, %v2056
    %2077 = vst.msk [vmem:[#allocation5 + $0x2a0] sm:$0xff] %vm199, %v2057
    %2078 = vst.msk [vmem:[#allocation5 + $0x2e8] sm:$0xff] %vm199, %v2058
    %2079 = vst.msk [vmem:[#allocation5 + $0x330] sm:$0xff] %vm199, %v2059
    %2080 = vst.msk [vmem:[#allocation5 + $0x378] sm:$0xff] %vm199, %v2060
    %2081 = vst.msk [vmem:[#allocation5 + $0x3c0] sm:$0xff] %vm199, %v2061
    %2082 = vst.msk [vmem:[#allocation5 + $0x408] sm:$0xff] %vm199, %v2062
    %2083 = vst.msk [vmem:[#allocation5 + $0x450] sm:$0xff] %vm199, %v2063
    %2084 = vst.msk [vmem:[#allocation5 + $0x498] sm:$0xff] %vm199, %v2064
    %2085 = vst.msk [vmem:[#allocation5 + $0x4e0] sm:$0xff] %vm199, %v2065
    %2086 = vst.msk [vmem:[#allocation5 + $0x528] sm:$0xff] %vm199, %v2066
    %2087 = vst.msk [vmem:[#allocation5 + $0x570] sm:$0xff] %vm199, %v2067
    %v2088 = vld [vmem:[#allocation3 + $0x10] sm:$0xff]
    %v2089 = vld [vmem:[#allocation3 + $0x18] sm:$0xff]
    %v2090 = vld [vmem:[#allocation3 + $0x20] sm:$0xff]
    %v2091 = vld [vmem:[#allocation3 + $0x28] sm:$0xff]
    %v2092 = vld [vmem:[#allocation3 + $0x30] sm:$0xff]
    %v2093 = vld [vmem:[#allocation3 + $0x38] sm:$0xff]
    %v2094 = vld [vmem:[#allocation3 + $0x40] sm:$0xff]
    %v2095 = vld [vmem:[#allocation3 + $0x48] sm:$0xff]
    %v2096 = vld [vmem:[#allocation3 + $0x50] sm:$0xff]
    %v2097 = vld [vmem:[#allocation3 + $0x58] sm:$0xff]
    %v2098 = vld [vmem:[#allocation3 + $0x60] sm:$0xff]
    %v2099 = vld [vmem:[#allocation3 + $0x68] sm:$0xff]
    %v2100 = vld [vmem:[#allocation3 + $0x70] sm:$0xff]
    %v2101 = vld [vmem:[#allocation3 + $0x78] sm:$0xff]
    %v2102 = vld [vmem:[#allocation3 + $0x80] sm:$0xff]
    %v2103 = vld [vmem:[#allocation3 + $0x88] sm:$0xff]
    %v2104 = vld [vmem:[#allocation3 + $0x90] sm:$0xff]
    %v2105 = vld [vmem:[#allocation3 + $0x98] sm:$0xff]
    %v2106 = vld [vmem:[#allocation3 + $0xa0] sm:$0xff]
    %v2107 = vld [vmem:[#allocation3 + $0xa8] sm:$0xff]
    %2108 = vst.msk [vmem:[#allocation5 + $0x20] sm:$0xff] %vm199, %v2088
    %2109 = vst.msk [vmem:[#allocation5 + $0x68] sm:$0xff] %vm199, %v2089
    %2110 = vst.msk [vmem:[#allocation5 + $0xb0] sm:$0xff] %vm199, %v2090
    %2111 = vst.msk [vmem:[#allocation5 + $0xf8] sm:$0xff] %vm199, %v2091
    %2112 = vst.msk [vmem:[#allocation5 + $0x140] sm:$0xff] %vm199, %v2092
    %2113 = vst.msk [vmem:[#allocation5 + $0x188] sm:$0xff] %vm199, %v2093
    %2114 = vst.msk [vmem:[#allocation5 + $0x1d0] sm:$0xff] %vm199, %v2094
    %2115 = vst.msk [vmem:[#allocation5 + $0x218] sm:$0xff] %vm199, %v2095
    %2116 = vst.msk [vmem:[#allocation5 + $0x260] sm:$0xff] %vm199, %v2096
    %2117 = vst.msk [vmem:[#allocation5 + $0x2a8] sm:$0xff] %vm199, %v2097
    %2118 = vst.msk [vmem:[#allocation5 + $0x2f0] sm:$0xff] %vm199, %v2098
    %2119 = vst.msk [vmem:[#allocation5 + $0x338] sm:$0xff] %vm199, %v2099
    %2120 = vst.msk [vmem:[#allocation5 + $0x380] sm:$0xff] %vm199, %v2100
    %2121 = vst.msk [vmem:[#allocation5 + $0x3c8] sm:$0xff] %vm199, %v2101
    %2122 = vst.msk [vmem:[#allocation5 + $0x410] sm:$0xff] %vm199, %v2102
    %2123 = vst.msk [vmem:[#allocation5 + $0x458] sm:$0xff] %vm199, %v2103
    %2124 = vst.msk [vmem:[#allocation5 + $0x4a0] sm:$0xff] %vm199, %v2104
    %2125 = vst.msk [vmem:[#allocation5 + $0x4e8] sm:$0xff] %vm199, %v2105
    %2126 = vst.msk [vmem:[#allocation5 + $0x530] sm:$0xff] %vm199, %v2106
    %2127 = vst.msk [vmem:[#allocation5 + $0x578] sm:$0xff] %vm199, %v2107
    %v2128 = vld [vmem:[#allocation3 + $0x11] sm:$0xff]
    %v2129 = vld [vmem:[#allocation3 + $0x19] sm:$0xff]
    %v2130 = vld [vmem:[#allocation3 + $0x21] sm:$0xff]
    %v2131 = vld [vmem:[#allocation3 + $0x29] sm:$0xff]
    %v2132 = vld [vmem:[#allocation3 + $0x31] sm:$0xff]
    %v2133 = vld [vmem:[#allocation3 + $0x39] sm:$0xff]
    %v2134 = vld [vmem:[#allocation3 + $0x41] sm:$0xff]
    %v2135 = vld [vmem:[#allocation3 + $0x49] sm:$0xff]
    %v2136 = vld [vmem:[#allocation3 + $0x51] sm:$0xff]
    %v2137 = vld [vmem:[#allocation3 + $0x59] sm:$0xff]
    %v2138 = vld [vmem:[#allocation3 + $0x61] sm:$0xff]
    %v2139 = vld [vmem:[#allocation3 + $0x69] sm:$0xff]
    %v2140 = vld [vmem:[#allocation3 + $0x71] sm:$0xff]
    %v2141 = vld [vmem:[#allocation3 + $0x79] sm:$0xff]
    %v2142 = vld [vmem:[#allocation3 + $0x81] sm:$0xff]
    %v2143 = vld [vmem:[#allocation3 + $0x89] sm:$0xff]
    %v2144 = vld [vmem:[#allocation3 + $0x91] sm:$0xff]
    %v2145 = vld [vmem:[#allocation3 + $0x99] sm:$0xff]
    %v2146 = vld [vmem:[#allocation3 + $0xa1] sm:$0xff]
    %v2147 = vld [vmem:[#allocation3 + $0xa9] sm:$0xff]
    %2148 = vst.msk [vmem:[#allocation5 + $0x28] sm:$0xff] %vm199, %v2128
    %2149 = vst.msk [vmem:[#allocation5 + $0x70] sm:$0xff] %vm199, %v2129
    %2150 = vst.msk [vmem:[#allocation5 + $0xb8] sm:$0xff] %vm199, %v2130
    %2151 = vst.msk [vmem:[#allocation5 + $0x100] sm:$0xff] %vm199, %v2131
    %2152 = vst.msk [vmem:[#allocation5 + $0x148] sm:$0xff] %vm199, %v2132
    %2153 = vst.msk [vmem:[#allocation5 + $0x190] sm:$0xff] %vm199, %v2133
    %2154 = vst.msk [vmem:[#allocation5 + $0x1d8] sm:$0xff] %vm199, %v2134
    %2155 = vst.msk [vmem:[#allocation5 + $0x220] sm:$0xff] %vm199, %v2135
    %2156 = vst.msk [vmem:[#allocation5 + $0x268] sm:$0xff] %vm199, %v2136
    %2157 = vst.msk [vmem:[#allocation5 + $0x2b0] sm:$0xff] %vm199, %v2137
    %2158 = vst.msk [vmem:[#allocation5 + $0x2f8] sm:$0xff] %vm199, %v2138
    %2159 = vst.msk [vmem:[#allocation5 + $0x340] sm:$0xff] %vm199, %v2139
    %2160 = vst.msk [vmem:[#allocation5 + $0x388] sm:$0xff] %vm199, %v2140
    %2161 = vst.msk [vmem:[#allocation5 + $0x3d0] sm:$0xff] %vm199, %v2141
    %2162 = vst.msk [vmem:[#allocation5 + $0x418] sm:$0xff] %vm199, %v2142
    %2163 = vst.msk [vmem:[#allocation5 + $0x460] sm:$0xff] %vm199, %v2143
    %2164 = vst.msk [vmem:[#allocation5 + $0x4a8] sm:$0xff] %vm199, %v2144
    %2165 = vst.msk [vmem:[#allocation5 + $0x4f0] sm:$0xff] %vm199, %v2145
    %2166 = vst.msk [vmem:[#allocation5 + $0x538] sm:$0xff] %vm199, %v2146
    %2167 = vst.msk [vmem:[#allocation5 + $0x580] sm:$0xff] %vm199, %v2147
    %v2168 = vld [vmem:[#allocation3 + $0x17] sm:$0xff]
    %v2169 = vld [vmem:[#allocation3 + $0x1f] sm:$0xff]
    %v2170 = vld [vmem:[#allocation3 + $0x27] sm:$0xff]
    %v2171 = vld [vmem:[#allocation3 + $0x2f] sm:$0xff]
    %v2172 = vld [vmem:[#allocation3 + $0x37] sm:$0xff]
    %v2173 = vld [vmem:[#allocation3 + $0x3f] sm:$0xff]
    %v2174 = vld [vmem:[#allocation3 + $0x47] sm:$0xff]
    %v2175 = vld [vmem:[#allocation3 + $0x4f] sm:$0xff]
    %v2176 = vld [vmem:[#allocation3 + $0x57] sm:$0xff]
    %v2177 = vld [vmem:[#allocation3 + $0x5f] sm:$0xff]
    %v2178 = vld [vmem:[#allocation3 + $0x67] sm:$0xff]
    %v2179 = vld [vmem:[#allocation3 + $0x6f] sm:$0xff]
    %v2180 = vld [vmem:[#allocation3 + $0x77] sm:$0xff]
    %v2181 = vld [vmem:[#allocation3 + $0x7f] sm:$0xff]
    %v2182 = vld [vmem:[#allocation3 + $0x87] sm:$0xff]
    %v2183 = vld [vmem:[#allocation3 + $0x8f] sm:$0xff]
    %v2184 = vld [vmem:[#allocation3 + $0x97] sm:$0xff]
    %v2185 = vld [vmem:[#allocation3 + $0x9f] sm:$0xff]
    %v2186 = vld [vmem:[#allocation3 + $0xa7] sm:$0xff]
    %v2187 = vld [vmem:[#allocation3 + $0xaf] sm:$0xff]
    %2188 = vst.msk [vmem:[#allocation5 + $0x30] sm:$0xff] %vm199, %v2168
    %2189 = vst.msk [vmem:[#allocation5 + $0x78] sm:$0xff] %vm199, %v2169
    %2190 = vst.msk [vmem:[#allocation5 + $0xc0] sm:$0xff] %vm199, %v2170
    %2191 = vst.msk [vmem:[#allocation5 + $0x108] sm:$0xff] %vm199, %v2171
    %2192 = vst.msk [vmem:[#allocation5 + $0x150] sm:$0xff] %vm199, %v2172
    %2193 = vst.msk [vmem:[#allocation5 + $0x198] sm:$0xff] %vm199, %v2173
    %2194 = vst.msk [vmem:[#allocation5 + $0x1e0] sm:$0xff] %vm199, %v2174
    %2195 = vst.msk [vmem:[#allocation5 + $0x228] sm:$0xff] %vm199, %v2175
    %2196 = vst.msk [vmem:[#allocation5 + $0x270] sm:$0xff] %vm199, %v2176
    %2197 = vst.msk [vmem:[#allocation5 + $0x2b8] sm:$0xff] %vm199, %v2177
    %2198 = vst.msk [vmem:[#allocation5 + $0x300] sm:$0xff] %vm199, %v2178
    %2199 = vst.msk [vmem:[#allocation5 + $0x348] sm:$0xff] %vm199, %v2179
    %2200 = vst.msk [vmem:[#allocation5 + $0x390] sm:$0xff] %vm199, %v2180
    %2201 = vst.msk [vmem:[#allocation5 + $0x3d8] sm:$0xff] %vm199, %v2181
    %2202 = vst.msk [vmem:[#allocation5 + $0x420] sm:$0xff] %vm199, %v2182
    %2203 = vst.msk [vmem:[#allocation5 + $0x468] sm:$0xff] %vm199, %v2183
    %2204 = vst.msk [vmem:[#allocation5 + $0x4b0] sm:$0xff] %vm199, %v2184
    %2205 = vst.msk [vmem:[#allocation5 + $0x4f8] sm:$0xff] %vm199, %v2185
    %2206 = vst.msk [vmem:[#allocation5 + $0x540] sm:$0xff] %vm199, %v2186
    %2207 = vst.msk [vmem:[#allocation5 + $0x588] sm:$0xff] %vm199, %v2187
    %v2208 = vld [vmem:[#allocation3 + $0x18] sm:$0xff]
    %v2209 = vld [vmem:[#allocation3 + $0x20] sm:$0xff]
    %v2210 = vld [vmem:[#allocation3 + $0x28] sm:$0xff]
    %v2211 = vld [vmem:[#allocation3 + $0x30] sm:$0xff]
    %v2212 = vld [vmem:[#allocation3 + $0x38] sm:$0xff]
    %v2213 = vld [vmem:[#allocation3 + $0x40] sm:$0xff]
    %v2214 = vld [vmem:[#allocation3 + $0x48] sm:$0xff]
    %v2215 = vld [vmem:[#allocation3 + $0x50] sm:$0xff]
    %v2216 = vld [vmem:[#allocation3 + $0x58] sm:$0xff]
    %v2217 = vld [vmem:[#allocation3 + $0x60] sm:$0xff]
    %v2218 = vld [vmem:[#allocation3 + $0x68] sm:$0xff]
    %v2219 = vld [vmem:[#allocation3 + $0x70] sm:$0xff]
    %v2220 = vld [vmem:[#allocation3 + $0x78] sm:$0xff]
    %v2221 = vld [vmem:[#allocation3 + $0x80] sm:$0xff]
    %v2222 = vld [vmem:[#allocation3 + $0x88] sm:$0xff]
    %v2223 = vld [vmem:[#allocation3 + $0x90] sm:$0xff]
    %v2224 = vld [vmem:[#allocation3 + $0x98] sm:$0xff]
    %v2225 = vld [vmem:[#allocation3 + $0xa0] sm:$0xff]
    %v2226 = vld [vmem:[#allocation3 + $0xa8] sm:$0xff]
    %v2227 = vld [vmem:[#allocation3 + $0xb0] sm:$0xff]
    %2228 = vst.msk [vmem:[#allocation5 + $0x38] sm:$0xff] %vm199, %v2208
    %2229 = vst.msk [vmem:[#allocation5 + $0x80] sm:$0xff] %vm199, %v2209
    %2230 = vst.msk [vmem:[#allocation5 + $0xc8] sm:$0xff] %vm199, %v2210
    %2231 = vst.msk [vmem:[#allocation5 + $0x110] sm:$0xff] %vm199, %v2211
    %2232 = vst.msk [vmem:[#allocation5 + $0x158] sm:$0xff] %vm199, %v2212
    %2233 = vst.msk [vmem:[#allocation5 + $0x1a0] sm:$0xff] %vm199, %v2213
    %2234 = vst.msk [vmem:[#allocation5 + $0x1e8] sm:$0xff] %vm199, %v2214
    %2235 = vst.msk [vmem:[#allocation5 + $0x230] sm:$0xff] %vm199, %v2215
    %2236 = vst.msk [vmem:[#allocation5 + $0x278] sm:$0xff] %vm199, %v2216
    %2237 = vst.msk [vmem:[#allocation5 + $0x2c0] sm:$0xff] %vm199, %v2217
    %2238 = vst.msk [vmem:[#allocation5 + $0x308] sm:$0xff] %vm199, %v2218
    %2239 = vst.msk [vmem:[#allocation5 + $0x350] sm:$0xff] %vm199, %v2219
    %2240 = vst.msk [vmem:[#allocation5 + $0x398] sm:$0xff] %vm199, %v2220
    %2241 = vst.msk [vmem:[#allocation5 + $0x3e0] sm:$0xff] %vm199, %v2221
    %2242 = vst.msk [vmem:[#allocation5 + $0x428] sm:$0xff] %vm199, %v2222
    %2243 = vst.msk [vmem:[#allocation5 + $0x470] sm:$0xff] %vm199, %v2223
    %2244 = vst.msk [vmem:[#allocation5 + $0x4b8] sm:$0xff] %vm199, %v2224
    %2245 = vst.msk [vmem:[#allocation5 + $0x500] sm:$0xff] %vm199, %v2225
    %2246 = vst.msk [vmem:[#allocation5 + $0x548] sm:$0xff] %vm199, %v2226
    %2247 = vst.msk [vmem:[#allocation5 + $0x590] sm:$0xff] %vm199, %v2227
    %v2248 = vld [vmem:[#allocation3 + $0x19] sm:$0xff]
    %v2249 = vld [vmem:[#allocation3 + $0x21] sm:$0xff]
    %v2250 = vld [vmem:[#allocation3 + $0x29] sm:$0xff]
    %v2251 = vld [vmem:[#allocation3 + $0x31] sm:$0xff]
    %v2252 = vld [vmem:[#allocation3 + $0x39] sm:$0xff]
    %v2253 = vld [vmem:[#allocation3 + $0x41] sm:$0xff]
    %v2254 = vld [vmem:[#allocation3 + $0x49] sm:$0xff]
    %v2255 = vld [vmem:[#allocation3 + $0x51] sm:$0xff]
    %v2256 = vld [vmem:[#allocation3 + $0x59] sm:$0xff]
    %v2257 = vld [vmem:[#allocation3 + $0x61] sm:$0xff]
    %v2258 = vld [vmem:[#allocation3 + $0x69] sm:$0xff]
    %v2259 = vld [vmem:[#allocation3 + $0x71] sm:$0xff]
    %v2260 = vld [vmem:[#allocation3 + $0x79] sm:$0xff]
    %v2261 = vld [vmem:[#allocation3 + $0x81] sm:$0xff]
    %v2262 = vld [vmem:[#allocation3 + $0x89] sm:$0xff]
    %v2263 = vld [vmem:[#allocation3 + $0x91] sm:$0xff]
    %v2264 = vld [vmem:[#allocation3 + $0x99] sm:$0xff]
    %v2265 = vld [vmem:[#allocation3 + $0xa1] sm:$0xff]
    %v2266 = vld [vmem:[#allocation3 + $0xa9] sm:$0xff]
    %v2267 = vld [vmem:[#allocation3 + $0xb1] sm:$0xff]
    %2268 = vst.msk [vmem:[#allocation5 + $0x40] sm:$0xff] %vm199, %v2248
    %2269 = vst.msk [vmem:[#allocation5 + $0x88] sm:$0xff] %vm199, %v2249
    %2270 = vst.msk [vmem:[#allocation5 + $0xd0] sm:$0xff] %vm199, %v2250
    %2271 = vst.msk [vmem:[#allocation5 + $0x118] sm:$0xff] %vm199, %v2251
    %2272 = vst.msk [vmem:[#allocation5 + $0x160] sm:$0xff] %vm199, %v2252
    %2273 = vst.msk [vmem:[#allocation5 + $0x1a8] sm:$0xff] %vm199, %v2253
    %2274 = vst.msk [vmem:[#allocation5 + $0x1f0] sm:$0xff] %vm199, %v2254
    %2275 = vst.msk [vmem:[#allocation5 + $0x238] sm:$0xff] %vm199, %v2255
    %2276 = vst.msk [vmem:[#allocation5 + $0x280] sm:$0xff] %vm199, %v2256
    %2277 = vst.msk [vmem:[#allocation5 + $0x2c8] sm:$0xff] %vm199, %v2257
    %2278 = vst.msk [vmem:[#allocation5 + $0x310] sm:$0xff] %vm199, %v2258
    %2279 = vst.msk [vmem:[#allocation5 + $0x358] sm:$0xff] %vm199, %v2259
    %2280 = vst.msk [vmem:[#allocation5 + $0x3a0] sm:$0xff] %vm199, %v2260
    %2281 = vst.msk [vmem:[#allocation5 + $0x3e8] sm:$0xff] %vm199, %v2261
    %2282 = vst.msk [vmem:[#allocation5 + $0x430] sm:$0xff] %vm199, %v2262
    %2283 = vst.msk [vmem:[#allocation5 + $0x478] sm:$0xff] %vm199, %v2263
    %2284 = vst.msk [vmem:[#allocation5 + $0x4c0] sm:$0xff] %vm199, %v2264
    %2285 = vst.msk [vmem:[#allocation5 + $0x508] sm:$0xff] %vm199, %v2265
    %2286 = vst.msk [vmem:[#allocation5 + $0x550] sm:$0xff] %vm199, %v2266
    %2287 = vst.msk [vmem:[#allocation5 + $0x598] sm:$0xff] %vm199, %v2267
    %v2288 = vld [vmem:[#allocation6 + $0x10] sm:$0xff]
    %v2289 = vld [vmem:[#allocation6 + $0x18] sm:$0xff]
    %v2290 = vld [vmem:[#allocation6 + $0x20] sm:$0xff]
    %v2291 = vld [vmem:[#allocation6 + $0x28] sm:$0xff]
    %v2292 = vld [vmem:[#allocation6 + $0x30] sm:$0xff]
    %v2293 = vld [vmem:[#allocation6 + $0x38] sm:$0xff]
    %v2294 = vld [vmem:[#allocation6 + $0x40] sm:$0xff]
    %v2295 = vld [vmem:[#allocation6 + $0x48] sm:$0xff]
    %v2296 = vld [vmem:[#allocation6 + $0x50] sm:$0xff]
    %v2297 = vld [vmem:[#allocation6 + $0x58] sm:$0xff]
    %v2298 = vld [vmem:[#allocation6 + $0x60] sm:$0xff]
    %v2299 = vld [vmem:[#allocation6 + $0x68] sm:$0xff]
    %v2300 = vld [vmem:[#allocation6 + $0x70] sm:$0xff]
    %v2301 = vld [vmem:[#allocation6 + $0x78] sm:$0xff]
    %v2302 = vld [vmem:[#allocation6 + $0x80] sm:$0xff]
    %v2303 = vld [vmem:[#allocation6 + $0x88] sm:$0xff]
    %v2304 = vld [vmem:[#allocation6 + $0x90] sm:$0xff]
    %v2305 = vld [vmem:[#allocation6 + $0x98] sm:$0xff]
    %v2306 = vld [vmem:[#allocation6 + $0xa0] sm:$0xff]
    %v2307 = vld [vmem:[#allocation6 + $0xa8] sm:$0xff]
    %v2308 = vld [vmem:[#allocation6 + $0xb0] sm:$0xff]
    %v2309 = vld [vmem:[#allocation6 + $0xb8] sm:$0xff]
    %v2310 = vld [vmem:[#allocation6 + $0xc0] sm:$0xff]
    %v2311 = vld [vmem:[#allocation6 + $0xc8] sm:$0xff]
    %v2312 = vld [vmem:[#allocation6 + $0xd0] sm:$0xff]
    %v2313 = vld [vmem:[#allocation6 + $0xd8] sm:$0xff]
    %v2314 = vld [vmem:[#allocation6 + $0xe0] sm:$0xff]
    %v2315 = vld [vmem:[#allocation6 + $0xe8] sm:$0xff]
    %v2316 = vld [vmem:[#allocation6 + $0xf0] sm:$0xff]
    %v2317 = vld [vmem:[#allocation6 + $0xf8] sm:$0xff]
    %v2318 = vld [vmem:[#allocation6 + $0x100] sm:$0xff]
    %v2319 = vld [vmem:[#allocation6 + $0x108] sm:$0xff]
    %v2320 = vld [vmem:[#allocation6 + $0x110] sm:$0xff]
    %v2321 = vld [vmem:[#allocation6 + $0x118] sm:$0xff]
    %v2322 = vld [vmem:[#allocation6 + $0x120] sm:$0xff]
    %v2323 = vld [vmem:[#allocation6 + $0x128] sm:$0xff]
    %v2324 = vld [vmem:[#allocation6 + $0x130] sm:$0xff]
    %v2325 = vld [vmem:[#allocation6 + $0x138] sm:$0xff]
    %v2326 = vld [vmem:[#allocation6 + $0x140] sm:$0xff]
    %v2327 = vld [vmem:[#allocation6 + $0x148] sm:$0xff]
    %v2328 = vld [vmem:[#allocation6 + $0x150] sm:$0xff]
    %v2329 = vld [vmem:[#allocation6 + $0x158] sm:$0xff]
    %v2330 = vld [vmem:[#allocation6 + $0x160] sm:$0xff]
    %v2331 = vld [vmem:[#allocation6 + $0x168] sm:$0xff]
    %v2332 = vld [vmem:[#allocation6 + $0x170] sm:$0xff]
    %v2333 = vld [vmem:[#allocation6 + $0x178] sm:$0xff]
    %v2334 = vld [vmem:[#allocation6 + $0x180] sm:$0xff]
    %v2335 = vld [vmem:[#allocation6 + $0x188] sm:$0xff]
    %v2336 = vld [vmem:[#allocation6 + $0x190] sm:$0xff]
    %v2337 = vld [vmem:[#allocation6 + $0x198] sm:$0xff]
    %v2338 = vld [vmem:[#allocation6 + $0x1a0] sm:$0xff]
    %v2339 = vld [vmem:[#allocation6 + $0x1a8] sm:$0xff]
    %v2340 = vld [vmem:[#allocation6 + $0x1b0] sm:$0xff]
    %v2341 = vld [vmem:[#allocation6 + $0x1b8] sm:$0xff]
    %v2342 = vld [vmem:[#allocation6 + $0x1c0] sm:$0xff]
    %v2343 = vld [vmem:[#allocation6 + $0x1c8] sm:$0xff]
    %v2344 = vld [vmem:[#allocation6 + $0x1d0] sm:$0xff]
    %v2345 = vld [vmem:[#allocation6 + $0x1d8] sm:$0xff]
    %v2346 = vld [vmem:[#allocation6 + $0x1e0] sm:$0xff]
    %v2347 = vld [vmem:[#allocation6 + $0x1e8] sm:$0xff]
    %v2348 = vld [vmem:[#allocation6 + $0x1f0] sm:$0xff]
    %v2349 = vld [vmem:[#allocation6 + $0x1f8] sm:$0xff]
    %v2350 = vld [vmem:[#allocation6 + $0x200] sm:$0xff]
    %v2351 = vld [vmem:[#allocation6 + $0x208] sm:$0xff]
    %v2352 = vld [vmem:[#allocation6 + $0x210] sm:$0xff]
    %v2353 = vld [vmem:[#allocation6 + $0x218] sm:$0xff]
    %v2354 = vld [vmem:[#allocation6 + $0x220] sm:$0xff]
    %v2355 = vld [vmem:[#allocation6 + $0x228] sm:$0xff]
    %v2356 = vld [vmem:[#allocation6 + $0x230] sm:$0xff]
    %v2357 = vld [vmem:[#allocation6 + $0x238] sm:$0xff]
    %v2358 = vld [vmem:[#allocation6 + $0x240] sm:$0xff]
    %v2359 = vld [vmem:[#allocation6 + $0x248] sm:$0xff]
    %v2360 = vld [vmem:[#allocation6 + $0x250] sm:$0xff]
    %v2361 = vld [vmem:[#allocation6 + $0x258] sm:$0xff]
    %v2362 = vld [vmem:[#allocation6 + $0x260] sm:$0xff]
    %v2363 = vld [vmem:[#allocation6 + $0x268] sm:$0xff]
    %v2364 = vld [vmem:[#allocation6 + $0x270] sm:$0xff]
    %v2365 = vld [vmem:[#allocation6 + $0x278] sm:$0xff]
    %v2366 = vld [vmem:[#allocation6 + $0x280] sm:$0xff]
    %v2367 = vld [vmem:[#allocation6 + $0x288] sm:$0xff]
    %v2368 = vld [vmem:[#allocation6 + $0x290] sm:$0xff]
    %v2369 = vld [vmem:[#allocation6 + $0x298] sm:$0xff]
    %v2370 = vld [vmem:[#allocation6 + $0x2a0] sm:$0xff]
    %v2371 = vld [vmem:[#allocation6 + $0x2a8] sm:$0xff]
    %v2372 = vld [vmem:[#allocation6 + $0x2b0] sm:$0xff]
    %v2373 = vld [vmem:[#allocation6 + $0x2b8] sm:$0xff]
    %v2374 = vld [vmem:[#allocation6 + $0x2c0] sm:$0xff]
    %v2375 = vld [vmem:[#allocation6 + $0x2c8] sm:$0xff]
    %v2376 = vld [vmem:[#allocation6 + $0x2d0] sm:$0xff]
    %v2377 = vld [vmem:[#allocation6 + $0x2d8] sm:$0xff]
    %v2378 = vld [vmem:[#allocation6 + $0x2e0] sm:$0xff]
    %v2379 = vld [vmem:[#allocation6 + $0x2e8] sm:$0xff]
    %v2380 = vld [vmem:[#allocation6 + $0x2f0] sm:$0xff]
    %v2381 = vld [vmem:[#allocation6 + $0x2f8] sm:$0xff]
    %v2382 = vld [vmem:[#allocation6 + $0x300] sm:$0xff]
    %v2383 = vld [vmem:[#allocation6 + $0x308] sm:$0xff]
    %v2384 = vld [vmem:[#allocation6 + $0x310] sm:$0xff]
    %v2385 = vld [vmem:[#allocation6 + $0x318] sm:$0xff]
    %v2386 = vld [vmem:[#allocation6 + $0x320] sm:$0xff]
    %v2387 = vld [vmem:[#allocation6 + $0x328] sm:$0xff]
    %v2388 = vld [vmem:[#allocation6 + $0x330] sm:$0xff]
    %v2389 = vld [vmem:[#allocation6 + $0x338] sm:$0xff]
    %v2390 = vld [vmem:[#allocation6 + $0x340] sm:$0xff]
    %v2391 = vld [vmem:[#allocation6 + $0x348] sm:$0xff]
    %v2392 = vld [vmem:[#allocation6 + $0x350] sm:$0xff]
    %v2393 = vld [vmem:[#allocation6 + $0x358] sm:$0xff]
    %v2394 = vld [vmem:[#allocation6 + $0x360] sm:$0xff]
    %v2395 = vld [vmem:[#allocation6 + $0x368] sm:$0xff]
    %v2396 = vld [vmem:[#allocation6 + $0x370] sm:$0xff]
    %v2397 = vld [vmem:[#allocation6 + $0x378] sm:$0xff]
    %v2398 = vld [vmem:[#allocation6 + $0x380] sm:$0xff]
    %v2399 = vld [vmem:[#allocation6 + $0x388] sm:$0xff]
    %v2400 = vld [vmem:[#allocation6 + $0x390] sm:$0xff]
    %v2401 = vld [vmem:[#allocation6 + $0x398] sm:$0xff]
    %v2402 = vld [vmem:[#allocation6 + $0x3a0] sm:$0xff]
    %v2403 = vld [vmem:[#allocation6 + $0x3a8] sm:$0xff]
    %v2404 = vld [vmem:[#allocation6 + $0x3b0] sm:$0xff]
    %v2405 = vld [vmem:[#allocation6 + $0x3b8] sm:$0xff]
    %v2406 = vld [vmem:[#allocation6 + $0x3c0] sm:$0xff]
    %v2407 = vld [vmem:[#allocation6 + $0x3c8] sm:$0xff]
    %v2408 = vld [vmem:[#allocation6 + $0x3d0] sm:$0xff]
    %v2409 = vld [vmem:[#allocation6 + $0x3d8] sm:$0xff]
    %v2410 = vld [vmem:[#allocation6 + $0x3e0] sm:$0xff]
    %v2411 = vld [vmem:[#allocation6 + $0x3e8] sm:$0xff]
    %v2412 = vld [vmem:[#allocation6 + $0x3f0] sm:$0xff]
    %v2413 = vld [vmem:[#allocation6 + $0x3f8] sm:$0xff]
    %v2414 = vld [vmem:[#allocation6 + $0x400] sm:$0xff]
    %v2415 = vld [vmem:[#allocation6 + $0x408] sm:$0xff]
    %v2416 = vld [vmem:[#allocation6 + $0x410] sm:$0xff]
    %v2417 = vld [vmem:[#allocation6 + $0x418] sm:$0xff]
    %v2418 = vld [vmem:[#allocation6 + $0x420] sm:$0xff]
    %v2419 = vld [vmem:[#allocation6 + $0x428] sm:$0xff]
    %v2420 = vld [vmem:[#allocation6 + $0x430] sm:$0xff]
    %v2421 = vld [vmem:[#allocation6 + $0x438] sm:$0xff]
    %v2422 = vld [vmem:[#allocation6 + $0x440] sm:$0xff]
    %v2423 = vld [vmem:[#allocation6 + $0x448] sm:$0xff]
    %v2424 = vld [vmem:[#allocation6 + $0x450] sm:$0xff]
    %v2425 = vld [vmem:[#allocation6 + $0x458] sm:$0xff]
    %v2426 = vld [vmem:[#allocation6 + $0x460] sm:$0xff]
    %v2427 = vld [vmem:[#allocation6 + $0x468] sm:$0xff]
    %v2428 = vld [vmem:[#allocation6 + $0x470] sm:$0xff]
    %v2429 = vld [vmem:[#allocation6 + $0x478] sm:$0xff]
    %v2430 = vld [vmem:[#allocation6 + $0x480] sm:$0xff]
    %v2431 = vld [vmem:[#allocation6 + $0x488] sm:$0xff]
    %v2432 = vld [vmem:[#allocation5] sm:$0xff]
    %v2433 = vld [vmem:[#allocation5 + $0x8] sm:$0xff]
    %v2434 = vld [vmem:[#allocation5 + $0x10] sm:$0xff]
    %v2435 = vld [vmem:[#allocation5 + $0x18] sm:$0xff]
    %v2436 = vld [vmem:[#allocation5 + $0x20] sm:$0xff]
    %v2437 = vld [vmem:[#allocation5 + $0x28] sm:$0xff]
    %v2438 = vld [vmem:[#allocation5 + $0x30] sm:$0xff]
    %v2439 = vld [vmem:[#allocation5 + $0x38] sm:$0xff]
    %v2440 = vld [vmem:[#allocation5 + $0x40] sm:$0xff]
    %v2441 = vld [vmem:[#allocation5 + $0x48] sm:$0xff]
    %v2442 = vld [vmem:[#allocation5 + $0x50] sm:$0xff]
    %v2443 = vld [vmem:[#allocation5 + $0x58] sm:$0xff]
    %v2444 = vld [vmem:[#allocation5 + $0x60] sm:$0xff]
    %v2445 = vld [vmem:[#allocation5 + $0x68] sm:$0xff]
    %v2446 = vld [vmem:[#allocation5 + $0x70] sm:$0xff]
    %v2447 = vld [vmem:[#allocation5 + $0x78] sm:$0xff]
    %v2448 = vld [vmem:[#allocation5 + $0x80] sm:$0xff]
    %v2449 = vld [vmem:[#allocation5 + $0x88] sm:$0xff]
    %v2450 = vld [vmem:[#allocation5 + $0x90] sm:$0xff]
    %v2451 = vld [vmem:[#allocation5 + $0x98] sm:$0xff]
    %v2452 = vld [vmem:[#allocation5 + $0xa0] sm:$0xff]
    %v2453 = vld [vmem:[#allocation5 + $0xa8] sm:$0xff]
    %v2454 = vld [vmem:[#allocation5 + $0xb0] sm:$0xff]
    %v2455 = vld [vmem:[#allocation5 + $0xb8] sm:$0xff]
    %v2456 = vld [vmem:[#allocation5 + $0xc0] sm:$0xff]
    %v2457 = vld [vmem:[#allocation5 + $0xc8] sm:$0xff]
    %v2458 = vld [vmem:[#allocation5 + $0xd0] sm:$0xff]
    %v2459 = vld [vmem:[#allocation5 + $0xd8] sm:$0xff]
    %v2460 = vld [vmem:[#allocation5 + $0xe0] sm:$0xff]
    %v2461 = vld [vmem:[#allocation5 + $0xe8] sm:$0xff]
    %v2462 = vld [vmem:[#allocation5 + $0xf0] sm:$0xff]
    %v2463 = vld [vmem:[#allocation5 + $0xf8] sm:$0xff]
    %v2464 = vld [vmem:[#allocation5 + $0x100] sm:$0xff]
    %v2465 = vld [vmem:[#allocation5 + $0x108] sm:$0xff]
    %v2466 = vld [vmem:[#allocation5 + $0x110] sm:$0xff]
    %v2467 = vld [vmem:[#allocation5 + $0x118] sm:$0xff]
    %v2468 = vld [vmem:[#allocation5 + $0x120] sm:$0xff]
    %v2469 = vld [vmem:[#allocation5 + $0x128] sm:$0xff]
    %v2470 = vld [vmem:[#allocation5 + $0x130] sm:$0xff]
    %v2471 = vld [vmem:[#allocation5 + $0x138] sm:$0xff]
    %v2472 = vld [vmem:[#allocation5 + $0x140] sm:$0xff]
    %v2473 = vld [vmem:[#allocation5 + $0x148] sm:$0xff]
    %v2474 = vld [vmem:[#allocation5 + $0x150] sm:$0xff]
    %v2475 = vld [vmem:[#allocation5 + $0x158] sm:$0xff]
    %v2476 = vld [vmem:[#allocation5 + $0x160] sm:$0xff]
    %v2477 = vld [vmem:[#allocation5 + $0x168] sm:$0xff]
    %v2478 = vld [vmem:[#allocation5 + $0x170] sm:$0xff]
    %v2479 = vld [vmem:[#allocation5 + $0x178] sm:$0xff]
    %v2480 = vld [vmem:[#allocation5 + $0x180] sm:$0xff]
    %v2481 = vld [vmem:[#allocation5 + $0x188] sm:$0xff]
    %v2482 = vld [vmem:[#allocation5 + $0x190] sm:$0xff]
    %v2483 = vld [vmem:[#allocation5 + $0x198] sm:$0xff]
    %v2484 = vld [vmem:[#allocation5 + $0x1a0] sm:$0xff]
    %v2485 = vld [vmem:[#allocation5 + $0x1a8] sm:$0xff]
    %v2486 = vld [vmem:[#allocation5 + $0x1b0] sm:$0xff]
    %v2487 = vld [vmem:[#allocation5 + $0x1b8] sm:$0xff]
    %v2488 = vld [vmem:[#allocation5 + $0x1c0] sm:$0xff]
    %v2489 = vld [vmem:[#allocation5 + $0x1c8] sm:$0xff]
    %v2490 = vld [vmem:[#allocation5 + $0x1d0] sm:$0xff]
    %v2491 = vld [vmem:[#allocation5 + $0x1d8] sm:$0xff]
    %v2492 = vld [vmem:[#allocation5 + $0x1e0] sm:$0xff]
    %v2493 = vld [vmem:[#allocation5 + $0x1e8] sm:$0xff]
    %v2494 = vld [vmem:[#allocation5 + $0x1f0] sm:$0xff]
    %v2495 = vld [vmem:[#allocation5 + $0x1f8] sm:$0xff]
    %v2496 = vld [vmem:[#allocation5 + $0x200] sm:$0xff]
    %v2497 = vld [vmem:[#allocation5 + $0x208] sm:$0xff]
    %v2498 = vld [vmem:[#allocation5 + $0x210] sm:$0xff]
    %v2499 = vld [vmem:[#allocation5 + $0x218] sm:$0xff]
    %v2500 = vld [vmem:[#allocation5 + $0x220] sm:$0xff]
    %v2501 = vld [vmem:[#allocation5 + $0x228] sm:$0xff]
    %v2502 = vld [vmem:[#allocation5 + $0x230] sm:$0xff]
    %v2503 = vld [vmem:[#allocation5 + $0x238] sm:$0xff]
    %v2504 = vld [vmem:[#allocation5 + $0x240] sm:$0xff]
    %v2505 = vld [vmem:[#allocation5 + $0x248] sm:$0xff]
    %v2506 = vld [vmem:[#allocation5 + $0x250] sm:$0xff]
    %v2507 = vld [vmem:[#allocation5 + $0x258] sm:$0xff]
    %v2508 = vld [vmem:[#allocation5 + $0x260] sm:$0xff]
    %v2509 = vld [vmem:[#allocation5 + $0x268] sm:$0xff]
    %v2510 = vld [vmem:[#allocation5 + $0x270] sm:$0xff]
    %v2511 = vld [vmem:[#allocation5 + $0x278] sm:$0xff]
    %v2512 = vld [vmem:[#allocation5 + $0x280] sm:$0xff]
    %v2513 = vld [vmem:[#allocation5 + $0x288] sm:$0xff]
    %v2514 = vld [vmem:[#allocation5 + $0x290] sm:$0xff]
    %v2515 = vld [vmem:[#allocation5 + $0x298] sm:$0xff]
    %v2516 = vld [vmem:[#allocation5 + $0x2a0] sm:$0xff]
    %v2517 = vld [vmem:[#allocation5 + $0x2a8] sm:$0xff]
    %v2518 = vld [vmem:[#allocation5 + $0x2b0] sm:$0xff]
    %v2519 = vld [vmem:[#allocation5 + $0x2b8] sm:$0xff]
    %v2520 = vld [vmem:[#allocation5 + $0x2c0] sm:$0xff]
    %v2521 = vld [vmem:[#allocation5 + $0x2c8] sm:$0xff]
    %v2522 = vld [vmem:[#allocation5 + $0x2d0] sm:$0xff]
    %v2523 = vld [vmem:[#allocation5 + $0x2d8] sm:$0xff]
    %v2524 = vld [vmem:[#allocation5 + $0x2e0] sm:$0xff]
    %v2525 = vld [vmem:[#allocation5 + $0x2e8] sm:$0xff]
    %v2526 = vld [vmem:[#allocation5 + $0x2f0] sm:$0xff]
    %v2527 = vld [vmem:[#allocation5 + $0x2f8] sm:$0xff]
    %v2528 = vld [vmem:[#allocation5 + $0x300] sm:$0xff]
    %v2529 = vld [vmem:[#allocation5 + $0x308] sm:$0xff]
    %v2530 = vld [vmem:[#allocation5 + $0x310] sm:$0xff]
    %v2531 = vld [vmem:[#allocation5 + $0x318] sm:$0xff]
    %v2532 = vld [vmem:[#allocation5 + $0x320] sm:$0xff]
    %v2533 = vld [vmem:[#allocation5 + $0x328] sm:$0xff]
    %v2534 = vld [vmem:[#allocation5 + $0x330] sm:$0xff]
    %v2535 = vld [vmem:[#allocation5 + $0x338] sm:$0xff]
    %v2536 = vld [vmem:[#allocation5 + $0x340] sm:$0xff]
    %v2537 = vld [vmem:[#allocation5 + $0x348] sm:$0xff]
    %v2538 = vld [vmem:[#allocation5 + $0x350] sm:$0xff]
    %v2539 = vld [vmem:[#allocation5 + $0x358] sm:$0xff]
    %v2540 = vld [vmem:[#allocation5 + $0x360] sm:$0xff]
    %v2541 = vld [vmem:[#allocation5 + $0x368] sm:$0xff]
    %v2542 = vld [vmem:[#allocation5 + $0x370] sm:$0xff]
    %v2543 = vld [vmem:[#allocation5 + $0x378] sm:$0xff]
    %v2544 = vld [vmem:[#allocation5 + $0x380] sm:$0xff]
    %v2545 = vld [vmem:[#allocation5 + $0x388] sm:$0xff]
    %v2546 = vld [vmem:[#allocation5 + $0x390] sm:$0xff]
    %v2547 = vld [vmem:[#allocation5 + $0x398] sm:$0xff]
    %v2548 = vld [vmem:[#allocation5 + $0x3a0] sm:$0xff]
    %v2549 = vld [vmem:[#allocation5 + $0x3a8] sm:$0xff]
    %v2550 = vld [vmem:[#allocation5 + $0x3b0] sm:$0xff]
    %v2551 = vld [vmem:[#allocation5 + $0x3b8] sm:$0xff]
    %v2552 = vld [vmem:[#allocation5 + $0x3c0] sm:$0xff]
    %v2553 = vld [vmem:[#allocation5 + $0x3c8] sm:$0xff]
    %v2554 = vld [vmem:[#allocation5 + $0x3d0] sm:$0xff]
    %v2555 = vld [vmem:[#allocation5 + $0x3d8] sm:$0xff]
    %v2556 = vld [vmem:[#allocation5 + $0x3e0] sm:$0xff]
    %v2557 = vld [vmem:[#allocation5 + $0x3e8] sm:$0xff]
    %v2558 = vld [vmem:[#allocation5 + $0x3f0] sm:$0xff]
    %v2559 = vld [vmem:[#allocation5 + $0x3f8] sm:$0xff]
    %v2560 = vld [vmem:[#allocation5 + $0x400] sm:$0xff]
    %v2561 = vld [vmem:[#allocation5 + $0x408] sm:$0xff]
    %v2562 = vld [vmem:[#allocation5 + $0x410] sm:$0xff]
    %v2563 = vld [vmem:[#allocation5 + $0x418] sm:$0xff]
    %v2564 = vld [vmem:[#allocation5 + $0x420] sm:$0xff]
    %v2565 = vld [vmem:[#allocation5 + $0x428] sm:$0xff]
    %v2566 = vld [vmem:[#allocation5 + $0x430] sm:$0xff]
    %v2567 = vld [vmem:[#allocation5 + $0x438] sm:$0xff]
    %v2568 = vld [vmem:[#allocation5 + $0x440] sm:$0xff]
    %v2569 = vld [vmem:[#allocation5 + $0x448] sm:$0xff]
    %v2570 = vld [vmem:[#allocation5 + $0x450] sm:$0xff]
    %v2571 = vld [vmem:[#allocation5 + $0x458] sm:$0xff]
    %v2572 = vld [vmem:[#allocation5 + $0x460] sm:$0xff]
    %v2573 = vld [vmem:[#allocation5 + $0x468] sm:$0xff]
    %v2574 = vld [vmem:[#allocation5 + $0x470] sm:$0xff]
    %v2575 = vld [vmem:[#allocation5 + $0x478] sm:$0xff]
    %v2576 = vld [vmem:[#allocation5 + $0x480] sm:$0xff]
    %v2577 = vld [vmem:[#allocation5 + $0x488] sm:$0xff]
    %v2578 = vld [vmem:[#allocation5 + $0x490] sm:$0xff]
    %v2579 = vld [vmem:[#allocation5 + $0x498] sm:$0xff]
    %v2580 = vld [vmem:[#allocation5 + $0x4a0] sm:$0xff]
    %v2581 = vld [vmem:[#allocation5 + $0x4a8] sm:$0xff]
    %v2582 = vld [vmem:[#allocation5 + $0x4b0] sm:$0xff]
    %v2583 = vld [vmem:[#allocation5 + $0x4b8] sm:$0xff]
    %v2584 = vld [vmem:[#allocation5 + $0x4c0] sm:$0xff]
    %v2585 = vld [vmem:[#allocation5 + $0x4c8] sm:$0xff]
    %v2586 = vld [vmem:[#allocation5 + $0x4d0] sm:$0xff]
    %v2587 = vld [vmem:[#allocation5 + $0x4d8] sm:$0xff]
    %v2588 = vld [vmem:[#allocation5 + $0x4e0] sm:$0xff]
    %v2589 = vld [vmem:[#allocation5 + $0x4e8] sm:$0xff]
    %v2590 = vld [vmem:[#allocation5 + $0x4f0] sm:$0xff]
    %v2591 = vld [vmem:[#allocation5 + $0x4f8] sm:$0xff]
    %v2592 = vld [vmem:[#allocation5 + $0x500] sm:$0xff]
    %v2593 = vld [vmem:[#allocation5 + $0x508] sm:$0xff]
    %v2594 = vld [vmem:[#allocation5 + $0x510] sm:$0xff]
    %v2595 = vld [vmem:[#allocation5 + $0x518] sm:$0xff]
    %v2596 = vld [vmem:[#allocation5 + $0x520] sm:$0xff]
    %v2597 = vld [vmem:[#allocation5 + $0x528] sm:$0xff]
    %v2598 = vld [vmem:[#allocation5 + $0x530] sm:$0xff]
    %v2599 = vld [vmem:[#allocation5 + $0x538] sm:$0xff]
    %v2600 = vld [vmem:[#allocation5 + $0x540] sm:$0xff]
    %v2601 = vld [vmem:[#allocation5 + $0x548] sm:$0xff]
    %v2602 = vld [vmem:[#allocation5 + $0x550] sm:$0xff]
    %v2603 = vld [vmem:[#allocation5 + $0x558] sm:$0xff]
    %v2604 = vld [vmem:[#allocation5 + $0x560] sm:$0xff]
    %v2605 = vld [vmem:[#allocation5 + $0x568] sm:$0xff]
    %v2606 = vld [vmem:[#allocation5 + $0x570] sm:$0xff]
    %v2607 = vld [vmem:[#allocation5 + $0x578] sm:$0xff]
    %v2608 = vld [vmem:[#allocation5 + $0x580] sm:$0xff]
    %v2609 = vld [vmem:[#allocation5 + $0x588] sm:$0xff]
    %v2610 = vld [vmem:[#allocation5 + $0x590] sm:$0xff]
    %v2611 = vld [vmem:[#allocation5 + $0x598] sm:$0xff]
    %v2612 = vperm.slane %v48, 1
    %2613 = vmatpush.msra.mxu0 %v2303
    %2614 = vmatpush.msra.mxu0 %v2302
    %2615 = vmatpush.msra.mxu0 %v2301
    %2616 = vmatpush.msra.mxu0 %v2300
    %2617 = vmatpush.msra.mxu0 %v2299
    %2618 = vmatpush.msra.mxu0 %v2298
    %2619 = vmatpush.msra.mxu0 %v2297
    %2620 = vmatpush.msra.mxu0 %v2296
    %2621 = vmatpush.msra.mxu0 %v2295
    %2622 = vmatpush.msra.mxu0 %v2294
    %2623 = vmatpush.msra.mxu0 %v2293
    %2624 = vmatpush.msra.mxu0 %v2292
    %2625 = vmatpush.msra.mxu0 %v2291
    %2626 = vmatpush.msra.mxu0 %v2290
    %2627 = vmatpush.msra.mxu0 %v2289
    %2628 = vmatpush.msra.mxu0 %v2288
    %2629 = vmatmul.f32.gmra.mxu0 %v2432
    %v2630 = vpop.f32.mrf.mxu0
    %v2631 = vadd.f32 %v2612, %v2630
    %2632 = vmatmul.f32.gmra.mxu0 %v2441
    %v2633 = vpop.f32.mrf.mxu0
    %v2634 = vadd.f32 %v2612, %v2633
    %2635 = vmatmul.f32.gmra.mxu0 %v2450
    %v2636 = vpop.f32.mrf.mxu0
    %v2637 = vadd.f32 %v2612, %v2636
    %2638 = vmatmul.f32.gmra.mxu0 %v2459
    %v2639 = vpop.f32.mrf.mxu0
    %v2640 = vadd.f32 %v2612, %v2639
    %2641 = vmatmul.f32.gmra.mxu0 %v2468
    %v2642 = vpop.f32.mrf.mxu0
    %v2643 = vadd.f32 %v2612, %v2642
    %2644 = vmatmul.f32.gmra.mxu0 %v2477
    %v2645 = vpop.f32.mrf.mxu0
    %v2646 = vadd.f32 %v2612, %v2645
    %2647 = vmatmul.f32.gmra.mxu0 %v2486
    %v2648 = vpop.f32.mrf.mxu0
    %v2649 = vadd.f32 %v2612, %v2648
    %2650 = vmatmul.f32.gmra.mxu0 %v2495
    %v2651 = vpop.f32.mrf.mxu0
    %v2652 = vadd.f32 %v2612, %v2651
    %2653 = vmatmul.f32.gmra.mxu0 %v2504
    %v2654 = vpop.f32.mrf.mxu0
    %v2655 = vadd.f32 %v2612, %v2654
    %2656 = vmatmul.f32.gmra.mxu0 %v2513
    %v2657 = vpop.f32.mrf.mxu0
    %v2658 = vadd.f32 %v2612, %v2657
    %2659 = vmatmul.f32.gmra.mxu0 %v2522
    %v2660 = vpop.f32.mrf.mxu0
    %v2661 = vadd.f32 %v2612, %v2660
    %2662 = vmatmul.f32.gmra.mxu0 %v2531
    %v2663 = vpop.f32.mrf.mxu0
    %v2664 = vadd.f32 %v2612, %v2663
    %2665 = vmatmul.f32.gmra.mxu0 %v2540
    %v2666 = vpop.f32.mrf.mxu0
    %v2667 = vadd.f32 %v2612, %v2666
    %2668 = vmatmul.f32.gmra.mxu0 %v2549
    %v2669 = vpop.f32.mrf.mxu0
    %v2670 = vadd.f32 %v2612, %v2669
    %2671 = vmatmul.f32.gmra.mxu0 %v2558
    %v2672 = vpop.f32.mrf.mxu0
    %v2673 = vadd.f32 %v2612, %v2672
    %2674 = vmatmul.f32.gmra.mxu0 %v2567
    %v2675 = vpop.f32.mrf.mxu0
    %v2676 = vadd.f32 %v2612, %v2675
    %2677 = vmatmul.f32.gmra.mxu0 %v2576
    %v2678 = vpop.f32.mrf.mxu0
    %v2679 = vadd.f32 %v2612, %v2678
    %2680 = vmatmul.f32.gmra.mxu0 %v2585
    %v2681 = vpop.f32.mrf.mxu0
    %v2682 = vadd.f32 %v2612, %v2681
    %2683 = vmatmul.f32.gmra.mxu0 %v2594
    %v2684 = vpop.f32.mrf.mxu0
    %v2685 = vadd.f32 %v2612, %v2684
    %2686 = vmatmul.f32.gmra.mxu0 %v2603
    %v2687 = vpop.f32.mrf.mxu0
    %v2688 = vadd.f32 %v2612, %v2687
    %2689 = vdwg.mxu0
    %2690 = vmatpush.msra.mxu0 %v2319
    %2691 = vmatpush.msra.mxu0 %v2318
    %2692 = vmatpush.msra.mxu0 %v2317
    %2693 = vmatpush.msra.mxu0 %v2316
    %2694 = vmatpush.msra.mxu0 %v2315
    %2695 = vmatpush.msra.mxu0 %v2314
    %2696 = vmatpush.msra.mxu0 %v2313
    %2697 = vmatpush.msra.mxu0 %v2312
    %2698 = vmatpush.msra.mxu0 %v2311
    %2699 = vmatpush.msra.mxu0 %v2310
    %2700 = vmatpush.msra.mxu0 %v2309
    %2701 = vmatpush.msra.mxu0 %v2308
    %2702 = vmatpush.msra.mxu0 %v2307
    %2703 = vmatpush.msra.mxu0 %v2306
    %2704 = vmatpush.msra.mxu0 %v2305
    %2705 = vmatpush.msra.mxu0 %v2304
    %2706 = vmatmul.f32.gmra.mxu0 %v2433
    %v2707 = vpop.f32.mrf.mxu0
    %v2708 = vadd.f32 %v2631, %v2707
    %2709 = vmatmul.f32.gmra.mxu0 %v2442
    %v2710 = vpop.f32.mrf.mxu0
    %v2711 = vadd.f32 %v2634, %v2710
    %2712 = vmatmul.f32.gmra.mxu0 %v2451
    %v2713 = vpop.f32.mrf.mxu0
    %v2714 = vadd.f32 %v2637, %v2713
    %2715 = vmatmul.f32.gmra.mxu0 %v2460
    %v2716 = vpop.f32.mrf.mxu0
    %v2717 = vadd.f32 %v2640, %v2716
    %2718 = vmatmul.f32.gmra.mxu0 %v2469
    %v2719 = vpop.f32.mrf.mxu0
    %v2720 = vadd.f32 %v2643, %v2719
    %2721 = vmatmul.f32.gmra.mxu0 %v2478
    %v2722 = vpop.f32.mrf.mxu0
    %v2723 = vadd.f32 %v2646, %v2722
    %2724 = vmatmul.f32.gmra.mxu0 %v2487
    %v2725 = vpop.f32.mrf.mxu0
    %v2726 = vadd.f32 %v2649, %v2725
    %2727 = vmatmul.f32.gmra.mxu0 %v2496
    %v2728 = vpop.f32.mrf.mxu0
    %v2729 = vadd.f32 %v2652, %v2728
    %2730 = vmatmul.f32.gmra.mxu0 %v2505
    %v2731 = vpop.f32.mrf.mxu0
    %v2732 = vadd.f32 %v2655, %v2731
    %2733 = vmatmul.f32.gmra.mxu0 %v2514
    %v2734 = vpop.f32.mrf.mxu0
    %v2735 = vadd.f32 %v2658, %v2734
    %2736 = vmatmul.f32.gmra.mxu0 %v2523
    %v2737 = vpop.f32.mrf.mxu0
    %v2738 = vadd.f32 %v2661, %v2737
    %2739 = vmatmul.f32.gmra.mxu0 %v2532
    %v2740 = vpop.f32.mrf.mxu0
    %v2741 = vadd.f32 %v2664, %v2740
    %2742 = vmatmul.f32.gmra.mxu0 %v2541
    %v2743 = vpop.f32.mrf.mxu0
    %v2744 = vadd.f32 %v2667, %v2743
    %2745 = vmatmul.f32.gmra.mxu0 %v2550
    %v2746 = vpop.f32.mrf.mxu0
    %v2747 = vadd.f32 %v2670, %v2746
    %2748 = vmatmul.f32.gmra.mxu0 %v2559
    %v2749 = vpop.f32.mrf.mxu0
    %v2750 = vadd.f32 %v2673, %v2749
    %2751 = vmatmul.f32.gmra.mxu0 %v2568
    %v2752 = vpop.f32.mrf.mxu0
    %v2753 = vadd.f32 %v2676, %v2752
    %2754 = vmatmul.f32.gmra.mxu0 %v2577
    %v2755 = vpop.f32.mrf.mxu0
    %v2756 = vadd.f32 %v2679, %v2755
    %2757 = vmatmul.f32.gmra.mxu0 %v2586
    %v2758 = vpop.f32.mrf.mxu0
    %v2759 = vadd.f32 %v2682, %v2758
    %2760 = vmatmul.f32.gmra.mxu0 %v2595
    %v2761 = vpop.f32.mrf.mxu0
    %v2762 = vadd.f32 %v2685, %v2761
    %2763 = vmatmul.f32.gmra.mxu0 %v2604
    %v2764 = vpop.f32.mrf.mxu0
    %v2765 = vadd.f32 %v2688, %v2764
    %2766 = vdwg.mxu0
    %2767 = vmatpush.msra.mxu0 %v2335
    %2768 = vmatpush.msra.mxu0 %v2334
    %2769 = vmatpush.msra.mxu0 %v2333
    %2770 = vmatpush.msra.mxu0 %v2332
    %2771 = vmatpush.msra.mxu0 %v2331
    %2772 = vmatpush.msra.mxu0 %v2330
    %2773 = vmatpush.msra.mxu0 %v2329
    %2774 = vmatpush.msra.mxu0 %v2328
    %2775 = vmatpush.msra.mxu0 %v2327
    %2776 = vmatpush.msra.mxu0 %v2326
    %2777 = vmatpush.msra.mxu0 %v2325
    %2778 = vmatpush.msra.mxu0 %v2324
    %2779 = vmatpush.msra.mxu0 %v2323
    %2780 = vmatpush.msra.mxu0 %v2322
    %2781 = vmatpush.msra.mxu0 %v2321
    %2782 = vmatpush.msra.mxu0 %v2320
    %2783 = vmatmul.f32.gmra.mxu0 %v2434
    %v2784 = vpop.f32.mrf.mxu0
    %v2785 = vadd.f32 %v2708, %v2784
    %2786 = vmatmul.f32.gmra.mxu0 %v2443
    %v2787 = vpop.f32.mrf.mxu0
    %v2788 = vadd.f32 %v2711, %v2787
    %2789 = vmatmul.f32.gmra.mxu0 %v2452
    %v2790 = vpop.f32.mrf.mxu0
    %v2791 = vadd.f32 %v2714, %v2790
    %2792 = vmatmul.f32.gmra.mxu0 %v2461
    %v2793 = vpop.f32.mrf.mxu0
    %v2794 = vadd.f32 %v2717, %v2793
    %2795 = vmatmul.f32.gmra.mxu0 %v2470
    %v2796 = vpop.f32.mrf.mxu0
    %v2797 = vadd.f32 %v2720, %v2796
    %2798 = vmatmul.f32.gmra.mxu0 %v2479
    %v2799 = vpop.f32.mrf.mxu0
    %v2800 = vadd.f32 %v2723, %v2799
    %2801 = vmatmul.f32.gmra.mxu0 %v2488
    %v2802 = vpop.f32.mrf.mxu0
    %v2803 = vadd.f32 %v2726, %v2802
    %2804 = vmatmul.f32.gmra.mxu0 %v2497
    %v2805 = vpop.f32.mrf.mxu0
    %v2806 = vadd.f32 %v2729, %v2805
    %2807 = vmatmul.f32.gmra.mxu0 %v2506
    %v2808 = vpop.f32.mrf.mxu0
    %v2809 = vadd.f32 %v2732, %v2808
    %2810 = vmatmul.f32.gmra.mxu0 %v2515
    %v2811 = vpop.f32.mrf.mxu0
    %v2812 = vadd.f32 %v2735, %v2811
    %2813 = vmatmul.f32.gmra.mxu0 %v2524
    %v2814 = vpop.f32.mrf.mxu0
    %v2815 = vadd.f32 %v2738, %v2814
    %2816 = vmatmul.f32.gmra.mxu0 %v2533
    %v2817 = vpop.f32.mrf.mxu0
    %v2818 = vadd.f32 %v2741, %v2817
    %2819 = vmatmul.f32.gmra.mxu0 %v2542
    %v2820 = vpop.f32.mrf.mxu0
    %v2821 = vadd.f32 %v2744, %v2820
    %2822 = vmatmul.f32.gmra.mxu0 %v2551
    %v2823 = vpop.f32.mrf.mxu0
    %v2824 = vadd.f32 %v2747, %v2823
    %2825 = vmatmul.f32.gmra.mxu0 %v2560
    %v2826 = vpop.f32.mrf.mxu0
    %v2827 = vadd.f32 %v2750, %v2826
    %2828 = vmatmul.f32.gmra.mxu0 %v2569
    %v2829 = vpop.f32.mrf.mxu0
    %v2830 = vadd.f32 %v2753, %v2829
    %2831 = vmatmul.f32.gmra.mxu0 %v2578
    %v2832 = vpop.f32.mrf.mxu0
    %v2833 = vadd.f32 %v2756, %v2832
    %2834 = vmatmul.f32.gmra.mxu0 %v2587
    %v2835 = vpop.f32.mrf.mxu0
    %v2836 = vadd.f32 %v2759, %v2835
    %2837 = vmatmul.f32.gmra.mxu0 %v2596
    %v2838 = vpop.f32.mrf.mxu0
    %v2839 = vadd.f32 %v2762, %v2838
    %2840 = vmatmul.f32.gmra.mxu0 %v2605
    %v2841 = vpop.f32.mrf.mxu0
    %v2842 = vadd.f32 %v2765, %v2841
    %2843 = vdwg.mxu0
    %2844 = vmatpush.msra.mxu0 %v2351
    %2845 = vmatpush.msra.mxu0 %v2350
    %2846 = vmatpush.msra.mxu0 %v2349
    %2847 = vmatpush.msra.mxu0 %v2348
    %2848 = vmatpush.msra.mxu0 %v2347
    %2849 = vmatpush.msra.mxu0 %v2346
    %2850 = vmatpush.msra.mxu0 %v2345
    %2851 = vmatpush.msra.mxu0 %v2344
    %2852 = vmatpush.msra.mxu0 %v2343
    %2853 = vmatpush.msra.mxu0 %v2342
    %2854 = vmatpush.msra.mxu0 %v2341
    %2855 = vmatpush.msra.mxu0 %v2340
    %2856 = vmatpush.msra.mxu0 %v2339
    %2857 = vmatpush.msra.mxu0 %v2338
    %2858 = vmatpush.msra.mxu0 %v2337
    %2859 = vmatpush.msra.mxu0 %v2336
    %2860 = vmatmul.f32.gmra.mxu0 %v2435
    %v2861 = vpop.f32.mrf.mxu0
    %v2862 = vadd.f32 %v2785, %v2861
    %2863 = vmatmul.f32.gmra.mxu0 %v2444
    %v2864 = vpop.f32.mrf.mxu0
    %v2865 = vadd.f32 %v2788, %v2864
    %2866 = vmatmul.f32.gmra.mxu0 %v2453
    %v2867 = vpop.f32.mrf.mxu0
    %v2868 = vadd.f32 %v2791, %v2867
    %2869 = vmatmul.f32.gmra.mxu0 %v2462
    %v2870 = vpop.f32.mrf.mxu0
    %v2871 = vadd.f32 %v2794, %v2870
    %2872 = vmatmul.f32.gmra.mxu0 %v2471
    %v2873 = vpop.f32.mrf.mxu0
    %v2874 = vadd.f32 %v2797, %v2873
    %2875 = vmatmul.f32.gmra.mxu0 %v2480
    %v2876 = vpop.f32.mrf.mxu0
    %v2877 = vadd.f32 %v2800, %v2876
    %2878 = vmatmul.f32.gmra.mxu0 %v2489
    %v2879 = vpop.f32.mrf.mxu0
    %v2880 = vadd.f32 %v2803, %v2879
    %2881 = vmatmul.f32.gmra.mxu0 %v2498
    %v2882 = vpop.f32.mrf.mxu0
    %v2883 = vadd.f32 %v2806, %v2882
    %2884 = vmatmul.f32.gmra.mxu0 %v2507
    %v2885 = vpop.f32.mrf.mxu0
    %v2886 = vadd.f32 %v2809, %v2885
    %2887 = vmatmul.f32.gmra.mxu0 %v2516
    %v2888 = vpop.f32.mrf.mxu0
    %v2889 = vadd.f32 %v2812, %v2888
    %2890 = vmatmul.f32.gmra.mxu0 %v2525
    %v2891 = vpop.f32.mrf.mxu0
    %v2892 = vadd.f32 %v2815, %v2891
    %2893 = vmatmul.f32.gmra.mxu0 %v2534
    %v2894 = vpop.f32.mrf.mxu0
    %v2895 = vadd.f32 %v2818, %v2894
    %2896 = vmatmul.f32.gmra.mxu0 %v2543
    %v2897 = vpop.f32.mrf.mxu0
    %v2898 = vadd.f32 %v2821, %v2897
    %2899 = vmatmul.f32.gmra.mxu0 %v2552
    %v2900 = vpop.f32.mrf.mxu0
    %v2901 = vadd.f32 %v2824, %v2900
    %2902 = vmatmul.f32.gmra.mxu0 %v2561
    %v2903 = vpop.f32.mrf.mxu0
    %v2904 = vadd.f32 %v2827, %v2903
    %2905 = vmatmul.f32.gmra.mxu0 %v2570
    %v2906 = vpop.f32.mrf.mxu0
    %v2907 = vadd.f32 %v2830, %v2906
    %2908 = vmatmul.f32.gmra.mxu0 %v2579
    %v2909 = vpop.f32.mrf.mxu0
    %v2910 = vadd.f32 %v2833, %v2909
    %2911 = vmatmul.f32.gmra.mxu0 %v2588
    %v2912 = vpop.f32.mrf.mxu0
    %v2913 = vadd.f32 %v2836, %v2912
    %2914 = vmatmul.f32.gmra.mxu0 %v2597
    %v2915 = vpop.f32.mrf.mxu0
    %v2916 = vadd.f32 %v2839, %v2915
    %2917 = vmatmul.f32.gmra.mxu0 %v2606
    %v2918 = vpop.f32.mrf.mxu0
    %v2919 = vadd.f32 %v2842, %v2918
    %2920 = vdwg.mxu0
    %2921 = vmatpush.msra.mxu0 %v2367
    %2922 = vmatpush.msra.mxu0 %v2366
    %2923 = vmatpush.msra.mxu0 %v2365
    %2924 = vmatpush.msra.mxu0 %v2364
    %2925 = vmatpush.msra.mxu0 %v2363
    %2926 = vmatpush.msra.mxu0 %v2362
    %2927 = vmatpush.msra.mxu0 %v2361
    %2928 = vmatpush.msra.mxu0 %v2360
    %2929 = vmatpush.msra.mxu0 %v2359
    %2930 = vmatpush.msra.mxu0 %v2358
    %2931 = vmatpush.msra.mxu0 %v2357
    %2932 = vmatpush.msra.mxu0 %v2356
    %2933 = vmatpush.msra.mxu0 %v2355
    %2934 = vmatpush.msra.mxu0 %v2354
    %2935 = vmatpush.msra.mxu0 %v2353
    %2936 = vmatpush.msra.mxu0 %v2352
    %2937 = vmatmul.f32.gmra.mxu0 %v2436
    %v2938 = vpop.f32.mrf.mxu0
    %v2939 = vadd.f32 %v2862, %v2938
    %2940 = vmatmul.f32.gmra.mxu0 %v2445
    %v2941 = vpop.f32.mrf.mxu0
    %v2942 = vadd.f32 %v2865, %v2941
    %2943 = vmatmul.f32.gmra.mxu0 %v2454
    %v2944 = vpop.f32.mrf.mxu0
    %v2945 = vadd.f32 %v2868, %v2944
    %2946 = vmatmul.f32.gmra.mxu0 %v2463
    %v2947 = vpop.f32.mrf.mxu0
    %v2948 = vadd.f32 %v2871, %v2947
    %2949 = vmatmul.f32.gmra.mxu0 %v2472
    %v2950 = vpop.f32.mrf.mxu0
    %v2951 = vadd.f32 %v2874, %v2950
    %2952 = vmatmul.f32.gmra.mxu0 %v2481
    %v2953 = vpop.f32.mrf.mxu0
    %v2954 = vadd.f32 %v2877, %v2953
    %2955 = vmatmul.f32.gmra.mxu0 %v2490
    %v2956 = vpop.f32.mrf.mxu0
    %v2957 = vadd.f32 %v2880, %v2956
    %2958 = vmatmul.f32.gmra.mxu0 %v2499
    %v2959 = vpop.f32.mrf.mxu0
    %v2960 = vadd.f32 %v2883, %v2959
    %2961 = vmatmul.f32.gmra.mxu0 %v2508
    %v2962 = vpop.f32.mrf.mxu0
    %v2963 = vadd.f32 %v2886, %v2962
    %2964 = vmatmul.f32.gmra.mxu0 %v2517
    %v2965 = vpop.f32.mrf.mxu0
    %v2966 = vadd.f32 %v2889, %v2965
    %2967 = vmatmul.f32.gmra.mxu0 %v2526
    %v2968 = vpop.f32.mrf.mxu0
    %v2969 = vadd.f32 %v2892, %v2968
    %2970 = vmatmul.f32.gmra.mxu0 %v2535
    %v2971 = vpop.f32.mrf.mxu0
    %v2972 = vadd.f32 %v2895, %v2971
    %2973 = vmatmul.f32.gmra.mxu0 %v2544
    %v2974 = vpop.f32.mrf.mxu0
    %v2975 = vadd.f32 %v2898, %v2974
    %2976 = vmatmul.f32.gmra.mxu0 %v2553
    %v2977 = vpop.f32.mrf.mxu0
    %v2978 = vadd.f32 %v2901, %v2977
    %2979 = vmatmul.f32.gmra.mxu0 %v2562
    %v2980 = vpop.f32.mrf.mxu0
    %v2981 = vadd.f32 %v2904, %v2980
    %2982 = vmatmul.f32.gmra.mxu0 %v2571
    %v2983 = vpop.f32.mrf.mxu0
    %v2984 = vadd.f32 %v2907, %v2983
    %2985 = vmatmul.f32.gmra.mxu0 %v2580
    %v2986 = vpop.f32.mrf.mxu0
    %v2987 = vadd.f32 %v2910, %v2986
    %2988 = vmatmul.f32.gmra.mxu0 %v2589
    %v2989 = vpop.f32.mrf.mxu0
    %v2990 = vadd.f32 %v2913, %v2989
    %2991 = vmatmul.f32.gmra.mxu0 %v2598
    %v2992 = vpop.f32.mrf.mxu0
    %v2993 = vadd.f32 %v2916, %v2992
    %2994 = vmatmul.f32.gmra.mxu0 %v2607
    %v2995 = vpop.f32.mrf.mxu0
    %v2996 = vadd.f32 %v2919, %v2995
    %2997 = vdwg.mxu0
    %2998 = vmatpush.msra.mxu0 %v2383
    %2999 = vmatpush.msra.mxu0 %v2382
    %3000 = vmatpush.msra.mxu0 %v2381
    %3001 = vmatpush.msra.mxu0 %v2380
    %3002 = vmatpush.msra.mxu0 %v2379
    %3003 = vmatpush.msra.mxu0 %v2378
    %3004 = vmatpush.msra.mxu0 %v2377
    %3005 = vmatpush.msra.mxu0 %v2376
    %3006 = vmatpush.msra.mxu0 %v2375
    %3007 = vmatpush.msra.mxu0 %v2374
    %3008 = vmatpush.msra.mxu0 %v2373
    %3009 = vmatpush.msra.mxu0 %v2372
    %3010 = vmatpush.msra.mxu0 %v2371
    %3011 = vmatpush.msra.mxu0 %v2370
    %3012 = vmatpush.msra.mxu0 %v2369
    %3013 = vmatpush.msra.mxu0 %v2368
    %3014 = vmatmul.f32.gmra.mxu0 %v2437
    %v3015 = vpop.f32.mrf.mxu0
    %v3016 = vadd.f32 %v2939, %v3015
    %3017 = vmatmul.f32.gmra.mxu0 %v2446
    %v3018 = vpop.f32.mrf.mxu0
    %v3019 = vadd.f32 %v2942, %v3018
    %3020 = vmatmul.f32.gmra.mxu0 %v2455
    %v3021 = vpop.f32.mrf.mxu0
    %v3022 = vadd.f32 %v2945, %v3021
    %3023 = vmatmul.f32.gmra.mxu0 %v2464
    %v3024 = vpop.f32.mrf.mxu0
    %v3025 = vadd.f32 %v2948, %v3024
    %3026 = vmatmul.f32.gmra.mxu0 %v2473
    %v3027 = vpop.f32.mrf.mxu0
    %v3028 = vadd.f32 %v2951, %v3027
    %3029 = vmatmul.f32.gmra.mxu0 %v2482
    %v3030 = vpop.f32.mrf.mxu0
    %v3031 = vadd.f32 %v2954, %v3030
    %3032 = vmatmul.f32.gmra.mxu0 %v2491
    %v3033 = vpop.f32.mrf.mxu0
    %v3034 = vadd.f32 %v2957, %v3033
    %3035 = vmatmul.f32.gmra.mxu0 %v2500
    %v3036 = vpop.f32.mrf.mxu0
    %v3037 = vadd.f32 %v2960, %v3036
    %3038 = vmatmul.f32.gmra.mxu0 %v2509
    %v3039 = vpop.f32.mrf.mxu0
    %v3040 = vadd.f32 %v2963, %v3039
    %3041 = vmatmul.f32.gmra.mxu0 %v2518
    %v3042 = vpop.f32.mrf.mxu0
    %v3043 = vadd.f32 %v2966, %v3042
    %3044 = vmatmul.f32.gmra.mxu0 %v2527
    %v3045 = vpop.f32.mrf.mxu0
    %v3046 = vadd.f32 %v2969, %v3045
    %3047 = vmatmul.f32.gmra.mxu0 %v2536
    %v3048 = vpop.f32.mrf.mxu0
    %v3049 = vadd.f32 %v2972, %v3048
    %3050 = vmatmul.f32.gmra.mxu0 %v2545
    %v3051 = vpop.f32.mrf.mxu0
    %v3052 = vadd.f32 %v2975, %v3051
    %3053 = vmatmul.f32.gmra.mxu0 %v2554
    %v3054 = vpop.f32.mrf.mxu0
    %v3055 = vadd.f32 %v2978, %v3054
    %3056 = vmatmul.f32.gmra.mxu0 %v2563
    %v3057 = vpop.f32.mrf.mxu0
    %v3058 = vadd.f32 %v2981, %v3057
    %3059 = vmatmul.f32.gmra.mxu0 %v2572
    %v3060 = vpop.f32.mrf.mxu0
    %v3061 = vadd.f32 %v2984, %v3060
    %3062 = vmatmul.f32.gmra.mxu0 %v2581
    %v3063 = vpop.f32.mrf.mxu0
    %v3064 = vadd.f32 %v2987, %v3063
    %3065 = vmatmul.f32.gmra.mxu0 %v2590
    %v3066 = vpop.f32.mrf.mxu0
    %v3067 = vadd.f32 %v2990, %v3066
    %3068 = vmatmul.f32.gmra.mxu0 %v2599
    %v3069 = vpop.f32.mrf.mxu0
    %v3070 = vadd.f32 %v2993, %v3069
    %3071 = vmatmul.f32.gmra.mxu0 %v2608
    %v3072 = vpop.f32.mrf.mxu0
    %v3073 = vadd.f32 %v2996, %v3072
    %3074 = vdwg.mxu0
    %3075 = vmatpush.msra.mxu0 %v2399
    %3076 = vmatpush.msra.mxu0 %v2398
    %3077 = vmatpush.msra.mxu0 %v2397
    %3078 = vmatpush.msra.mxu0 %v2396
    %3079 = vmatpush.msra.mxu0 %v2395
    %3080 = vmatpush.msra.mxu0 %v2394
    %3081 = vmatpush.msra.mxu0 %v2393
    %3082 = vmatpush.msra.mxu0 %v2392
    %3083 = vmatpush.msra.mxu0 %v2391
    %3084 = vmatpush.msra.mxu0 %v2390
    %3085 = vmatpush.msra.mxu0 %v2389
    %3086 = vmatpush.msra.mxu0 %v2388
    %3087 = vmatpush.msra.mxu0 %v2387
    %3088 = vmatpush.msra.mxu0 %v2386
    %3089 = vmatpush.msra.mxu0 %v2385
    %3090 = vmatpush.msra.mxu0 %v2384
    %3091 = vmatmul.f32.gmra.mxu0 %v2438
    %v3092 = vpop.f32.mrf.mxu0
    %v3093 = vadd.f32 %v3016, %v3092
    %3094 = vmatmul.f32.gmra.mxu0 %v2447
    %v3095 = vpop.f32.mrf.mxu0
    %v3096 = vadd.f32 %v3019, %v3095
    %3097 = vmatmul.f32.gmra.mxu0 %v2456
    %v3098 = vpop.f32.mrf.mxu0
    %v3099 = vadd.f32 %v3022, %v3098
    %3100 = vmatmul.f32.gmra.mxu0 %v2465
    %v3101 = vpop.f32.mrf.mxu0
    %v3102 = vadd.f32 %v3025, %v3101
    %3103 = vmatmul.f32.gmra.mxu0 %v2474
    %v3104 = vpop.f32.mrf.mxu0
    %v3105 = vadd.f32 %v3028, %v3104
    %3106 = vmatmul.f32.gmra.mxu0 %v2483
    %v3107 = vpop.f32.mrf.mxu0
    %v3108 = vadd.f32 %v3031, %v3107
    %3109 = vmatmul.f32.gmra.mxu0 %v2492
    %v3110 = vpop.f32.mrf.mxu0
    %v3111 = vadd.f32 %v3034, %v3110
    %3112 = vmatmul.f32.gmra.mxu0 %v2501
    %v3113 = vpop.f32.mrf.mxu0
    %v3114 = vadd.f32 %v3037, %v3113
    %3115 = vmatmul.f32.gmra.mxu0 %v2510
    %v3116 = vpop.f32.mrf.mxu0
    %v3117 = vadd.f32 %v3040, %v3116
    %3118 = vmatmul.f32.gmra.mxu0 %v2519
    %v3119 = vpop.f32.mrf.mxu0
    %v3120 = vadd.f32 %v3043, %v3119
    %3121 = vmatmul.f32.gmra.mxu0 %v2528
    %v3122 = vpop.f32.mrf.mxu0
    %v3123 = vadd.f32 %v3046, %v3122
    %3124 = vmatmul.f32.gmra.mxu0 %v2537
    %v3125 = vpop.f32.mrf.mxu0
    %v3126 = vadd.f32 %v3049, %v3125
    %3127 = vmatmul.f32.gmra.mxu0 %v2546
    %v3128 = vpop.f32.mrf.mxu0
    %v3129 = vadd.f32 %v3052, %v3128
    %3130 = vmatmul.f32.gmra.mxu0 %v2555
    %v3131 = vpop.f32.mrf.mxu0
    %v3132 = vadd.f32 %v3055, %v3131
    %3133 = vmatmul.f32.gmra.mxu0 %v2564
    %v3134 = vpop.f32.mrf.mxu0
    %v3135 = vadd.f32 %v3058, %v3134
    %3136 = vmatmul.f32.gmra.mxu0 %v2573
    %v3137 = vpop.f32.mrf.mxu0
    %v3138 = vadd.f32 %v3061, %v3137
    %3139 = vmatmul.f32.gmra.mxu0 %v2582
    %v3140 = vpop.f32.mrf.mxu0
    %v3141 = vadd.f32 %v3064, %v3140
    %3142 = vmatmul.f32.gmra.mxu0 %v2591
    %v3143 = vpop.f32.mrf.mxu0
    %v3144 = vadd.f32 %v3067, %v3143
    %3145 = vmatmul.f32.gmra.mxu0 %v2600
    %v3146 = vpop.f32.mrf.mxu0
    %v3147 = vadd.f32 %v3070, %v3146
    %3148 = vmatmul.f32.gmra.mxu0 %v2609
    %v3149 = vpop.f32.mrf.mxu0
    %v3150 = vadd.f32 %v3073, %v3149
    %3151 = vdwg.mxu0
    %3152 = vmatpush.msra.mxu0 %v2415
    %3153 = vmatpush.msra.mxu0 %v2414
    %3154 = vmatpush.msra.mxu0 %v2413
    %3155 = vmatpush.msra.mxu0 %v2412
    %3156 = vmatpush.msra.mxu0 %v2411
    %3157 = vmatpush.msra.mxu0 %v2410
    %3158 = vmatpush.msra.mxu0 %v2409
    %3159 = vmatpush.msra.mxu0 %v2408
    %3160 = vmatpush.msra.mxu0 %v2407
    %3161 = vmatpush.msra.mxu0 %v2406
    %3162 = vmatpush.msra.mxu0 %v2405
    %3163 = vmatpush.msra.mxu0 %v2404
    %3164 = vmatpush.msra.mxu0 %v2403
    %3165 = vmatpush.msra.mxu0 %v2402
    %3166 = vmatpush.msra.mxu0 %v2401
    %3167 = vmatpush.msra.mxu0 %v2400
    %3168 = vmatmul.f32.gmra.mxu0 %v2439
    %v3169 = vpop.f32.mrf.mxu0
    %v3170 = vadd.f32 %v3093, %v3169
    %3171 = vmatmul.f32.gmra.mxu0 %v2448
    %v3172 = vpop.f32.mrf.mxu0
    %v3173 = vadd.f32 %v3096, %v3172
    %3174 = vmatmul.f32.gmra.mxu0 %v2457
    %v3175 = vpop.f32.mrf.mxu0
    %v3176 = vadd.f32 %v3099, %v3175
    %3177 = vmatmul.f32.gmra.mxu0 %v2466
    %v3178 = vpop.f32.mrf.mxu0
    %v3179 = vadd.f32 %v3102, %v3178
    %3180 = vmatmul.f32.gmra.mxu0 %v2475
    %v3181 = vpop.f32.mrf.mxu0
    %v3182 = vadd.f32 %v3105, %v3181
    %3183 = vmatmul.f32.gmra.mxu0 %v2484
    %v3184 = vpop.f32.mrf.mxu0
    %v3185 = vadd.f32 %v3108, %v3184
    %3186 = vmatmul.f32.gmra.mxu0 %v2493
    %v3187 = vpop.f32.mrf.mxu0
    %v3188 = vadd.f32 %v3111, %v3187
    %3189 = vmatmul.f32.gmra.mxu0 %v2502
    %v3190 = vpop.f32.mrf.mxu0
    %v3191 = vadd.f32 %v3114, %v3190
    %3192 = vmatmul.f32.gmra.mxu0 %v2511
    %v3193 = vpop.f32.mrf.mxu0
    %v3194 = vadd.f32 %v3117, %v3193
    %3195 = vmatmul.f32.gmra.mxu0 %v2520
    %v3196 = vpop.f32.mrf.mxu0
    %v3197 = vadd.f32 %v3120, %v3196
    %3198 = vmatmul.f32.gmra.mxu0 %v2529
    %v3199 = vpop.f32.mrf.mxu0
    %v3200 = vadd.f32 %v3123, %v3199
    %3201 = vmatmul.f32.gmra.mxu0 %v2538
    %v3202 = vpop.f32.mrf.mxu0
    %v3203 = vadd.f32 %v3126, %v3202
    %3204 = vmatmul.f32.gmra.mxu0 %v2547
    %v3205 = vpop.f32.mrf.mxu0
    %v3206 = vadd.f32 %v3129, %v3205
    %3207 = vmatmul.f32.gmra.mxu0 %v2556
    %v3208 = vpop.f32.mrf.mxu0
    %v3209 = vadd.f32 %v3132, %v3208
    %3210 = vmatmul.f32.gmra.mxu0 %v2565
    %v3211 = vpop.f32.mrf.mxu0
    %v3212 = vadd.f32 %v3135, %v3211
    %3213 = vmatmul.f32.gmra.mxu0 %v2574
    %v3214 = vpop.f32.mrf.mxu0
    %v3215 = vadd.f32 %v3138, %v3214
    %3216 = vmatmul.f32.gmra.mxu0 %v2583
    %v3217 = vpop.f32.mrf.mxu0
    %v3218 = vadd.f32 %v3141, %v3217
    %3219 = vmatmul.f32.gmra.mxu0 %v2592
    %v3220 = vpop.f32.mrf.mxu0
    %v3221 = vadd.f32 %v3144, %v3220
    %3222 = vmatmul.f32.gmra.mxu0 %v2601
    %v3223 = vpop.f32.mrf.mxu0
    %v3224 = vadd.f32 %v3147, %v3223
    %3225 = vmatmul.f32.gmra.mxu0 %v2610
    %v3226 = vpop.f32.mrf.mxu0
    %v3227 = vadd.f32 %v3150, %v3226
    %3228 = vdwg.mxu0
    %3229 = vmatpush.msra.mxu0 %v2431
    %3230 = vmatpush.msra.mxu0 %v2430
    %3231 = vmatpush.msra.mxu0 %v2429
    %3232 = vmatpush.msra.mxu0 %v2428
    %3233 = vmatpush.msra.mxu0 %v2427
    %3234 = vmatpush.msra.mxu0 %v2426
    %3235 = vmatpush.msra.mxu0 %v2425
    %3236 = vmatpush.msra.mxu0 %v2424
    %3237 = vmatpush.msra.mxu0 %v2423
    %3238 = vmatpush.msra.mxu0 %v2422
    %3239 = vmatpush.msra.mxu0 %v2421
    %3240 = vmatpush.msra.mxu0 %v2420
    %3241 = vmatpush.msra.mxu0 %v2419
    %3242 = vmatpush.msra.mxu0 %v2418
    %3243 = vmatpush.msra.mxu0 %v2417
    %3244 = vmatpush.msra.mxu0 %v2416
    %3245 = vmatmul.f32.gmra.mxu0 %v2440
    %v3246 = vpop.f32.mrf.mxu0
    %v3247 = vadd.f32 %v3170, %v3246
    %3248 = vmatmul.f32.gmra.mxu0 %v2449
    %v3249 = vpop.f32.mrf.mxu0
    %v3250 = vadd.f32 %v3173, %v3249
    %3251 = vmatmul.f32.gmra.mxu0 %v2458
    %v3252 = vpop.f32.mrf.mxu0
    %v3253 = vadd.f32 %v3176, %v3252
    %3254 = vmatmul.f32.gmra.mxu0 %v2467
    %v3255 = vpop.f32.mrf.mxu0
    %v3256 = vadd.f32 %v3179, %v3255
    %3257 = vmatmul.f32.gmra.mxu0 %v2476
    %v3258 = vpop.f32.mrf.mxu0
    %v3259 = vadd.f32 %v3182, %v3258
    %3260 = vmatmul.f32.gmra.mxu0 %v2485
    %v3261 = vpop.f32.mrf.mxu0
    %v3262 = vadd.f32 %v3185, %v3261
    %3263 = vmatmul.f32.gmra.mxu0 %v2494
    %v3264 = vpop.f32.mrf.mxu0
    %v3265 = vadd.f32 %v3188, %v3264
    %3266 = vmatmul.f32.gmra.mxu0 %v2503
    %v3267 = vpop.f32.mrf.mxu0
    %v3268 = vadd.f32 %v3191, %v3267
    %3269 = vmatmul.f32.gmra.mxu0 %v2512
    %v3270 = vpop.f32.mrf.mxu0
    %v3271 = vadd.f32 %v3194, %v3270
    %3272 = vmatmul.f32.gmra.mxu0 %v2521
    %v3273 = vpop.f32.mrf.mxu0
    %v3274 = vadd.f32 %v3197, %v3273
    %3275 = vmatmul.f32.gmra.mxu0 %v2530
    %v3276 = vpop.f32.mrf.mxu0
    %v3277 = vadd.f32 %v3200, %v3276
    %3278 = vmatmul.f32.gmra.mxu0 %v2539
    %v3279 = vpop.f32.mrf.mxu0
    %v3280 = vadd.f32 %v3203, %v3279
    %3281 = vmatmul.f32.gmra.mxu0 %v2548
    %v3282 = vpop.f32.mrf.mxu0
    %v3283 = vadd.f32 %v3206, %v3282
    %3284 = vmatmul.f32.gmra.mxu0 %v2557
    %v3285 = vpop.f32.mrf.mxu0
    %v3286 = vadd.f32 %v3209, %v3285
    %3287 = vmatmul.f32.gmra.mxu0 %v2566
    %v3288 = vpop.f32.mrf.mxu0
    %v3289 = vadd.f32 %v3212, %v3288
    %3290 = vmatmul.f32.gmra.mxu0 %v2575
    %v3291 = vpop.f32.mrf.mxu0
    %v3292 = vadd.f32 %v3215, %v3291
    %3293 = vmatmul.f32.gmra.mxu0 %v2584
    %v3294 = vpop.f32.mrf.mxu0
    %v3295 = vadd.f32 %v3218, %v3294
    %3296 = vmatmul.f32.gmra.mxu0 %v2593
    %v3297 = vpop.f32.mrf.mxu0
    %v3298 = vadd.f32 %v3221, %v3297
    %3299 = vmatmul.f32.gmra.mxu0 %v2602
    %v3300 = vpop.f32.mrf.mxu0
    %v3301 = vadd.f32 %v3224, %v3300
    %3302 = vmatmul.f32.gmra.mxu0 %v2611
    %v3303 = vpop.f32.mrf.mxu0
    %v3304 = vadd.f32 %v3227, %v3303
    %3305 = vdwg.mxu0
    %v3306 = vmax.f32 %v3247, 0.0
    %v3307 = vmax.f32 %v3250, 0.0
    %v3308 = vmax.f32 %v3253, 0.0
    %v3309 = vmax.f32 %v3256, 0.0
    %v3310 = vmax.f32 %v3259, 0.0
    %v3311 = vmax.f32 %v3262, 0.0
    %v3312 = vmax.f32 %v3265, 0.0
    %v3313 = vmax.f32 %v3268, 0.0
    %v3314 = vmax.f32 %v3271, 0.0
    %v3315 = vmax.f32 %v3274, 0.0
    %v3316 = vmax.f32 %v3277, 0.0
    %v3317 = vmax.f32 %v3280, 0.0
    %v3318 = vmax.f32 %v3283, 0.0
    %v3319 = vmax.f32 %v3286, 0.0
    %v3320 = vmax.f32 %v3289, 0.0
    %v3321 = vmax.f32 %v3292, 0.0
    %v3322 = vmax.f32 %v3295, 0.0
    %v3323 = vmax.f32 %v3298, 0.0
    %v3324 = vmax.f32 %v3301, 0.0
    %v3325 = vmax.f32 %v3304, 0.0
    %v3326 = vmul.f32 %v3306, %v136
    %v3327 = vmul.f32 %v3307, %v139
    %v3328 = vmul.f32 %v3308, %v142
    %v3329 = vmul.f32 %v3309, %v145
    %v3330 = vmul.f32 %v3310, %v148
    %v3331 = vmul.f32 %v3311, %v151
    %v3332 = vmul.f32 %v3312, %v154
    %v3333 = vmul.f32 %v3313, %v157
    %v3334 = vmul.f32 %v3314, %v160
    %v3335 = vmul.f32 %v3315, %v163
    %v3336 = vmul.f32 %v3316, %v166
    %v3337 = vmul.f32 %v3317, %v169
    %v3338 = vmul.f32 %v3318, %v172
    %v3339 = vmul.f32 %v3319, %v175
    %v3340 = vmul.f32 %v3320, %v178
    %v3341 = vmul.f32 %v3321, %v181
    %v3342 = vmul.f32 %v3322, %v184
    %v3343 = vmul.f32 %v3323, %v187
    %v3344 = vmul.f32 %v3324, %v190
    %v3345 = vmul.f32 %v3325, %v193
    %3346 = vst.msk [vmem:[#allocation4 + $0x10] sm:$0xff] %vm204, %v3326
    %3347 = vst.msk [vmem:[#allocation4 + $0x18] sm:$0xff] %vm204, %v3327
    %3348 = vst.msk [vmem:[#allocation4 + $0x20] sm:$0xff] %vm204, %v3328
    %3349 = vst.msk [vmem:[#allocation4 + $0x28] sm:$0xff] %vm204, %v3329
    %3350 = vst.msk [vmem:[#allocation4 + $0x30] sm:$0xff] %vm204, %v3330
    %3351 = vst.msk [vmem:[#allocation4 + $0x38] sm:$0xff] %vm204, %v3331
    %3352 = vst.msk [vmem:[#allocation4 + $0x40] sm:$0xff] %vm204, %v3332
    %3353 = vst.msk [vmem:[#allocation4 + $0x48] sm:$0xff] %vm204, %v3333
    %3354 = vst.msk [vmem:[#allocation4 + $0x50] sm:$0xff] %vm204, %v3334
    %3355 = vst.msk [vmem:[#allocation4 + $0x58] sm:$0xff] %vm204, %v3335
    %3356 = vst.msk [vmem:[#allocation4 + $0x60] sm:$0xff] %vm204, %v3336
    %3357 = vst.msk [vmem:[#allocation4 + $0x68] sm:$0xff] %vm204, %v3337
    %3358 = vst.msk [vmem:[#allocation4 + $0x70] sm:$0xff] %vm204, %v3338
    %3359 = vst.msk [vmem:[#allocation4 + $0x78] sm:$0xff] %vm204, %v3339
    %3360 = vst.msk [vmem:[#allocation4 + $0x80] sm:$0xff] %vm204, %v3340
    %3361 = vst.msk [vmem:[#allocation4 + $0x88] sm:$0xff] %vm204, %v3341
    %3362 = vst.msk [vmem:[#allocation4 + $0x90] sm:$0xff] %vm204, %v3342
    %3363 = vst.msk [vmem:[#allocation4 + $0x98] sm:$0xff] %vm204, %v3343
    %3364 = vst.msk [vmem:[#allocation4 + $0xa0] sm:$0xff] %vm204, %v3344
    %3365 = vst.msk [vmem:[#allocation4 + $0xa8] sm:$0xff] %vm204, %v3345
    %v3366 = vld [vmem:[#allocation4 + $0x7] sm:$0xff]
    %v3367 = vld [vmem:[#allocation4 + $0xf] sm:$0xff]
    %v3368 = vld [vmem:[#allocation4 + $0x17] sm:$0xff]
    %v3369 = vld [vmem:[#allocation4 + $0x1f] sm:$0xff]
    %v3370 = vld [vmem:[#allocation4 + $0x27] sm:$0xff]
    %v3371 = vld [vmem:[#allocation4 + $0x2f] sm:$0xff]
    %v3372 = vld [vmem:[#allocation4 + $0x37] sm:$0xff]
    %v3373 = vld [vmem:[#allocation4 + $0x3f] sm:$0xff]
    %v3374 = vld [vmem:[#allocation4 + $0x47] sm:$0xff]
    %v3375 = vld [vmem:[#allocation4 + $0x4f] sm:$0xff]
    %v3376 = vld [vmem:[#allocation4 + $0x57] sm:$0xff]
    %v3377 = vld [vmem:[#allocation4 + $0x5f] sm:$0xff]
    %v3378 = vld [vmem:[#allocation4 + $0x67] sm:$0xff]
    %v3379 = vld [vmem:[#allocation4 + $0x6f] sm:$0xff]
    %v3380 = vld [vmem:[#allocation4 + $0x77] sm:$0xff]
    %v3381 = vld [vmem:[#allocation4 + $0x7f] sm:$0xff]
    %v3382 = vld [vmem:[#allocation4 + $0x87] sm:$0xff]
    %v3383 = vld [vmem:[#allocation4 + $0x8f] sm:$0xff]
    %v3384 = vld [vmem:[#allocation4 + $0x97] sm:$0xff]
    %v3385 = vld [vmem:[#allocation4 + $0x9f] sm:$0xff]
    %3386 = vst.msk [vmem:[#allocation5] sm:$0xff] %vm204, %v3366
    %3387 = vst.msk [vmem:[#allocation5 + $0x48] sm:$0xff] %vm204, %v3367
    %3388 = vst.msk [vmem:[#allocation5 + $0x90] sm:$0xff] %vm204, %v3368
    %3389 = vst.msk [vmem:[#allocation5 + $0xd8] sm:$0xff] %vm204, %v3369
    %3390 = vst.msk [vmem:[#allocation5 + $0x120] sm:$0xff] %vm204, %v3370
    %3391 = vst.msk [vmem:[#allocation5 + $0x168] sm:$0xff] %vm204, %v3371
    %3392 = vst.msk [vmem:[#allocation5 + $0x1b0] sm:$0xff] %vm204, %v3372
    %3393 = vst.msk [vmem:[#allocation5 + $0x1f8] sm:$0xff] %vm204, %v3373
    %3394 = vst.msk [vmem:[#allocation5 + $0x240] sm:$0xff] %vm204, %v3374
    %3395 = vst.msk [vmem:[#allocation5 + $0x288] sm:$0xff] %vm204, %v3375
    %3396 = vst.msk [vmem:[#allocation5 + $0x2d0] sm:$0xff] %vm204, %v3376
    %3397 = vst.msk [vmem:[#allocation5 + $0x318] sm:$0xff] %vm204, %v3377
    %3398 = vst.msk [vmem:[#allocation5 + $0x360] sm:$0xff] %vm204, %v3378
    %3399 = vst.msk [vmem:[#allocation5 + $0x3a8] sm:$0xff] %vm204, %v3379
    %3400 = vst.msk [vmem:[#allocation5 + $0x3f0] sm:$0xff] %vm204, %v3380
    %3401 = vst.msk [vmem:[#allocation5 + $0x438] sm:$0xff] %vm204, %v3381
    %3402 = vst.msk [vmem:[#allocation5 + $0x480] sm:$0xff] %vm204, %v3382
    %3403 = vst.msk [vmem:[#allocation5 + $0x4c8] sm:$0xff] %vm204, %v3383
    %3404 = vst.msk [vmem:[#allocation5 + $0x510] sm:$0xff] %vm204, %v3384
    %3405 = vst.msk [vmem:[#allocation5 + $0x558] sm:$0xff] %vm204, %v3385
    %v3406 = vld [vmem:[#allocation4 + $0x8] sm:$0xff]
    %v3407 = vld [vmem:[#allocation4 + $0x10] sm:$0xff]
    %v3408 = vld [vmem:[#allocation4 + $0x18] sm:$0xff]
    %v3409 = vld [vmem:[#allocation4 + $0x20] sm:$0xff]
    %v3410 = vld [vmem:[#allocation4 + $0x28] sm:$0xff]
    %v3411 = vld [vmem:[#allocation4 + $0x30] sm:$0xff]
    %v3412 = vld [vmem:[#allocation4 + $0x38] sm:$0xff]
    %v3413 = vld [vmem:[#allocation4 + $0x40] sm:$0xff]
    %v3414 = vld [vmem:[#allocation4 + $0x48] sm:$0xff]
    %v3415 = vld [vmem:[#allocation4 + $0x50] sm:$0xff]
    %v3416 = vld [vmem:[#allocation4 + $0x58] sm:$0xff]
    %v3417 = vld [vmem:[#allocation4 + $0x60] sm:$0xff]
    %v3418 = vld [vmem:[#allocation4 + $0x68] sm:$0xff]
    %v3419 = vld [vmem:[#allocation4 + $0x70] sm:$0xff]
    %v3420 = vld [vmem:[#allocation4 + $0x78] sm:$0xff]
    %v3421 = vld [vmem:[#allocation4 + $0x80] sm:$0xff]
    %v3422 = vld [vmem:[#allocation4 + $0x88] sm:$0xff]
    %v3423 = vld [vmem:[#allocation4 + $0x90] sm:$0xff]
    %v3424 = vld [vmem:[#allocation4 + $0x98] sm:$0xff]
    %v3425 = vld [vmem:[#allocation4 + $0xa0] sm:$0xff]
    %3426 = vst.msk [vmem:[#allocation5 + $0x8] sm:$0xff] %vm204, %v3406
    %3427 = vst.msk [vmem:[#allocation5 + $0x50] sm:$0xff] %vm204, %v3407
    %3428 = vst.msk [vmem:[#allocation5 + $0x98] sm:$0xff] %vm204, %v3408
    %3429 = vst.msk [vmem:[#allocation5 + $0xe0] sm:$0xff] %vm204, %v3409
    %3430 = vst.msk [vmem:[#allocation5 + $0x128] sm:$0xff] %vm204, %v3410
    %3431 = vst.msk [vmem:[#allocation5 + $0x170] sm:$0xff] %vm204, %v3411
    %3432 = vst.msk [vmem:[#allocation5 + $0x1b8] sm:$0xff] %vm204, %v3412
    %3433 = vst.msk [vmem:[#allocation5 + $0x200] sm:$0xff] %vm204, %v3413
    %3434 = vst.msk [vmem:[#allocation5 + $0x248] sm:$0xff] %vm204, %v3414
    %3435 = vst.msk [vmem:[#allocation5 + $0x290] sm:$0xff] %vm204, %v3415
    %3436 = vst.msk [vmem:[#allocation5 + $0x2d8] sm:$0xff] %vm204, %v3416
    %3437 = vst.msk [vmem:[#allocation5 + $0x320] sm:$0xff] %vm204, %v3417
    %3438 = vst.msk [vmem:[#allocation5 + $0x368] sm:$0xff] %vm204, %v3418
    %3439 = vst.msk [vmem:[#allocation5 + $0x3b0] sm:$0xff] %vm204, %v3419
    %3440 = vst.msk [vmem:[#allocation5 + $0x3f8] sm:$0xff] %vm204, %v3420
    %3441 = vst.msk [vmem:[#allocation5 + $0x440] sm:$0xff] %vm204, %v3421
    %3442 = vst.msk [vmem:[#allocation5 + $0x488] sm:$0xff] %vm204, %v3422
    %3443 = vst.msk [vmem:[#allocation5 + $0x4d0] sm:$0xff] %vm204, %v3423
    %3444 = vst.msk [vmem:[#allocation5 + $0x518] sm:$0xff] %vm204, %v3424
    %3445 = vst.msk [vmem:[#allocation5 + $0x560] sm:$0xff] %vm204, %v3425
    %v3446 = vld [vmem:[#allocation4 + $0x9] sm:$0xff]
    %v3447 = vld [vmem:[#allocation4 + $0x11] sm:$0xff]
    %v3448 = vld [vmem:[#allocation4 + $0x19] sm:$0xff]
    %v3449 = vld [vmem:[#allocation4 + $0x21] sm:$0xff]
    %v3450 = vld [vmem:[#allocation4 + $0x29] sm:$0xff]
    %v3451 = vld [vmem:[#allocation4 + $0x31] sm:$0xff]
    %v3452 = vld [vmem:[#allocation4 + $0x39] sm:$0xff]
    %v3453 = vld [vmem:[#allocation4 + $0x41] sm:$0xff]
    %v3454 = vld [vmem:[#allocation4 + $0x49] sm:$0xff]
    %v3455 = vld [vmem:[#allocation4 + $0x51] sm:$0xff]
    %v3456 = vld [vmem:[#allocation4 + $0x59] sm:$0xff]
    %v3457 = vld [vmem:[#allocation4 + $0x61] sm:$0xff]
    %v3458 = vld [vmem:[#allocation4 + $0x69] sm:$0xff]
    %v3459 = vld [vmem:[#allocation4 + $0x71] sm:$0xff]
    %v3460 = vld [vmem:[#allocation4 + $0x79] sm:$0xff]
    %v3461 = vld [vmem:[#allocation4 + $0x81] sm:$0xff]
    %v3462 = vld [vmem:[#allocation4 + $0x89] sm:$0xff]
    %v3463 = vld [vmem:[#allocation4 + $0x91] sm:$0xff]
    %v3464 = vld [vmem:[#allocation4 + $0x99] sm:$0xff]
    %v3465 = vld [vmem:[#allocation4 + $0xa1] sm:$0xff]
    %3466 = vst.msk [vmem:[#allocation5 + $0x10] sm:$0xff] %vm204, %v3446
    %3467 = vst.msk [vmem:[#allocation5 + $0x58] sm:$0xff] %vm204, %v3447
    %3468 = vst.msk [vmem:[#allocation5 + $0xa0] sm:$0xff] %vm204, %v3448
    %3469 = vst.msk [vmem:[#allocation5 + $0xe8] sm:$0xff] %vm204, %v3449
    %3470 = vst.msk [vmem:[#allocation5 + $0x130] sm:$0xff] %vm204, %v3450
    %3471 = vst.msk [vmem:[#allocation5 + $0x178] sm:$0xff] %vm204, %v3451
    %3472 = vst.msk [vmem:[#allocation5 + $0x1c0] sm:$0xff] %vm204, %v3452
    %3473 = vst.msk [vmem:[#allocation5 + $0x208] sm:$0xff] %vm204, %v3453
    %3474 = vst.msk [vmem:[#allocation5 + $0x250] sm:$0xff] %vm204, %v3454
    %3475 = vst.msk [vmem:[#allocation5 + $0x298] sm:$0xff] %vm204, %v3455
    %3476 = vst.msk [vmem:[#allocation5 + $0x2e0] sm:$0xff] %vm204, %v3456
    %3477 = vst.msk [vmem:[#allocation5 + $0x328] sm:$0xff] %vm204, %v3457
    %3478 = vst.msk [vmem:[#allocation5 + $0x370] sm:$0xff] %vm204, %v3458
    %3479 = vst.msk [vmem:[#allocation5 + $0x3b8] sm:$0xff] %vm204, %v3459
    %3480 = vst.msk [vmem:[#allocation5 + $0x400] sm:$0xff] %vm204, %v3460
    %3481 = vst.msk [vmem:[#allocation5 + $0x448] sm:$0xff] %vm204, %v3461
    %3482 = vst.msk [vmem:[#allocation5 + $0x490] sm:$0xff] %vm204, %v3462
    %3483 = vst.msk [vmem:[#allocation5 + $0x4d8] sm:$0xff] %vm204, %v3463
    %3484 = vst.msk [vmem:[#allocation5 + $0x520] sm:$0xff] %vm204, %v3464
    %3485 = vst.msk [vmem:[#allocation5 + $0x568] sm:$0xff] %vm204, %v3465
    %v3486 = vld [vmem:[#allocation4 + $0xf] sm:$0xff]
    %v3487 = vld [vmem:[#allocation4 + $0x17] sm:$0xff]
    %v3488 = vld [vmem:[#allocation4 + $0x1f] sm:$0xff]
    %v3489 = vld [vmem:[#allocation4 + $0x27] sm:$0xff]
    %v3490 = vld [vmem:[#allocation4 + $0x2f] sm:$0xff]
    %v3491 = vld [vmem:[#allocation4 + $0x37] sm:$0xff]
    %v3492 = vld [vmem:[#allocation4 + $0x3f] sm:$0xff]
    %v3493 = vld [vmem:[#allocation4 + $0x47] sm:$0xff]
    %v3494 = vld [vmem:[#allocation4 + $0x4f] sm:$0xff]
    %v3495 = vld [vmem:[#allocation4 + $0x57] sm:$0xff]
    %v3496 = vld [vmem:[#allocation4 + $0x5f] sm:$0xff]
    %v3497 = vld [vmem:[#allocation4 + $0x67] sm:$0xff]
    %v3498 = vld [vmem:[#allocation4 + $0x6f] sm:$0xff]
    %v3499 = vld [vmem:[#allocation4 + $0x77] sm:$0xff]
    %v3500 = vld [vmem:[#allocation4 + $0x7f] sm:$0xff]
    %v3501 = vld [vmem:[#allocation4 + $0x87] sm:$0xff]
    %v3502 = vld [vmem:[#allocation4 + $0x8f] sm:$0xff]
    %v3503 = vld [vmem:[#allocation4 + $0x97] sm:$0xff]
    %v3504 = vld [vmem:[#allocation4 + $0x9f] sm:$0xff]
    %v3505 = vld [vmem:[#allocation4 + $0xa7] sm:$0xff]
    %3506 = vst.msk [vmem:[#allocation5 + $0x18] sm:$0xff] %vm204, %v3486
    %3507 = vst.msk [vmem:[#allocation5 + $0x60] sm:$0xff] %vm204, %v3487
    %3508 = vst.msk [vmem:[#allocation5 + $0xa8] sm:$0xff] %vm204, %v3488
    %3509 = vst.msk [vmem:[#allocation5 + $0xf0] sm:$0xff] %vm204, %v3489
    %3510 = vst.msk [vmem:[#allocation5 + $0x138] sm:$0xff] %vm204, %v3490
    %3511 = vst.msk [vmem:[#allocation5 + $0x180] sm:$0xff] %vm204, %v3491
    %3512 = vst.msk [vmem:[#allocation5 + $0x1c8] sm:$0xff] %vm204, %v3492
    %3513 = vst.msk [vmem:[#allocation5 + $0x210] sm:$0xff] %vm204, %v3493
    %3514 = vst.msk [vmem:[#allocation5 + $0x258] sm:$0xff] %vm204, %v3494
    %3515 = vst.msk [vmem:[#allocation5 + $0x2a0] sm:$0xff] %vm204, %v3495
    %3516 = vst.msk [vmem:[#allocation5 + $0x2e8] sm:$0xff] %vm204, %v3496
    %3517 = vst.msk [vmem:[#allocation5 + $0x330] sm:$0xff] %vm204, %v3497
    %3518 = vst.msk [vmem:[#allocation5 + $0x378] sm:$0xff] %vm204, %v3498
    %3519 = vst.msk [vmem:[#allocation5 + $0x3c0] sm:$0xff] %vm204, %v3499
    %3520 = vst.msk [vmem:[#allocation5 + $0x408] sm:$0xff] %vm204, %v3500
    %3521 = vst.msk [vmem:[#allocation5 + $0x450] sm:$0xff] %vm204, %v3501
    %3522 = vst.msk [vmem:[#allocation5 + $0x498] sm:$0xff] %vm204, %v3502
    %3523 = vst.msk [vmem:[#allocation5 + $0x4e0] sm:$0xff] %vm204, %v3503
    %3524 = vst.msk [vmem:[#allocation5 + $0x528] sm:$0xff] %vm204, %v3504
    %3525 = vst.msk [vmem:[#allocation5 + $0x570] sm:$0xff] %vm204, %v3505
    %v3526 = vld [vmem:[#allocation4 + $0x10] sm:$0xff]
    %v3527 = vld [vmem:[#allocation4 + $0x18] sm:$0xff]
    %v3528 = vld [vmem:[#allocation4 + $0x20] sm:$0xff]
    %v3529 = vld [vmem:[#allocation4 + $0x28] sm:$0xff]
    %v3530 = vld [vmem:[#allocation4 + $0x30] sm:$0xff]
    %v3531 = vld [vmem:[#allocation4 + $0x38] sm:$0xff]
    %v3532 = vld [vmem:[#allocation4 + $0x40] sm:$0xff]
    %v3533 = vld [vmem:[#allocation4 + $0x48] sm:$0xff]
    %v3534 = vld [vmem:[#allocation4 + $0x50] sm:$0xff]
    %v3535 = vld [vmem:[#allocation4 + $0x58] sm:$0xff]
    %v3536 = vld [vmem:[#allocation4 + $0x60] sm:$0xff]
    %v3537 = vld [vmem:[#allocation4 + $0x68] sm:$0xff]
    %v3538 = vld [vmem:[#allocation4 + $0x70] sm:$0xff]
    %v3539 = vld [vmem:[#allocation4 + $0x78] sm:$0xff]
    %v3540 = vld [vmem:[#allocation4 + $0x80] sm:$0xff]
    %v3541 = vld [vmem:[#allocation4 + $0x88] sm:$0xff]
    %v3542 = vld [vmem:[#allocation4 + $0x90] sm:$0xff]
    %v3543 = vld [vmem:[#allocation4 + $0x98] sm:$0xff]
    %v3544 = vld [vmem:[#allocation4 + $0xa0] sm:$0xff]
    %v3545 = vld [vmem:[#allocation4 + $0xa8] sm:$0xff]
    %3546 = vst.msk [vmem:[#allocation5 + $0x20] sm:$0xff] %vm204, %v3526
    %3547 = vst.msk [vmem:[#allocation5 + $0x68] sm:$0xff] %vm204, %v3527
    %3548 = vst.msk [vmem:[#allocation5 + $0xb0] sm:$0xff] %vm204, %v3528
    %3549 = vst.msk [vmem:[#allocation5 + $0xf8] sm:$0xff] %vm204, %v3529
    %3550 = vst.msk [vmem:[#allocation5 + $0x140] sm:$0xff] %vm204, %v3530
    %3551 = vst.msk [vmem:[#allocation5 + $0x188] sm:$0xff] %vm204, %v3531
    %3552 = vst.msk [vmem:[#allocation5 + $0x1d0] sm:$0xff] %vm204, %v3532
    %3553 = vst.msk [vmem:[#allocation5 + $0x218] sm:$0xff] %vm204, %v3533
    %3554 = vst.msk [vmem:[#allocation5 + $0x260] sm:$0xff] %vm204, %v3534
    %3555 = vst.msk [vmem:[#allocation5 + $0x2a8] sm:$0xff] %vm204, %v3535
    %3556 = vst.msk [vmem:[#allocation5 + $0x2f0] sm:$0xff] %vm204, %v3536
    %3557 = vst.msk [vmem:[#allocation5 + $0x338] sm:$0xff] %vm204, %v3537
    %3558 = vst.msk [vmem:[#allocation5 + $0x380] sm:$0xff] %vm204, %v3538
    %3559 = vst.msk [vmem:[#allocation5 + $0x3c8] sm:$0xff] %vm204, %v3539
    %3560 = vst.msk [vmem:[#allocation5 + $0x410] sm:$0xff] %vm204, %v3540
    %3561 = vst.msk [vmem:[#allocation5 + $0x458] sm:$0xff] %vm204, %v3541
    %3562 = vst.msk [vmem:[#allocation5 + $0x4a0] sm:$0xff] %vm204, %v3542
    %3563 = vst.msk [vmem:[#allocation5 + $0x4e8] sm:$0xff] %vm204, %v3543
    %3564 = vst.msk [vmem:[#allocation5 + $0x530] sm:$0xff] %vm204, %v3544
    %3565 = vst.msk [vmem:[#allocation5 + $0x578] sm:$0xff] %vm204, %v3545
    %v3566 = vld [vmem:[#allocation4 + $0x11] sm:$0xff]
    %v3567 = vld [vmem:[#allocation4 + $0x19] sm:$0xff]
    %v3568 = vld [vmem:[#allocation4 + $0x21] sm:$0xff]
    %v3569 = vld [vmem:[#allocation4 + $0x29] sm:$0xff]
    %v3570 = vld [vmem:[#allocation4 + $0x31] sm:$0xff]
    %v3571 = vld [vmem:[#allocation4 + $0x39] sm:$0xff]
    %v3572 = vld [vmem:[#allocation4 + $0x41] sm:$0xff]
    %v3573 = vld [vmem:[#allocation4 + $0x49] sm:$0xff]
    %v3574 = vld [vmem:[#allocation4 + $0x51] sm:$0xff]
    %v3575 = vld [vmem:[#allocation4 + $0x59] sm:$0xff]
    %v3576 = vld [vmem:[#allocation4 + $0x61] sm:$0xff]
    %v3577 = vld [vmem:[#allocation4 + $0x69] sm:$0xff]
    %v3578 = vld [vmem:[#allocation4 + $0x71] sm:$0xff]
    %v3579 = vld [vmem:[#allocation4 + $0x79] sm:$0xff]
    %v3580 = vld [vmem:[#allocation4 + $0x81] sm:$0xff]
    %v3581 = vld [vmem:[#allocation4 + $0x89] sm:$0xff]
    %v3582 = vld [vmem:[#allocation4 + $0x91] sm:$0xff]
    %v3583 = vld [vmem:[#allocation4 + $0x99] sm:$0xff]
    %v3584 = vld [vmem:[#allocation4 + $0xa1] sm:$0xff]
    %v3585 = vld [vmem:[#allocation4 + $0xa9] sm:$0xff]
    %3586 = vst.msk [vmem:[#allocation5 + $0x28] sm:$0xff] %vm204, %v3566
    %3587 = vst.msk [vmem:[#allocation5 + $0x70] sm:$0xff] %vm204, %v3567
    %3588 = vst.msk [vmem:[#allocation5 + $0xb8] sm:$0xff] %vm204, %v3568
    %3589 = vst.msk [vmem:[#allocation5 + $0x100] sm:$0xff] %vm204, %v3569
    %3590 = vst.msk [vmem:[#allocation5 + $0x148] sm:$0xff] %vm204, %v3570
    %3591 = vst.msk [vmem:[#allocation5 + $0x190] sm:$0xff] %vm204, %v3571
    %3592 = vst.msk [vmem:[#allocation5 + $0x1d8] sm:$0xff] %vm204, %v3572
    %3593 = vst.msk [vmem:[#allocation5 + $0x220] sm:$0xff] %vm204, %v3573
    %3594 = vst.msk [vmem:[#allocation5 + $0x268] sm:$0xff] %vm204, %v3574
    %3595 = vst.msk [vmem:[#allocation5 + $0x2b0] sm:$0xff] %vm204, %v3575
    %3596 = vst.msk [vmem:[#allocation5 + $0x2f8] sm:$0xff] %vm204, %v3576
    %3597 = vst.msk [vmem:[#allocation5 + $0x340] sm:$0xff] %vm204, %v3577
    %3598 = vst.msk [vmem:[#allocation5 + $0x388] sm:$0xff] %vm204, %v3578
    %3599 = vst.msk [vmem:[#allocation5 + $0x3d0] sm:$0xff] %vm204, %v3579
    %3600 = vst.msk [vmem:[#allocation5 + $0x418] sm:$0xff] %vm204, %v3580
    %3601 = vst.msk [vmem:[#allocation5 + $0x460] sm:$0xff] %vm204, %v3581
    %3602 = vst.msk [vmem:[#allocation5 + $0x4a8] sm:$0xff] %vm204, %v3582
    %3603 = vst.msk [vmem:[#allocation5 + $0x4f0] sm:$0xff] %vm204, %v3583
    %3604 = vst.msk [vmem:[#allocation5 + $0x538] sm:$0xff] %vm204, %v3584
    %3605 = vst.msk [vmem:[#allocation5 + $0x580] sm:$0xff] %vm204, %v3585
    %v3606 = vld [vmem:[#allocation4 + $0x17] sm:$0xff]
    %v3607 = vld [vmem:[#allocation4 + $0x1f] sm:$0xff]
    %v3608 = vld [vmem:[#allocation4 + $0x27] sm:$0xff]
    %v3609 = vld [vmem:[#allocation4 + $0x2f] sm:$0xff]
    %v3610 = vld [vmem:[#allocation4 + $0x37] sm:$0xff]
    %v3611 = vld [vmem:[#allocation4 + $0x3f] sm:$0xff]
    %v3612 = vld [vmem:[#allocation4 + $0x47] sm:$0xff]
    %v3613 = vld [vmem:[#allocation4 + $0x4f] sm:$0xff]
    %v3614 = vld [vmem:[#allocation4 + $0x57] sm:$0xff]
    %v3615 = vld [vmem:[#allocation4 + $0x5f] sm:$0xff]
    %v3616 = vld [vmem:[#allocation4 + $0x67] sm:$0xff]
    %v3617 = vld [vmem:[#allocation4 + $0x6f] sm:$0xff]
    %v3618 = vld [vmem:[#allocation4 + $0x77] sm:$0xff]
    %v3619 = vld [vmem:[#allocation4 + $0x7f] sm:$0xff]
    %v3620 = vld [vmem:[#allocation4 + $0x87] sm:$0xff]
    %v3621 = vld [vmem:[#allocation4 + $0x8f] sm:$0xff]
    %v3622 = vld [vmem:[#allocation4 + $0x97] sm:$0xff]
    %v3623 = vld [vmem:[#allocation4 + $0x9f] sm:$0xff]
    %v3624 = vld [vmem:[#allocation4 + $0xa7] sm:$0xff]
    %v3625 = vld [vmem:[#allocation4 + $0xaf] sm:$0xff]
    %3626 = vst.msk [vmem:[#allocation5 + $0x30] sm:$0xff] %vm204, %v3606
    %3627 = vst.msk [vmem:[#allocation5 + $0x78] sm:$0xff] %vm204, %v3607
    %3628 = vst.msk [vmem:[#allocation5 + $0xc0] sm:$0xff] %vm204, %v3608
    %3629 = vst.msk [vmem:[#allocation5 + $0x108] sm:$0xff] %vm204, %v3609
    %3630 = vst.msk [vmem:[#allocation5 + $0x150] sm:$0xff] %vm204, %v3610
    %3631 = vst.msk [vmem:[#allocation5 + $0x198] sm:$0xff] %vm204, %v3611
    %3632 = vst.msk [vmem:[#allocation5 + $0x1e0] sm:$0xff] %vm204, %v3612
    %3633 = vst.msk [vmem:[#allocation5 + $0x228] sm:$0xff] %vm204, %v3613
    %3634 = vst.msk [vmem:[#allocation5 + $0x270] sm:$0xff] %vm204, %v3614
    %3635 = vst.msk [vmem:[#allocation5 + $0x2b8] sm:$0xff] %vm204, %v3615
    %3636 = vst.msk [vmem:[#allocation5 + $0x300] sm:$0xff] %vm204, %v3616
    %3637 = vst.msk [vmem:[#allocation5 + $0x348] sm:$0xff] %vm204, %v3617
    %3638 = vst.msk [vmem:[#allocation5 + $0x390] sm:$0xff] %vm204, %v3618
    %3639 = vst.msk [vmem:[#allocation5 + $0x3d8] sm:$0xff] %vm204, %v3619
    %3640 = vst.msk [vmem:[#allocation5 + $0x420] sm:$0xff] %vm204, %v3620
    %3641 = vst.msk [vmem:[#allocation5 + $0x468] sm:$0xff] %vm204, %v3621
    %3642 = vst.msk [vmem:[#allocation5 + $0x4b0] sm:$0xff] %vm204, %v3622
    %3643 = vst.msk [vmem:[#allocation5 + $0x4f8] sm:$0xff] %vm204, %v3623
    %3644 = vst.msk [vmem:[#allocation5 + $0x540] sm:$0xff] %vm204, %v3624
    %3645 = vst.msk [vmem:[#allocation5 + $0x588] sm:$0xff] %vm204, %v3625
    %v3646 = vld [vmem:[#allocation4 + $0x18] sm:$0xff]
    %v3647 = vld [vmem:[#allocation4 + $0x20] sm:$0xff]
    %v3648 = vld [vmem:[#allocation4 + $0x28] sm:$0xff]
    %v3649 = vld [vmem:[#allocation4 + $0x30] sm:$0xff]
    %v3650 = vld [vmem:[#allocation4 + $0x38] sm:$0xff]
    %v3651 = vld [vmem:[#allocation4 + $0x40] sm:$0xff]
    %v3652 = vld [vmem:[#allocation4 + $0x48] sm:$0xff]
    %v3653 = vld [vmem:[#allocation4 + $0x50] sm:$0xff]
    %v3654 = vld [vmem:[#allocation4 + $0x58] sm:$0xff]
    %v3655 = vld [vmem:[#allocation4 + $0x60] sm:$0xff]
    %v3656 = vld [vmem:[#allocation4 + $0x68] sm:$0xff]
    %v3657 = vld [vmem:[#allocation4 + $0x70] sm:$0xff]
    %v3658 = vld [vmem:[#allocation4 + $0x78] sm:$0xff]
    %v3659 = vld [vmem:[#allocation4 + $0x80] sm:$0xff]
    %v3660 = vld [vmem:[#allocation4 + $0x88] sm:$0xff]
    %v3661 = vld [vmem:[#allocation4 + $0x90] sm:$0xff]
    %v3662 = vld [vmem:[#allocation4 + $0x98] sm:$0xff]
    %v3663 = vld [vmem:[#allocation4 + $0xa0] sm:$0xff]
    %v3664 = vld [vmem:[#allocation4 + $0xa8] sm:$0xff]
    %v3665 = vld [vmem:[#allocation4 + $0xb0] sm:$0xff]
    %3666 = vst.msk [vmem:[#allocation5 + $0x38] sm:$0xff] %vm204, %v3646
    %3667 = vst.msk [vmem:[#allocation5 + $0x80] sm:$0xff] %vm204, %v3647
    %3668 = vst.msk [vmem:[#allocation5 + $0xc8] sm:$0xff] %vm204, %v3648
    %3669 = vst.msk [vmem:[#allocation5 + $0x110] sm:$0xff] %vm204, %v3649
    %3670 = vst.msk [vmem:[#allocation5 + $0x158] sm:$0xff] %vm204, %v3650
    %3671 = vst.msk [vmem:[#allocation5 + $0x1a0] sm:$0xff] %vm204, %v3651
    %3672 = vst.msk [vmem:[#allocation5 + $0x1e8] sm:$0xff] %vm204, %v3652
    %3673 = vst.msk [vmem:[#allocation5 + $0x230] sm:$0xff] %vm204, %v3653
    %3674 = vst.msk [vmem:[#allocation5 + $0x278] sm:$0xff] %vm204, %v3654
    %3675 = vst.msk [vmem:[#allocation5 + $0x2c0] sm:$0xff] %vm204, %v3655
    %3676 = vst.msk [vmem:[#allocation5 + $0x308] sm:$0xff] %vm204, %v3656
    %3677 = vst.msk [vmem:[#allocation5 + $0x350] sm:$0xff] %vm204, %v3657
    %3678 = vst.msk [vmem:[#allocation5 + $0x398] sm:$0xff] %vm204, %v3658
    %3679 = vst.msk [vmem:[#allocation5 + $0x3e0] sm:$0xff] %vm204, %v3659
    %3680 = vst.msk [vmem:[#allocation5 + $0x428] sm:$0xff] %vm204, %v3660
    %3681 = vst.msk [vmem:[#allocation5 + $0x470] sm:$0xff] %vm204, %v3661
    %3682 = vst.msk [vmem:[#allocation5 + $0x4b8] sm:$0xff] %vm204, %v3662
    %3683 = vst.msk [vmem:[#allocation5 + $0x500] sm:$0xff] %vm204, %v3663
    %3684 = vst.msk [vmem:[#allocation5 + $0x548] sm:$0xff] %vm204, %v3664
    %3685 = vst.msk [vmem:[#allocation5 + $0x590] sm:$0xff] %vm204, %v3665
    %v3686 = vld [vmem:[#allocation4 + $0x19] sm:$0xff]
    %v3687 = vld [vmem:[#allocation4 + $0x21] sm:$0xff]
    %v3688 = vld [vmem:[#allocation4 + $0x29] sm:$0xff]
    %v3689 = vld [vmem:[#allocation4 + $0x31] sm:$0xff]
    %v3690 = vld [vmem:[#allocation4 + $0x39] sm:$0xff]
    %v3691 = vld [vmem:[#allocation4 + $0x41] sm:$0xff]
    %v3692 = vld [vmem:[#allocation4 + $0x49] sm:$0xff]
    %v3693 = vld [vmem:[#allocation4 + $0x51] sm:$0xff]
    %v3694 = vld [vmem:[#allocation4 + $0x59] sm:$0xff]
    %v3695 = vld [vmem:[#allocation4 + $0x61] sm:$0xff]
    %v3696 = vld [vmem:[#allocation4 + $0x69] sm:$0xff]
    %v3697 = vld [vmem:[#allocation4 + $0x71] sm:$0xff]
    %v3698 = vld [vmem:[#allocation4 + $0x79] sm:$0xff]
    %v3699 = vld [vmem:[#allocation4 + $0x81] sm:$0xff]
    %v3700 = vld [vmem:[#allocation4 + $0x89] sm:$0xff]
    %v3701 = vld [vmem:[#allocation4 + $0x91] sm:$0xff]
    %v3702 = vld [vmem:[#allocation4 + $0x99] sm:$0xff]
    %v3703 = vld [vmem:[#allocation4 + $0xa1] sm:$0xff]
    %v3704 = vld [vmem:[#allocation4 + $0xa9] sm:$0xff]
    %v3705 = vld [vmem:[#allocation4 + $0xb1] sm:$0xff]
    %3706 = vst.msk [vmem:[#allocation5 + $0x40] sm:$0xff] %vm204, %v3686
    %3707 = vst.msk [vmem:[#allocation5 + $0x88] sm:$0xff] %vm204, %v3687
    %3708 = vst.msk [vmem:[#allocation5 + $0xd0] sm:$0xff] %vm204, %v3688
    %3709 = vst.msk [vmem:[#allocation5 + $0x118] sm:$0xff] %vm204, %v3689
    %3710 = vst.msk [vmem:[#allocation5 + $0x160] sm:$0xff] %vm204, %v3690
    %3711 = vst.msk [vmem:[#allocation5 + $0x1a8] sm:$0xff] %vm204, %v3691
    %3712 = vst.msk [vmem:[#allocation5 + $0x1f0] sm:$0xff] %vm204, %v3692
    %3713 = vst.msk [vmem:[#allocation5 + $0x238] sm:$0xff] %vm204, %v3693
    %3714 = vst.msk [vmem:[#allocation5 + $0x280] sm:$0xff] %vm204, %v3694
    %3715 = vst.msk [vmem:[#allocation5 + $0x2c8] sm:$0xff] %vm204, %v3695
    %3716 = vst.msk [vmem:[#allocation5 + $0x310] sm:$0xff] %vm204, %v3696
    %3717 = vst.msk [vmem:[#allocation5 + $0x358] sm:$0xff] %vm204, %v3697
    %3718 = vst.msk [vmem:[#allocation5 + $0x3a0] sm:$0xff] %vm204, %v3698
    %3719 = vst.msk [vmem:[#allocation5 + $0x3e8] sm:$0xff] %vm204, %v3699
    %3720 = vst.msk [vmem:[#allocation5 + $0x430] sm:$0xff] %vm204, %v3700
    %3721 = vst.msk [vmem:[#allocation5 + $0x478] sm:$0xff] %vm204, %v3701
    %3722 = vst.msk [vmem:[#allocation5 + $0x4c0] sm:$0xff] %vm204, %v3702
    %3723 = vst.msk [vmem:[#allocation5 + $0x508] sm:$0xff] %vm204, %v3703
    %3724 = vst.msk [vmem:[#allocation5 + $0x550] sm:$0xff] %vm204, %v3704
    %3725 = vst.msk [vmem:[#allocation5 + $0x598] sm:$0xff] %vm204, %v3705
    %v3726 = vld [vmem:[#allocation6 + $0x490] sm:$0xff]
    %v3727 = vld [vmem:[#allocation6 + $0x498] sm:$0xff]
    %v3728 = vld [vmem:[#allocation6 + $0x4a0] sm:$0xff]
    %v3729 = vld [vmem:[#allocation6 + $0x4a8] sm:$0xff]
    %v3730 = vld [vmem:[#allocation6 + $0x4b0] sm:$0xff]
    %v3731 = vld [vmem:[#allocation6 + $0x4b8] sm:$0xff]
    %v3732 = vld [vmem:[#allocation6 + $0x4c0] sm:$0xff]
    %v3733 = vld [vmem:[#allocation6 + $0x4c8] sm:$0xff]
    %v3734 = vld [vmem:[#allocation6 + $0x4d0] sm:$0xff]
    %v3735 = vld [vmem:[#allocation6 + $0x4d8] sm:$0xff]
    %v3736 = vld [vmem:[#allocation6 + $0x4e0] sm:$0xff]
    %v3737 = vld [vmem:[#allocation6 + $0x4e8] sm:$0xff]
    %v3738 = vld [vmem:[#allocation6 + $0x4f0] sm:$0xff]
    %v3739 = vld [vmem:[#allocation6 + $0x4f8] sm:$0xff]
    %v3740 = vld [vmem:[#allocation6 + $0x500] sm:$0xff]
    %v3741 = vld [vmem:[#allocation6 + $0x508] sm:$0xff]
    %v3742 = vld [vmem:[#allocation6 + $0x510] sm:$0xff]
    %v3743 = vld [vmem:[#allocation6 + $0x518] sm:$0xff]
    %v3744 = vld [vmem:[#allocation6 + $0x520] sm:$0xff]
    %v3745 = vld [vmem:[#allocation6 + $0x528] sm:$0xff]
    %v3746 = vld [vmem:[#allocation6 + $0x530] sm:$0xff]
    %v3747 = vld [vmem:[#allocation6 + $0x538] sm:$0xff]
    %v3748 = vld [vmem:[#allocation6 + $0x540] sm:$0xff]
    %v3749 = vld [vmem:[#allocation6 + $0x548] sm:$0xff]
    %v3750 = vld [vmem:[#allocation6 + $0x550] sm:$0xff]
    %v3751 = vld [vmem:[#allocation6 + $0x558] sm:$0xff]
    %v3752 = vld [vmem:[#allocation6 + $0x560] sm:$0xff]
    %v3753 = vld [vmem:[#allocation6 + $0x568] sm:$0xff]
    %v3754 = vld [vmem:[#allocation6 + $0x570] sm:$0xff]
    %v3755 = vld [vmem:[#allocation6 + $0x578] sm:$0xff]
    %v3756 = vld [vmem:[#allocation6 + $0x580] sm:$0xff]
    %v3757 = vld [vmem:[#allocation6 + $0x588] sm:$0xff]
    %v3758 = vld [vmem:[#allocation6 + $0x590] sm:$0xff]
    %v3759 = vld [vmem:[#allocation6 + $0x598] sm:$0xff]
    %v3760 = vld [vmem:[#allocation6 + $0x5a0] sm:$0xff]
    %v3761 = vld [vmem:[#allocation6 + $0x5a8] sm:$0xff]
    %v3762 = vld [vmem:[#allocation6 + $0x5b0] sm:$0xff]
    %v3763 = vld [vmem:[#allocation6 + $0x5b8] sm:$0xff]
    %v3764 = vld [vmem:[#allocation6 + $0x5c0] sm:$0xff]
    %v3765 = vld [vmem:[#allocation6 + $0x5c8] sm:$0xff]
    %v3766 = vld [vmem:[#allocation6 + $0x5d0] sm:$0xff]
    %v3767 = vld [vmem:[#allocation6 + $0x5d8] sm:$0xff]
    %v3768 = vld [vmem:[#allocation6 + $0x5e0] sm:$0xff]
    %v3769 = vld [vmem:[#allocation6 + $0x5e8] sm:$0xff]
    %v3770 = vld [vmem:[#allocation6 + $0x5f0] sm:$0xff]
    %v3771 = vld [vmem:[#allocation6 + $0x5f8] sm:$0xff]
    %v3772 = vld [vmem:[#allocation6 + $0x600] sm:$0xff]
    %v3773 = vld [vmem:[#allocation6 + $0x608] sm:$0xff]
    %v3774 = vld [vmem:[#allocation6 + $0x610] sm:$0xff]
    %v3775 = vld [vmem:[#allocation6 + $0x618] sm:$0xff]
    %v3776 = vld [vmem:[#allocation6 + $0x620] sm:$0xff]
    %v3777 = vld [vmem:[#allocation6 + $0x628] sm:$0xff]
    %v3778 = vld [vmem:[#allocation6 + $0x630] sm:$0xff]
    %v3779 = vld [vmem:[#allocation6 + $0x638] sm:$0xff]
    %v3780 = vld [vmem:[#allocation6 + $0x640] sm:$0xff]
    %v3781 = vld [vmem:[#allocation6 + $0x648] sm:$0xff]
    %v3782 = vld [vmem:[#allocation6 + $0x650] sm:$0xff]
    %v3783 = vld [vmem:[#allocation6 + $0x658] sm:$0xff]
    %v3784 = vld [vmem:[#allocation6 + $0x660] sm:$0xff]
    %v3785 = vld [vmem:[#allocation6 + $0x668] sm:$0xff]
    %v3786 = vld [vmem:[#allocation6 + $0x670] sm:$0xff]
    %v3787 = vld [vmem:[#allocation6 + $0x678] sm:$0xff]
    %v3788 = vld [vmem:[#allocation6 + $0x680] sm:$0xff]
    %v3789 = vld [vmem:[#allocation6 + $0x688] sm:$0xff]
    %v3790 = vld [vmem:[#allocation6 + $0x690] sm:$0xff]
    %v3791 = vld [vmem:[#allocation6 + $0x698] sm:$0xff]
    %v3792 = vld [vmem:[#allocation6 + $0x6a0] sm:$0xff]
    %v3793 = vld [vmem:[#allocation6 + $0x6a8] sm:$0xff]
    %v3794 = vld [vmem:[#allocation6 + $0x6b0] sm:$0xff]
    %v3795 = vld [vmem:[#allocation6 + $0x6b8] sm:$0xff]
    %v3796 = vld [vmem:[#allocation6 + $0x6c0] sm:$0xff]
    %v3797 = vld [vmem:[#allocation6 + $0x6c8] sm:$0xff]
    %v3798 = vld [vmem:[#allocation6 + $0x6d0] sm:$0xff]
    %v3799 = vld [vmem:[#allocation6 + $0x6d8] sm:$0xff]
    %v3800 = vld [vmem:[#allocation6 + $0x6e0] sm:$0xff]
    %v3801 = vld [vmem:[#allocation6 + $0x6e8] sm:$0xff]
    %v3802 = vld [vmem:[#allocation6 + $0x6f0] sm:$0xff]
    %v3803 = vld [vmem:[#allocation6 + $0x6f8] sm:$0xff]
    %v3804 = vld [vmem:[#allocation6 + $0x700] sm:$0xff]
    %v3805 = vld [vmem:[#allocation6 + $0x708] sm:$0xff]
    %v3806 = vld [vmem:[#allocation6 + $0x710] sm:$0xff]
    %v3807 = vld [vmem:[#allocation6 + $0x718] sm:$0xff]
    %v3808 = vld [vmem:[#allocation6 + $0x720] sm:$0xff]
    %v3809 = vld [vmem:[#allocation6 + $0x728] sm:$0xff]
    %v3810 = vld [vmem:[#allocation6 + $0x730] sm:$0xff]
    %v3811 = vld [vmem:[#allocation6 + $0x738] sm:$0xff]
    %v3812 = vld [vmem:[#allocation6 + $0x740] sm:$0xff]
    %v3813 = vld [vmem:[#allocation6 + $0x748] sm:$0xff]
    %v3814 = vld [vmem:[#allocation6 + $0x750] sm:$0xff]
    %v3815 = vld [vmem:[#allocation6 + $0x758] sm:$0xff]
    %v3816 = vld [vmem:[#allocation6 + $0x760] sm:$0xff]
    %v3817 = vld [vmem:[#allocation6 + $0x768] sm:$0xff]
    %v3818 = vld [vmem:[#allocation6 + $0x770] sm:$0xff]
    %v3819 = vld [vmem:[#allocation6 + $0x778] sm:$0xff]
    %v3820 = vld [vmem:[#allocation6 + $0x780] sm:$0xff]
    %v3821 = vld [vmem:[#allocation6 + $0x788] sm:$0xff]
    %v3822 = vld [vmem:[#allocation6 + $0x790] sm:$0xff]
    %v3823 = vld [vmem:[#allocation6 + $0x798] sm:$0xff]
    %v3824 = vld [vmem:[#allocation6 + $0x7a0] sm:$0xff]
    %v3825 = vld [vmem:[#allocation6 + $0x7a8] sm:$0xff]
    %v3826 = vld [vmem:[#allocation6 + $0x7b0] sm:$0xff]
    %v3827 = vld [vmem:[#allocation6 + $0x7b8] sm:$0xff]
    %v3828 = vld [vmem:[#allocation6 + $0x7c0] sm:$0xff]
    %v3829 = vld [vmem:[#allocation6 + $0x7c8] sm:$0xff]
    %v3830 = vld [vmem:[#allocation6 + $0x7d0] sm:$0xff]
    %v3831 = vld [vmem:[#allocation6 + $0x7d8] sm:$0xff]
    %v3832 = vld [vmem:[#allocation6 + $0x7e0] sm:$0xff]
    %v3833 = vld [vmem:[#allocation6 + $0x7e8] sm:$0xff]
    %v3834 = vld [vmem:[#allocation6 + $0x7f0] sm:$0xff]
    %v3835 = vld [vmem:[#allocation6 + $0x7f8] sm:$0xff]
    %v3836 = vld [vmem:[#allocation6 + $0x800] sm:$0xff]
    %v3837 = vld [vmem:[#allocation6 + $0x808] sm:$0xff]
    %v3838 = vld [vmem:[#allocation6 + $0x810] sm:$0xff]
    %v3839 = vld [vmem:[#allocation6 + $0x818] sm:$0xff]
    %v3840 = vld [vmem:[#allocation6 + $0x820] sm:$0xff]
    %v3841 = vld [vmem:[#allocation6 + $0x828] sm:$0xff]
    %v3842 = vld [vmem:[#allocation6 + $0x830] sm:$0xff]
    %v3843 = vld [vmem:[#allocation6 + $0x838] sm:$0xff]
    %v3844 = vld [vmem:[#allocation6 + $0x840] sm:$0xff]
    %v3845 = vld [vmem:[#allocation6 + $0x848] sm:$0xff]
    %v3846 = vld [vmem:[#allocation6 + $0x850] sm:$0xff]
    %v3847 = vld [vmem:[#allocation6 + $0x858] sm:$0xff]
    %v3848 = vld [vmem:[#allocation6 + $0x860] sm:$0xff]
    %v3849 = vld [vmem:[#allocation6 + $0x868] sm:$0xff]
    %v3850 = vld [vmem:[#allocation6 + $0x870] sm:$0xff]
    %v3851 = vld [vmem:[#allocation6 + $0x878] sm:$0xff]
    %v3852 = vld [vmem:[#allocation6 + $0x880] sm:$0xff]
    %v3853 = vld [vmem:[#allocation6 + $0x888] sm:$0xff]
    %v3854 = vld [vmem:[#allocation6 + $0x890] sm:$0xff]
    %v3855 = vld [vmem:[#allocation6 + $0x898] sm:$0xff]
    %v3856 = vld [vmem:[#allocation6 + $0x8a0] sm:$0xff]
    %v3857 = vld [vmem:[#allocation6 + $0x8a8] sm:$0xff]
    %v3858 = vld [vmem:[#allocation6 + $0x8b0] sm:$0xff]
    %v3859 = vld [vmem:[#allocation6 + $0x8b8] sm:$0xff]
    %v3860 = vld [vmem:[#allocation6 + $0x8c0] sm:$0xff]
    %v3861 = vld [vmem:[#allocation6 + $0x8c8] sm:$0xff]
    %v3862 = vld [vmem:[#allocation6 + $0x8d0] sm:$0xff]
    %v3863 = vld [vmem:[#allocation6 + $0x8d8] sm:$0xff]
    %v3864 = vld [vmem:[#allocation6 + $0x8e0] sm:$0xff]
    %v3865 = vld [vmem:[#allocation6 + $0x8e8] sm:$0xff]
    %v3866 = vld [vmem:[#allocation6 + $0x8f0] sm:$0xff]
    %v3867 = vld [vmem:[#allocation6 + $0x8f8] sm:$0xff]
    %v3868 = vld [vmem:[#allocation6 + $0x900] sm:$0xff]
    %v3869 = vld [vmem:[#allocation6 + $0x908] sm:$0xff]
    %v3870 = vld [vmem:[#allocation5] sm:$0xff]
    %v3871 = vld [vmem:[#allocation5 + $0x8] sm:$0xff]
    %v3872 = vld [vmem:[#allocation5 + $0x10] sm:$0xff]
    %v3873 = vld [vmem:[#allocation5 + $0x18] sm:$0xff]
    %v3874 = vld [vmem:[#allocation5 + $0x20] sm:$0xff]
    %v3875 = vld [vmem:[#allocation5 + $0x28] sm:$0xff]
    %v3876 = vld [vmem:[#allocation5 + $0x30] sm:$0xff]
    %v3877 = vld [vmem:[#allocation5 + $0x38] sm:$0xff]
    %v3878 = vld [vmem:[#allocation5 + $0x40] sm:$0xff]
    %v3879 = vld [vmem:[#allocation5 + $0x48] sm:$0xff]
    %v3880 = vld [vmem:[#allocation5 + $0x50] sm:$0xff]
    %v3881 = vld [vmem:[#allocation5 + $0x58] sm:$0xff]
    %v3882 = vld [vmem:[#allocation5 + $0x60] sm:$0xff]
    %v3883 = vld [vmem:[#allocation5 + $0x68] sm:$0xff]
    %v3884 = vld [vmem:[#allocation5 + $0x70] sm:$0xff]
    %v3885 = vld [vmem:[#allocation5 + $0x78] sm:$0xff]
    %v3886 = vld [vmem:[#allocation5 + $0x80] sm:$0xff]
    %v3887 = vld [vmem:[#allocation5 + $0x88] sm:$0xff]
    %v3888 = vld [vmem:[#allocation5 + $0x90] sm:$0xff]
    %v3889 = vld [vmem:[#allocation5 + $0x98] sm:$0xff]
    %v3890 = vld [vmem:[#allocation5 + $0xa0] sm:$0xff]
    %v3891 = vld [vmem:[#allocation5 + $0xa8] sm:$0xff]
    %v3892 = vld [vmem:[#allocation5 + $0xb0] sm:$0xff]
    %v3893 = vld [vmem:[#allocation5 + $0xb8] sm:$0xff]
    %v3894 = vld [vmem:[#allocation5 + $0xc0] sm:$0xff]
    %v3895 = vld [vmem:[#allocation5 + $0xc8] sm:$0xff]
    %v3896 = vld [vmem:[#allocation5 + $0xd0] sm:$0xff]
    %v3897 = vld [vmem:[#allocation5 + $0xd8] sm:$0xff]
    %v3898 = vld [vmem:[#allocation5 + $0xe0] sm:$0xff]
    %v3899 = vld [vmem:[#allocation5 + $0xe8] sm:$0xff]
    %v3900 = vld [vmem:[#allocation5 + $0xf0] sm:$0xff]
    %v3901 = vld [vmem:[#allocation5 + $0xf8] sm:$0xff]
    %v3902 = vld [vmem:[#allocation5 + $0x100] sm:$0xff]
    %v3903 = vld [vmem:[#allocation5 + $0x108] sm:$0xff]
    %v3904 = vld [vmem:[#allocation5 + $0x110] sm:$0xff]
    %v3905 = vld [vmem:[#allocation5 + $0x118] sm:$0xff]
    %v3906 = vld [vmem:[#allocation5 + $0x120] sm:$0xff]
    %v3907 = vld [vmem:[#allocation5 + $0x128] sm:$0xff]
    %v3908 = vld [vmem:[#allocation5 + $0x130] sm:$0xff]
    %v3909 = vld [vmem:[#allocation5 + $0x138] sm:$0xff]
    %v3910 = vld [vmem:[#allocation5 + $0x140] sm:$0xff]
    %v3911 = vld [vmem:[#allocation5 + $0x148] sm:$0xff]
    %v3912 = vld [vmem:[#allocation5 + $0x150] sm:$0xff]
    %v3913 = vld [vmem:[#allocation5 + $0x158] sm:$0xff]
    %v3914 = vld [vmem:[#allocation5 + $0x160] sm:$0xff]
    %v3915 = vld [vmem:[#allocation5 + $0x168] sm:$0xff]
    %v3916 = vld [vmem:[#allocation5 + $0x170] sm:$0xff]
    %v3917 = vld [vmem:[#allocation5 + $0x178] sm:$0xff]
    %v3918 = vld [vmem:[#allocation5 + $0x180] sm:$0xff]
    %v3919 = vld [vmem:[#allocation5 + $0x188] sm:$0xff]
    %v3920 = vld [vmem:[#allocation5 + $0x190] sm:$0xff]
    %v3921 = vld [vmem:[#allocation5 + $0x198] sm:$0xff]
    %v3922 = vld [vmem:[#allocation5 + $0x1a0] sm:$0xff]
    %v3923 = vld [vmem:[#allocation5 + $0x1a8] sm:$0xff]
    %v3924 = vld [vmem:[#allocation5 + $0x1b0] sm:$0xff]
    %v3925 = vld [vmem:[#allocation5 + $0x1b8] sm:$0xff]
    %v3926 = vld [vmem:[#allocation5 + $0x1c0] sm:$0xff]
    %v3927 = vld [vmem:[#allocation5 + $0x1c8] sm:$0xff]
    %v3928 = vld [vmem:[#allocation5 + $0x1d0] sm:$0xff]
    %v3929 = vld [vmem:[#allocation5 + $0x1d8] sm:$0xff]
    %v3930 = vld [vmem:[#allocation5 + $0x1e0] sm:$0xff]
    %v3931 = vld [vmem:[#allocation5 + $0x1e8] sm:$0xff]
    %v3932 = vld [vmem:[#allocation5 + $0x1f0] sm:$0xff]
    %v3933 = vld [vmem:[#allocation5 + $0x1f8] sm:$0xff]
    %v3934 = vld [vmem:[#allocation5 + $0x200] sm:$0xff]
    %v3935 = vld [vmem:[#allocation5 + $0x208] sm:$0xff]
    %v3936 = vld [vmem:[#allocation5 + $0x210] sm:$0xff]
    %v3937 = vld [vmem:[#allocation5 + $0x218] sm:$0xff]
    %v3938 = vld [vmem:[#allocation5 + $0x220] sm:$0xff]
    %v3939 = vld [vmem:[#allocation5 + $0x228] sm:$0xff]
    %v3940 = vld [vmem:[#allocation5 + $0x230] sm:$0xff]
    %v3941 = vld [vmem:[#allocation5 + $0x238] sm:$0xff]
    %v3942 = vld [vmem:[#allocation5 + $0x240] sm:$0xff]
    %v3943 = vld [vmem:[#allocation5 + $0x248] sm:$0xff]
    %v3944 = vld [vmem:[#allocation5 + $0x250] sm:$0xff]
    %v3945 = vld [vmem:[#allocation5 + $0x258] sm:$0xff]
    %v3946 = vld [vmem:[#allocation5 + $0x260] sm:$0xff]
    %v3947 = vld [vmem:[#allocation5 + $0x268] sm:$0xff]
    %v3948 = vld [vmem:[#allocation5 + $0x270] sm:$0xff]
    %v3949 = vld [vmem:[#allocation5 + $0x278] sm:$0xff]
    %v3950 = vld [vmem:[#allocation5 + $0x280] sm:$0xff]
    %v3951 = vld [vmem:[#allocation5 + $0x288] sm:$0xff]
    %v3952 = vld [vmem:[#allocation5 + $0x290] sm:$0xff]
    %v3953 = vld [vmem:[#allocation5 + $0x298] sm:$0xff]
    %v3954 = vld [vmem:[#allocation5 + $0x2a0] sm:$0xff]
    %v3955 = vld [vmem:[#allocation5 + $0x2a8] sm:$0xff]
    %v3956 = vld [vmem:[#allocation5 + $0x2b0] sm:$0xff]
    %v3957 = vld [vmem:[#allocation5 + $0x2b8] sm:$0xff]
    %v3958 = vld [vmem:[#allocation5 + $0x2c0] sm:$0xff]
    %v3959 = vld [vmem:[#allocation5 + $0x2c8] sm:$0xff]
    %v3960 = vld [vmem:[#allocation5 + $0x2d0] sm:$0xff]
    %v3961 = vld [vmem:[#allocation5 + $0x2d8] sm:$0xff]
    %v3962 = vld [vmem:[#allocation5 + $0x2e0] sm:$0xff]
    %v3963 = vld [vmem:[#allocation5 + $0x2e8] sm:$0xff]
    %v3964 = vld [vmem:[#allocation5 + $0x2f0] sm:$0xff]
    %v3965 = vld [vmem:[#allocation5 + $0x2f8] sm:$0xff]
    %v3966 = vld [vmem:[#allocation5 + $0x300] sm:$0xff]
    %v3967 = vld [vmem:[#allocation5 + $0x308] sm:$0xff]
    %v3968 = vld [vmem:[#allocation5 + $0x310] sm:$0xff]
    %v3969 = vld [vmem:[#allocation5 + $0x318] sm:$0xff]
    %v3970 = vld [vmem:[#allocation5 + $0x320] sm:$0xff]
    %v3971 = vld [vmem:[#allocation5 + $0x328] sm:$0xff]
    %v3972 = vld [vmem:[#allocation5 + $0x330] sm:$0xff]
    %v3973 = vld [vmem:[#allocation5 + $0x338] sm:$0xff]
    %v3974 = vld [vmem:[#allocation5 + $0x340] sm:$0xff]
    %v3975 = vld [vmem:[#allocation5 + $0x348] sm:$0xff]
    %v3976 = vld [vmem:[#allocation5 + $0x350] sm:$0xff]
    %v3977 = vld [vmem:[#allocation5 + $0x358] sm:$0xff]
    %v3978 = vld [vmem:[#allocation5 + $0x360] sm:$0xff]
    %v3979 = vld [vmem:[#allocation5 + $0x368] sm:$0xff]
    %v3980 = vld [vmem:[#allocation5 + $0x370] sm:$0xff]
    %v3981 = vld [vmem:[#allocation5 + $0x378] sm:$0xff]
    %v3982 = vld [vmem:[#allocation5 + $0x380] sm:$0xff]
    %v3983 = vld [vmem:[#allocation5 + $0x388] sm:$0xff]
    %v3984 = vld [vmem:[#allocation5 + $0x390] sm:$0xff]
    %v3985 = vld [vmem:[#allocation5 + $0x398] sm:$0xff]
    %v3986 = vld [vmem:[#allocation5 + $0x3a0] sm:$0xff]
    %v3987 = vld [vmem:[#allocation5 + $0x3a8] sm:$0xff]
    %v3988 = vld [vmem:[#allocation5 + $0x3b0] sm:$0xff]
    %v3989 = vld [vmem:[#allocation5 + $0x3b8] sm:$0xff]
    %v3990 = vld [vmem:[#allocation5 + $0x3c0] sm:$0xff]
    %v3991 = vld [vmem:[#allocation5 + $0x3c8] sm:$0xff]
    %v3992 = vld [vmem:[#allocation5 + $0x3d0] sm:$0xff]
    %v3993 = vld [vmem:[#allocation5 + $0x3d8] sm:$0xff]
    %v3994 = vld [vmem:[#allocation5 + $0x3e0] sm:$0xff]
    %v3995 = vld [vmem:[#allocation5 + $0x3e8] sm:$0xff]
    %v3996 = vld [vmem:[#allocation5 + $0x3f0] sm:$0xff]
    %v3997 = vld [vmem:[#allocation5 + $0x3f8] sm:$0xff]
    %v3998 = vld [vmem:[#allocation5 + $0x400] sm:$0xff]
    %v3999 = vld [vmem:[#allocation5 + $0x408] sm:$0xff]
    %v4000 = vld [vmem:[#allocation5 + $0x410] sm:$0xff]
    %v4001 = vld [vmem:[#allocation5 + $0x418] sm:$0xff]
    %v4002 = vld [vmem:[#allocation5 + $0x420] sm:$0xff]
    %v4003 = vld [vmem:[#allocation5 + $0x428] sm:$0xff]
    %v4004 = vld [vmem:[#allocation5 + $0x430] sm:$0xff]
    %v4005 = vld [vmem:[#allocation5 + $0x438] sm:$0xff]
    %v4006 = vld [vmem:[#allocation5 + $0x440] sm:$0xff]
    %v4007 = vld [vmem:[#allocation5 + $0x448] sm:$0xff]
    %v4008 = vld [vmem:[#allocation5 + $0x450] sm:$0xff]
    %v4009 = vld [vmem:[#allocation5 + $0x458] sm:$0xff]
    %v4010 = vld [vmem:[#allocation5 + $0x460] sm:$0xff]
    %v4011 = vld [vmem:[#allocation5 + $0x468] sm:$0xff]
    %v4012 = vld [vmem:[#allocation5 + $0x470] sm:$0xff]
    %v4013 = vld [vmem:[#allocation5 + $0x478] sm:$0xff]
    %v4014 = vld [vmem:[#allocation5 + $0x480] sm:$0xff]
    %v4015 = vld [vmem:[#allocation5 + $0x488] sm:$0xff]
    %v4016 = vld [vmem:[#allocation5 + $0x490] sm:$0xff]
    %v4017 = vld [vmem:[#allocation5 + $0x498] sm:$0xff]
    %v4018 = vld [vmem:[#allocation5 + $0x4a0] sm:$0xff]
    %v4019 = vld [vmem:[#allocation5 + $0x4a8] sm:$0xff]
    %v4020 = vld [vmem:[#allocation5 + $0x4b0] sm:$0xff]
    %v4021 = vld [vmem:[#allocation5 + $0x4b8] sm:$0xff]
    %v4022 = vld [vmem:[#allocation5 + $0x4c0] sm:$0xff]
    %v4023 = vld [vmem:[#allocation5 + $0x4c8] sm:$0xff]
    %v4024 = vld [vmem:[#allocation5 + $0x4d0] sm:$0xff]
    %v4025 = vld [vmem:[#allocation5 + $0x4d8] sm:$0xff]
    %v4026 = vld [vmem:[#allocation5 + $0x4e0] sm:$0xff]
    %v4027 = vld [vmem:[#allocation5 + $0x4e8] sm:$0xff]
    %v4028 = vld [vmem:[#allocation5 + $0x4f0] sm:$0xff]
    %v4029 = vld [vmem:[#allocation5 + $0x4f8] sm:$0xff]
    %v4030 = vld [vmem:[#allocation5 + $0x500] sm:$0xff]
    %v4031 = vld [vmem:[#allocation5 + $0x508] sm:$0xff]
    %v4032 = vld [vmem:[#allocation5 + $0x510] sm:$0xff]
    %v4033 = vld [vmem:[#allocation5 + $0x518] sm:$0xff]
    %v4034 = vld [vmem:[#allocation5 + $0x520] sm:$0xff]
    %v4035 = vld [vmem:[#allocation5 + $0x528] sm:$0xff]
    %v4036 = vld [vmem:[#allocation5 + $0x530] sm:$0xff]
    %v4037 = vld [vmem:[#allocation5 + $0x538] sm:$0xff]
    %v4038 = vld [vmem:[#allocation5 + $0x540] sm:$0xff]
    %v4039 = vld [vmem:[#allocation5 + $0x548] sm:$0xff]
    %v4040 = vld [vmem:[#allocation5 + $0x550] sm:$0xff]
    %v4041 = vld [vmem:[#allocation5 + $0x558] sm:$0xff]
    %v4042 = vld [vmem:[#allocation5 + $0x560] sm:$0xff]
    %v4043 = vld [vmem:[#allocation5 + $0x568] sm:$0xff]
    %v4044 = vld [vmem:[#allocation5 + $0x570] sm:$0xff]
    %v4045 = vld [vmem:[#allocation5 + $0x578] sm:$0xff]
    %v4046 = vld [vmem:[#allocation5 + $0x580] sm:$0xff]
    %v4047 = vld [vmem:[#allocation5 + $0x588] sm:$0xff]
    %v4048 = vld [vmem:[#allocation5 + $0x590] sm:$0xff]
    %v4049 = vld [vmem:[#allocation5 + $0x598] sm:$0xff]
    %v4050 = vperm.slane %v48, 2
    %4051 = vmatpush.msra.mxu0 %v3741
    %4052 = vmatpush.msra.mxu0 %v3740
    %4053 = vmatpush.msra.mxu0 %v3739
    %4054 = vmatpush.msra.mxu0 %v3738
    %4055 = vmatpush.msra.mxu0 %v3737
    %4056 = vmatpush.msra.mxu0 %v3736
    %4057 = vmatpush.msra.mxu0 %v3735
    %4058 = vmatpush.msra.mxu0 %v3734
    %4059 = vmatpush.msra.mxu0 %v3733
    %4060 = vmatpush.msra.mxu0 %v3732
    %4061 = vmatpush.msra.mxu0 %v3731
    %4062 = vmatpush.msra.mxu0 %v3730
    %4063 = vmatpush.msra.mxu0 %v3729
    %4064 = vmatpush.msra.mxu0 %v3728
    %4065 = vmatpush.msra.mxu0 %v3727
    %4066 = vmatpush.msra.mxu0 %v3726
    %4067 = vmatmul.f32.gmra.mxu0 %v3870
    %v4068 = vpop.f32.mrf.mxu0
    %v4069 = vadd.f32 %v4050, %v4068
    %4070 = vmatmul.f32.gmra.mxu0 %v3879
    %v4071 = vpop.f32.mrf.mxu0
    %v4072 = vadd.f32 %v4050, %v4071
    %4073 = vmatmul.f32.gmra.mxu0 %v3888
    %v4074 = vpop.f32.mrf.mxu0
    %v4075 = vadd.f32 %v4050, %v4074
    %4076 = vmatmul.f32.gmra.mxu0 %v3897
    %v4077 = vpop.f32.mrf.mxu0
    %v4078 = vadd.f32 %v4050, %v4077
    %4079 = vmatmul.f32.gmra.mxu0 %v3906
    %v4080 = vpop.f32.mrf.mxu0
    %v4081 = vadd.f32 %v4050, %v4080
    %4082 = vmatmul.f32.gmra.mxu0 %v3915
    %v4083 = vpop.f32.mrf.mxu0
    %v4084 = vadd.f32 %v4050, %v4083
    %4085 = vmatmul.f32.gmra.mxu0 %v3924
    %v4086 = vpop.f32.mrf.mxu0
    %v4087 = vadd.f32 %v4050, %v4086
    %4088 = vmatmul.f32.gmra.mxu0 %v3933
    %v4089 = vpop.f32.mrf.mxu0
    %v4090 = vadd.f32 %v4050, %v4089
    %4091 = vmatmul.f32.gmra.mxu0 %v3942
    %v4092 = vpop.f32.mrf.mxu0
    %v4093 = vadd.f32 %v4050, %v4092
    %4094 = vmatmul.f32.gmra.mxu0 %v3951
    %v4095 = vpop.f32.mrf.mxu0
    %v4096 = vadd.f32 %v4050, %v4095
    %4097 = vmatmul.f32.gmra.mxu0 %v3960
    %v4098 = vpop.f32.mrf.mxu0
    %v4099 = vadd.f32 %v4050, %v4098
    %4100 = vmatmul.f32.gmra.mxu0 %v3969
    %v4101 = vpop.f32.mrf.mxu0
    %v4102 = vadd.f32 %v4050, %v4101
    %4103 = vmatmul.f32.gmra.mxu0 %v3978
    %v4104 = vpop.f32.mrf.mxu0
    %v4105 = vadd.f32 %v4050, %v4104
    %4106 = vmatmul.f32.gmra.mxu0 %v3987
    %v4107 = vpop.f32.mrf.mxu0
    %v4108 = vadd.f32 %v4050, %v4107
    %4109 = vmatmul.f32.gmra.mxu0 %v3996
    %v4110 = vpop.f32.mrf.mxu0
    %v4111 = vadd.f32 %v4050, %v4110
    %4112 = vmatmul.f32.gmra.mxu0 %v4005
    %v4113 = vpop.f32.mrf.mxu0
    %v4114 = vadd.f32 %v4050, %v4113
    %4115 = vmatmul.f32.gmra.mxu0 %v4014
    %v4116 = vpop.f32.mrf.mxu0
    %v4117 = vadd.f32 %v4050, %v4116
    %4118 = vmatmul.f32.gmra.mxu0 %v4023
    %v4119 = vpop.f32.mrf.mxu0
    %v4120 = vadd.f32 %v4050, %v4119
    %4121 = vmatmul.f32.gmra.mxu0 %v4032
    %v4122 = vpop.f32.mrf.mxu0
    %v4123 = vadd.f32 %v4050, %v4122
    %4124 = vmatmul.f32.gmra.mxu0 %v4041
    %v4125 = vpop.f32.mrf.mxu0
    %v4126 = vadd.f32 %v4050, %v4125
    %4127 = vdwg.mxu0
    %4128 = vmatpush.msra.mxu0 %v3757
    %4129 = vmatpush.msra.mxu0 %v3756
    %4130 = vmatpush.msra.mxu0 %v3755
    %4131 = vmatpush.msra.mxu0 %v3754
    %4132 = vmatpush.msra.mxu0 %v3753
    %4133 = vmatpush.msra.mxu0 %v3752
    %4134 = vmatpush.msra.mxu0 %v3751
    %4135 = vmatpush.msra.mxu0 %v3750
    %4136 = vmatpush.msra.mxu0 %v3749
    %4137 = vmatpush.msra.mxu0 %v3748
    %4138 = vmatpush.msra.mxu0 %v3747
    %4139 = vmatpush.msra.mxu0 %v3746
    %4140 = vmatpush.msra.mxu0 %v3745
    %4141 = vmatpush.msra.mxu0 %v3744
    %4142 = vmatpush.msra.mxu0 %v3743
    %4143 = vmatpush.msra.mxu0 %v3742
    %4144 = vmatmul.f32.gmra.mxu0 %v3871
    %v4145 = vpop.f32.mrf.mxu0
    %v4146 = vadd.f32 %v4069, %v4145
    %4147 = vmatmul.f32.gmra.mxu0 %v3880
    %v4148 = vpop.f32.mrf.mxu0
    %v4149 = vadd.f32 %v4072, %v4148
    %4150 = vmatmul.f32.gmra.mxu0 %v3889
    %v4151 = vpop.f32.mrf.mxu0
    %v4152 = vadd.f32 %v4075, %v4151
    %4153 = vmatmul.f32.gmra.mxu0 %v3898
    %v4154 = vpop.f32.mrf.mxu0
    %v4155 = vadd.f32 %v4078, %v4154
    %4156 = vmatmul.f32.gmra.mxu0 %v3907
    %v4157 = vpop.f32.mrf.mxu0
    %v4158 = vadd.f32 %v4081, %v4157
    %4159 = vmatmul.f32.gmra.mxu0 %v3916
    %v4160 = vpop.f32.mrf.mxu0
    %v4161 = vadd.f32 %v4084, %v4160
    %4162 = vmatmul.f32.gmra.mxu0 %v3925
    %v4163 = vpop.f32.mrf.mxu0
    %v4164 = vadd.f32 %v4087, %v4163
    %4165 = vmatmul.f32.gmra.mxu0 %v3934
    %v4166 = vpop.f32.mrf.mxu0
    %v4167 = vadd.f32 %v4090, %v4166
    %4168 = vmatmul.f32.gmra.mxu0 %v3943
    %v4169 = vpop.f32.mrf.mxu0
    %v4170 = vadd.f32 %v4093, %v4169
    %4171 = vmatmul.f32.gmra.mxu0 %v3952
    %v4172 = vpop.f32.mrf.mxu0
    %v4173 = vadd.f32 %v4096, %v4172
    %4174 = vmatmul.f32.gmra.mxu0 %v3961
    %v4175 = vpop.f32.mrf.mxu0
    %v4176 = vadd.f32 %v4099, %v4175
    %4177 = vmatmul.f32.gmra.mxu0 %v3970
    %v4178 = vpop.f32.mrf.mxu0
    %v4179 = vadd.f32 %v4102, %v4178
    %4180 = vmatmul.f32.gmra.mxu0 %v3979
    %v4181 = vpop.f32.mrf.mxu0
    %v4182 = vadd.f32 %v4105, %v4181
    %4183 = vmatmul.f32.gmra.mxu0 %v3988
    %v4184 = vpop.f32.mrf.mxu0
    %v4185 = vadd.f32 %v4108, %v4184
    %4186 = vmatmul.f32.gmra.mxu0 %v3997
    %v4187 = vpop.f32.mrf.mxu0
    %v4188 = vadd.f32 %v4111, %v4187
    %4189 = vmatmul.f32.gmra.mxu0 %v4006
    %v4190 = vpop.f32.mrf.mxu0
    %v4191 = vadd.f32 %v4114, %v4190
    %4192 = vmatmul.f32.gmra.mxu0 %v4015
    %v4193 = vpop.f32.mrf.mxu0
    %v4194 = vadd.f32 %v4117, %v4193
    %4195 = vmatmul.f32.gmra.mxu0 %v4024
    %v4196 = vpop.f32.mrf.mxu0
    %v4197 = vadd.f32 %v4120, %v4196
    %4198 = vmatmul.f32.gmra.mxu0 %v4033
    %v4199 = vpop.f32.mrf.mxu0
    %v4200 = vadd.f32 %v4123, %v4199
    %4201 = vmatmul.f32.gmra.mxu0 %v4042
    %v4202 = vpop.f32.mrf.mxu0
    %v4203 = vadd.f32 %v4126, %v4202
    %4204 = vdwg.mxu0
    %4205 = vmatpush.msra.mxu0 %v3773
    %4206 = vmatpush.msra.mxu0 %v3772
    %4207 = vmatpush.msra.mxu0 %v3771
    %4208 = vmatpush.msra.mxu0 %v3770
    %4209 = vmatpush.msra.mxu0 %v3769
    %4210 = vmatpush.msra.mxu0 %v3768
    %4211 = vmatpush.msra.mxu0 %v3767
    %4212 = vmatpush.msra.mxu0 %v3766
    %4213 = vmatpush.msra.mxu0 %v3765
    %4214 = vmatpush.msra.mxu0 %v3764
    %4215 = vmatpush.msra.mxu0 %v3763
    %4216 = vmatpush.msra.mxu0 %v3762
    %4217 = vmatpush.msra.mxu0 %v3761
    %4218 = vmatpush.msra.mxu0 %v3760
    %4219 = vmatpush.msra.mxu0 %v3759
    %4220 = vmatpush.msra.mxu0 %v3758
    %4221 = vmatmul.f32.gmra.mxu0 %v3872
    %v4222 = vpop.f32.mrf.mxu0
    %v4223 = vadd.f32 %v4146, %v4222
    %4224 = vmatmul.f32.gmra.mxu0 %v3881
    %v4225 = vpop.f32.mrf.mxu0
    %v4226 = vadd.f32 %v4149, %v4225
    %4227 = vmatmul.f32.gmra.mxu0 %v3890
    %v4228 = vpop.f32.mrf.mxu0
    %v4229 = vadd.f32 %v4152, %v4228
    %4230 = vmatmul.f32.gmra.mxu0 %v3899
    %v4231 = vpop.f32.mrf.mxu0
    %v4232 = vadd.f32 %v4155, %v4231
    %4233 = vmatmul.f32.gmra.mxu0 %v3908
    %v4234 = vpop.f32.mrf.mxu0
    %v4235 = vadd.f32 %v4158, %v4234
    %4236 = vmatmul.f32.gmra.mxu0 %v3917
    %v4237 = vpop.f32.mrf.mxu0
    %v4238 = vadd.f32 %v4161, %v4237
    %4239 = vmatmul.f32.gmra.mxu0 %v3926
    %v4240 = vpop.f32.mrf.mxu0
    %v4241 = vadd.f32 %v4164, %v4240
    %4242 = vmatmul.f32.gmra.mxu0 %v3935
    %v4243 = vpop.f32.mrf.mxu0
    %v4244 = vadd.f32 %v4167, %v4243
    %4245 = vmatmul.f32.gmra.mxu0 %v3944
    %v4246 = vpop.f32.mrf.mxu0
    %v4247 = vadd.f32 %v4170, %v4246
    %4248 = vmatmul.f32.gmra.mxu0 %v3953
    %v4249 = vpop.f32.mrf.mxu0
    %v4250 = vadd.f32 %v4173, %v4249
    %4251 = vmatmul.f32.gmra.mxu0 %v3962
    %v4252 = vpop.f32.mrf.mxu0
    %v4253 = vadd.f32 %v4176, %v4252
    %4254 = vmatmul.f32.gmra.mxu0 %v3971
    %v4255 = vpop.f32.mrf.mxu0
    %v4256 = vadd.f32 %v4179, %v4255
    %4257 = vmatmul.f32.gmra.mxu0 %v3980
    %v4258 = vpop.f32.mrf.mxu0
    %v4259 = vadd.f32 %v4182, %v4258
    %4260 = vmatmul.f32.gmra.mxu0 %v3989
    %v4261 = vpop.f32.mrf.mxu0
    %v4262 = vadd.f32 %v4185, %v4261
    %4263 = vmatmul.f32.gmra.mxu0 %v3998
    %v4264 = vpop.f32.mrf.mxu0
    %v4265 = vadd.f32 %v4188, %v4264
    %4266 = vmatmul.f32.gmra.mxu0 %v4007
    %v4267 = vpop.f32.mrf.mxu0
    %v4268 = vadd.f32 %v4191, %v4267
    %4269 = vmatmul.f32.gmra.mxu0 %v4016
    %v4270 = vpop.f32.mrf.mxu0
    %v4271 = vadd.f32 %v4194, %v4270
    %4272 = vmatmul.f32.gmra.mxu0 %v4025
    %v4273 = vpop.f32.mrf.mxu0
    %v4274 = vadd.f32 %v4197, %v4273
    %4275 = vmatmul.f32.gmra.mxu0 %v4034
    %v4276 = vpop.f32.mrf.mxu0
    %v4277 = vadd.f32 %v4200, %v4276
    %4278 = vmatmul.f32.gmra.mxu0 %v4043
    %v4279 = vpop.f32.mrf.mxu0
    %v4280 = vadd.f32 %v4203, %v4279
    %4281 = vdwg.mxu0
    %4282 = vmatpush.msra.mxu0 %v3789
    %4283 = vmatpush.msra.mxu0 %v3788
    %4284 = vmatpush.msra.mxu0 %v3787
    %4285 = vmatpush.msra.mxu0 %v3786
    %4286 = vmatpush.msra.mxu0 %v3785
    %4287 = vmatpush.msra.mxu0 %v3784
    %4288 = vmatpush.msra.mxu0 %v3783
    %4289 = vmatpush.msra.mxu0 %v3782
    %4290 = vmatpush.msra.mxu0 %v3781
    %4291 = vmatpush.msra.mxu0 %v3780
    %4292 = vmatpush.msra.mxu0 %v3779
    %4293 = vmatpush.msra.mxu0 %v3778
    %4294 = vmatpush.msra.mxu0 %v3777
    %4295 = vmatpush.msra.mxu0 %v3776
    %4296 = vmatpush.msra.mxu0 %v3775
    %4297 = vmatpush.msra.mxu0 %v3774
    %4298 = vmatmul.f32.gmra.mxu0 %v3873
    %v4299 = vpop.f32.mrf.mxu0
    %v4300 = vadd.f32 %v4223, %v4299
    %4301 = vmatmul.f32.gmra.mxu0 %v3882
    %v4302 = vpop.f32.mrf.mxu0
    %v4303 = vadd.f32 %v4226, %v4302
    %4304 = vmatmul.f32.gmra.mxu0 %v3891
    %v4305 = vpop.f32.mrf.mxu0
    %v4306 = vadd.f32 %v4229, %v4305
    %4307 = vmatmul.f32.gmra.mxu0 %v3900
    %v4308 = vpop.f32.mrf.mxu0
    %v4309 = vadd.f32 %v4232, %v4308
    %4310 = vmatmul.f32.gmra.mxu0 %v3909
    %v4311 = vpop.f32.mrf.mxu0
    %v4312 = vadd.f32 %v4235, %v4311
    %4313 = vmatmul.f32.gmra.mxu0 %v3918
    %v4314 = vpop.f32.mrf.mxu0
    %v4315 = vadd.f32 %v4238, %v4314
    %4316 = vmatmul.f32.gmra.mxu0 %v3927
    %v4317 = vpop.f32.mrf.mxu0
    %v4318 = vadd.f32 %v4241, %v4317
    %4319 = vmatmul.f32.gmra.mxu0 %v3936
    %v4320 = vpop.f32.mrf.mxu0
    %v4321 = vadd.f32 %v4244, %v4320
    %4322 = vmatmul.f32.gmra.mxu0 %v3945
    %v4323 = vpop.f32.mrf.mxu0
    %v4324 = vadd.f32 %v4247, %v4323
    %4325 = vmatmul.f32.gmra.mxu0 %v3954
    %v4326 = vpop.f32.mrf.mxu0
    %v4327 = vadd.f32 %v4250, %v4326
    %4328 = vmatmul.f32.gmra.mxu0 %v3963
    %v4329 = vpop.f32.mrf.mxu0
    %v4330 = vadd.f32 %v4253, %v4329
    %4331 = vmatmul.f32.gmra.mxu0 %v3972
    %v4332 = vpop.f32.mrf.mxu0
    %v4333 = vadd.f32 %v4256, %v4332
    %4334 = vmatmul.f32.gmra.mxu0 %v3981
    %v4335 = vpop.f32.mrf.mxu0
    %v4336 = vadd.f32 %v4259, %v4335
    %4337 = vmatmul.f32.gmra.mxu0 %v3990
    %v4338 = vpop.f32.mrf.mxu0
    %v4339 = vadd.f32 %v4262, %v4338
    %4340 = vmatmul.f32.gmra.mxu0 %v3999
    %v4341 = vpop.f32.mrf.mxu0
    %v4342 = vadd.f32 %v4265, %v4341
    %4343 = vmatmul.f32.gmra.mxu0 %v4008
    %v4344 = vpop.f32.mrf.mxu0
    %v4345 = vadd.f32 %v4268, %v4344
    %4346 = vmatmul.f32.gmra.mxu0 %v4017
    %v4347 = vpop.f32.mrf.mxu0
    %v4348 = vadd.f32 %v4271, %v4347
    %4349 = vmatmul.f32.gmra.mxu0 %v4026
    %v4350 = vpop.f32.mrf.mxu0
    %v4351 = vadd.f32 %v4274, %v4350
    %4352 = vmatmul.f32.gmra.mxu0 %v4035
    %v4353 = vpop.f32.mrf.mxu0
    %v4354 = vadd.f32 %v4277, %v4353
    %4355 = vmatmul.f32.gmra.mxu0 %v4044
    %v4356 = vpop.f32.mrf.mxu0
    %v4357 = vadd.f32 %v4280, %v4356
    %4358 = vdwg.mxu0
    %4359 = vmatpush.msra.mxu0 %v3805
    %4360 = vmatpush.msra.mxu0 %v3804
    %4361 = vmatpush.msra.mxu0 %v3803
    %4362 = vmatpush.msra.mxu0 %v3802
    %4363 = vmatpush.msra.mxu0 %v3801
    %4364 = vmatpush.msra.mxu0 %v3800
    %4365 = vmatpush.msra.mxu0 %v3799
    %4366 = vmatpush.msra.mxu0 %v3798
    %4367 = vmatpush.msra.mxu0 %v3797
    %4368 = vmatpush.msra.mxu0 %v3796
    %4369 = vmatpush.msra.mxu0 %v3795
    %4370 = vmatpush.msra.mxu0 %v3794
    %4371 = vmatpush.msra.mxu0 %v3793
    %4372 = vmatpush.msra.mxu0 %v3792
    %4373 = vmatpush.msra.mxu0 %v3791
    %4374 = vmatpush.msra.mxu0 %v3790
    %4375 = vmatmul.f32.gmra.mxu0 %v3874
    %v4376 = vpop.f32.mrf.mxu0
    %v4377 = vadd.f32 %v4300, %v4376
    %4378 = vmatmul.f32.gmra.mxu0 %v3883
    %v4379 = vpop.f32.mrf.mxu0
    %v4380 = vadd.f32 %v4303, %v4379
    %4381 = vmatmul.f32.gmra.mxu0 %v3892
    %v4382 = vpop.f32.mrf.mxu0
    %v4383 = vadd.f32 %v4306, %v4382
    %4384 = vmatmul.f32.gmra.mxu0 %v3901
    %v4385 = vpop.f32.mrf.mxu0
    %v4386 = vadd.f32 %v4309, %v4385
    %4387 = vmatmul.f32.gmra.mxu0 %v3910
    %v4388 = vpop.f32.mrf.mxu0
    %v4389 = vadd.f32 %v4312, %v4388
    %4390 = vmatmul.f32.gmra.mxu0 %v3919
    %v4391 = vpop.f32.mrf.mxu0
    %v4392 = vadd.f32 %v4315, %v4391
    %4393 = vmatmul.f32.gmra.mxu0 %v3928
    %v4394 = vpop.f32.mrf.mxu0
    %v4395 = vadd.f32 %v4318, %v4394
    %4396 = vmatmul.f32.gmra.mxu0 %v3937
    %v4397 = vpop.f32.mrf.mxu0
    %v4398 = vadd.f32 %v4321, %v4397
    %4399 = vmatmul.f32.gmra.mxu0 %v3946
    %v4400 = vpop.f32.mrf.mxu0
    %v4401 = vadd.f32 %v4324, %v4400
    %4402 = vmatmul.f32.gmra.mxu0 %v3955
    %v4403 = vpop.f32.mrf.mxu0
    %v4404 = vadd.f32 %v4327, %v4403
    %4405 = vmatmul.f32.gmra.mxu0 %v3964
    %v4406 = vpop.f32.mrf.mxu0
    %v4407 = vadd.f32 %v4330, %v4406
    %4408 = vmatmul.f32.gmra.mxu0 %v3973
    %v4409 = vpop.f32.mrf.mxu0
    %v4410 = vadd.f32 %v4333, %v4409
    %4411 = vmatmul.f32.gmra.mxu0 %v3982
    %v4412 = vpop.f32.mrf.mxu0
    %v4413 = vadd.f32 %v4336, %v4412
    %4414 = vmatmul.f32.gmra.mxu0 %v3991
    %v4415 = vpop.f32.mrf.mxu0
    %v4416 = vadd.f32 %v4339, %v4415
    %4417 = vmatmul.f32.gmra.mxu0 %v4000
    %v4418 = vpop.f32.mrf.mxu0
    %v4419 = vadd.f32 %v4342, %v4418
    %4420 = vmatmul.f32.gmra.mxu0 %v4009
    %v4421 = vpop.f32.mrf.mxu0
    %v4422 = vadd.f32 %v4345, %v4421
    %4423 = vmatmul.f32.gmra.mxu0 %v4018
    %v4424 = vpop.f32.mrf.mxu0
    %v4425 = vadd.f32 %v4348, %v4424
    %4426 = vmatmul.f32.gmra.mxu0 %v4027
    %v4427 = vpop.f32.mrf.mxu0
    %v4428 = vadd.f32 %v4351, %v4427
    %4429 = vmatmul.f32.gmra.mxu0 %v4036
    %v4430 = vpop.f32.mrf.mxu0
    %v4431 = vadd.f32 %v4354, %v4430
    %4432 = vmatmul.f32.gmra.mxu0 %v4045
    %v4433 = vpop.f32.mrf.mxu0
    %v4434 = vadd.f32 %v4357, %v4433
    %4435 = vdwg.mxu0
    %4436 = vmatpush.msra.mxu0 %v3821
    %4437 = vmatpush.msra.mxu0 %v3820
    %4438 = vmatpush.msra.mxu0 %v3819
    %4439 = vmatpush.msra.mxu0 %v3818
    %4440 = vmatpush.msra.mxu0 %v3817
    %4441 = vmatpush.msra.mxu0 %v3816
    %4442 = vmatpush.msra.mxu0 %v3815
    %4443 = vmatpush.msra.mxu0 %v3814
    %4444 = vmatpush.msra.mxu0 %v3813
    %4445 = vmatpush.msra.mxu0 %v3812
    %4446 = vmatpush.msra.mxu0 %v3811
    %4447 = vmatpush.msra.mxu0 %v3810
    %4448 = vmatpush.msra.mxu0 %v3809
    %4449 = vmatpush.msra.mxu0 %v3808
    %4450 = vmatpush.msra.mxu0 %v3807
    %4451 = vmatpush.msra.mxu0 %v3806
    %4452 = vmatmul.f32.gmra.mxu0 %v3875
    %v4453 = vpop.f32.mrf.mxu0
    %v4454 = vadd.f32 %v4377, %v4453
    %4455 = vmatmul.f32.gmra.mxu0 %v3884
    %v4456 = vpop.f32.mrf.mxu0
    %v4457 = vadd.f32 %v4380, %v4456
    %4458 = vmatmul.f32.gmra.mxu0 %v3893
    %v4459 = vpop.f32.mrf.mxu0
    %v4460 = vadd.f32 %v4383, %v4459
    %4461 = vmatmul.f32.gmra.mxu0 %v3902
    %v4462 = vpop.f32.mrf.mxu0
    %v4463 = vadd.f32 %v4386, %v4462
    %4464 = vmatmul.f32.gmra.mxu0 %v3911
    %v4465 = vpop.f32.mrf.mxu0
    %v4466 = vadd.f32 %v4389, %v4465
    %4467 = vmatmul.f32.gmra.mxu0 %v3920
    %v4468 = vpop.f32.mrf.mxu0
    %v4469 = vadd.f32 %v4392, %v4468
    %4470 = vmatmul.f32.gmra.mxu0 %v3929
    %v4471 = vpop.f32.mrf.mxu0
    %v4472 = vadd.f32 %v4395, %v4471
    %4473 = vmatmul.f32.gmra.mxu0 %v3938
    %v4474 = vpop.f32.mrf.mxu0
    %v4475 = vadd.f32 %v4398, %v4474
    %4476 = vmatmul.f32.gmra.mxu0 %v3947
    %v4477 = vpop.f32.mrf.mxu0
    %v4478 = vadd.f32 %v4401, %v4477
    %4479 = vmatmul.f32.gmra.mxu0 %v3956
    %v4480 = vpop.f32.mrf.mxu0
    %v4481 = vadd.f32 %v4404, %v4480
    %4482 = vmatmul.f32.gmra.mxu0 %v3965
    %v4483 = vpop.f32.mrf.mxu0
    %v4484 = vadd.f32 %v4407, %v4483
    %4485 = vmatmul.f32.gmra.mxu0 %v3974
    %v4486 = vpop.f32.mrf.mxu0
    %v4487 = vadd.f32 %v4410, %v4486
    %4488 = vmatmul.f32.gmra.mxu0 %v3983
    %v4489 = vpop.f32.mrf.mxu0
    %v4490 = vadd.f32 %v4413, %v4489
    %4491 = vmatmul.f32.gmra.mxu0 %v3992
    %v4492 = vpop.f32.mrf.mxu0
    %v4493 = vadd.f32 %v4416, %v4492
    %4494 = vmatmul.f32.gmra.mxu0 %v4001
    %v4495 = vpop.f32.mrf.mxu0
    %v4496 = vadd.f32 %v4419, %v4495
    %4497 = vmatmul.f32.gmra.mxu0 %v4010
    %v4498 = vpop.f32.mrf.mxu0
    %v4499 = vadd.f32 %v4422, %v4498
    %4500 = vmatmul.f32.gmra.mxu0 %v4019
    %v4501 = vpop.f32.mrf.mxu0
    %v4502 = vadd.f32 %v4425, %v4501
    %4503 = vmatmul.f32.gmra.mxu0 %v4028
    %v4504 = vpop.f32.mrf.mxu0
    %v4505 = vadd.f32 %v4428, %v4504
    %4506 = vmatmul.f32.gmra.mxu0 %v4037
    %v4507 = vpop.f32.mrf.mxu0
    %v4508 = vadd.f32 %v4431, %v4507
    %4509 = vmatmul.f32.gmra.mxu0 %v4046
    %v4510 = vpop.f32.mrf.mxu0
    %v4511 = vadd.f32 %v4434, %v4510
    %4512 = vdwg.mxu0
    %4513 = vmatpush.msra.mxu0 %v3837
    %4514 = vmatpush.msra.mxu0 %v3836
    %4515 = vmatpush.msra.mxu0 %v3835
    %4516 = vmatpush.msra.mxu0 %v3834
    %4517 = vmatpush.msra.mxu0 %v3833
    %4518 = vmatpush.msra.mxu0 %v3832
    %4519 = vmatpush.msra.mxu0 %v3831
    %4520 = vmatpush.msra.mxu0 %v3830
    %4521 = vmatpush.msra.mxu0 %v3829
    %4522 = vmatpush.msra.mxu0 %v3828
    %4523 = vmatpush.msra.mxu0 %v3827
    %4524 = vmatpush.msra.mxu0 %v3826
    %4525 = vmatpush.msra.mxu0 %v3825
    %4526 = vmatpush.msra.mxu0 %v3824
    %4527 = vmatpush.msra.mxu0 %v3823
    %4528 = vmatpush.msra.mxu0 %v3822
    %4529 = vmatmul.f32.gmra.mxu0 %v3876
    %v4530 = vpop.f32.mrf.mxu0
    %v4531 = vadd.f32 %v4454, %v4530
    %4532 = vmatmul.f32.gmra.mxu0 %v3885
    %v4533 = vpop.f32.mrf.mxu0
    %v4534 = vadd.f32 %v4457, %v4533
    %4535 = vmatmul.f32.gmra.mxu0 %v3894
    %v4536 = vpop.f32.mrf.mxu0
    %v4537 = vadd.f32 %v4460, %v4536
    %4538 = vmatmul.f32.gmra.mxu0 %v3903
    %v4539 = vpop.f32.mrf.mxu0
    %v4540 = vadd.f32 %v4463, %v4539
    %4541 = vmatmul.f32.gmra.mxu0 %v3912
    %v4542 = vpop.f32.mrf.mxu0
    %v4543 = vadd.f32 %v4466, %v4542
    %4544 = vmatmul.f32.gmra.mxu0 %v3921
    %v4545 = vpop.f32.mrf.mxu0
    %v4546 = vadd.f32 %v4469, %v4545
    %4547 = vmatmul.f32.gmra.mxu0 %v3930
    %v4548 = vpop.f32.mrf.mxu0
    %v4549 = vadd.f32 %v4472, %v4548
    %4550 = vmatmul.f32.gmra.mxu0 %v3939
    %v4551 = vpop.f32.mrf.mxu0
    %v4552 = vadd.f32 %v4475, %v4551
    %4553 = vmatmul.f32.gmra.mxu0 %v3948
    %v4554 = vpop.f32.mrf.mxu0
    %v4555 = vadd.f32 %v4478, %v4554
    %4556 = vmatmul.f32.gmra.mxu0 %v3957
    %v4557 = vpop.f32.mrf.mxu0
    %v4558 = vadd.f32 %v4481, %v4557
    %4559 = vmatmul.f32.gmra.mxu0 %v3966
    %v4560 = vpop.f32.mrf.mxu0
    %v4561 = vadd.f32 %v4484, %v4560
    %4562 = vmatmul.f32.gmra.mxu0 %v3975
    %v4563 = vpop.f32.mrf.mxu0
    %v4564 = vadd.f32 %v4487, %v4563
    %4565 = vmatmul.f32.gmra.mxu0 %v3984
    %v4566 = vpop.f32.mrf.mxu0
    %v4567 = vadd.f32 %v4490, %v4566
    %4568 = vmatmul.f32.gmra.mxu0 %v3993
    %v4569 = vpop.f32.mrf.mxu0
    %v4570 = vadd.f32 %v4493, %v4569
    %4571 = vmatmul.f32.gmra.mxu0 %v4002
    %v4572 = vpop.f32.mrf.mxu0
    %v4573 = vadd.f32 %v4496, %v4572
    %4574 = vmatmul.f32.gmra.mxu0 %v4011
    %v4575 = vpop.f32.mrf.mxu0
    %v4576 = vadd.f32 %v4499, %v4575
    %4577 = vmatmul.f32.gmra.mxu0 %v4020
    %v4578 = vpop.f32.mrf.mxu0
    %v4579 = vadd.f32 %v4502, %v4578
    %4580 = vmatmul.f32.gmra.mxu0 %v4029
    %v4581 = vpop.f32.mrf.mxu0
    %v4582 = vadd.f32 %v4505, %v4581
    %4583 = vmatmul.f32.gmra.mxu0 %v4038
    %v4584 = vpop.f32.mrf.mxu0
    %v4585 = vadd.f32 %v4508, %v4584
    %4586 = vmatmul.f32.gmra.mxu0 %v4047
    %v4587 = vpop.f32.mrf.mxu0
    %v4588 = vadd.f32 %v4511, %v4587
    %4589 = vdwg.mxu0
    %4590 = vmatpush.msra.mxu0 %v3853
    %4591 = vmatpush.msra.mxu0 %v3852
    %4592 = vmatpush.msra.mxu0 %v3851
    %4593 = vmatpush.msra.mxu0 %v3850
    %4594 = vmatpush.msra.mxu0 %v3849
    %4595 = vmatpush.msra.mxu0 %v3848
    %4596 = vmatpush.msra.mxu0 %v3847
    %4597 = vmatpush.msra.mxu0 %v3846
    %4598 = vmatpush.msra.mxu0 %v3845
    %4599 = vmatpush.msra.mxu0 %v3844
    %4600 = vmatpush.msra.mxu0 %v3843
    %4601 = vmatpush.msra.mxu0 %v3842
    %4602 = vmatpush.msra.mxu0 %v3841
    %4603 = vmatpush.msra.mxu0 %v3840
    %4604 = vmatpush.msra.mxu0 %v3839
    %4605 = vmatpush.msra.mxu0 %v3838
    %4606 = vmatmul.f32.gmra.mxu0 %v3877
    %v4607 = vpop.f32.mrf.mxu0
    %v4608 = vadd.f32 %v4531, %v4607
    %4609 = vmatmul.f32.gmra.mxu0 %v3886
    %v4610 = vpop.f32.mrf.mxu0
    %v4611 = vadd.f32 %v4534, %v4610
    %4612 = vmatmul.f32.gmra.mxu0 %v3895
    %v4613 = vpop.f32.mrf.mxu0
    %v4614 = vadd.f32 %v4537, %v4613
    %4615 = vmatmul.f32.gmra.mxu0 %v3904
    %v4616 = vpop.f32.mrf.mxu0
    %v4617 = vadd.f32 %v4540, %v4616
    %4618 = vmatmul.f32.gmra.mxu0 %v3913
    %v4619 = vpop.f32.mrf.mxu0
    %v4620 = vadd.f32 %v4543, %v4619
    %4621 = vmatmul.f32.gmra.mxu0 %v3922
    %v4622 = vpop.f32.mrf.mxu0
    %v4623 = vadd.f32 %v4546, %v4622
    %4624 = vmatmul.f32.gmra.mxu0 %v3931
    %v4625 = vpop.f32.mrf.mxu0
    %v4626 = vadd.f32 %v4549, %v4625
    %4627 = vmatmul.f32.gmra.mxu0 %v3940
    %v4628 = vpop.f32.mrf.mxu0
    %v4629 = vadd.f32 %v4552, %v4628
    %4630 = vmatmul.f32.gmra.mxu0 %v3949
    %v4631 = vpop.f32.mrf.mxu0
    %v4632 = vadd.f32 %v4555, %v4631
    %4633 = vmatmul.f32.gmra.mxu0 %v3958
    %v4634 = vpop.f32.mrf.mxu0
    %v4635 = vadd.f32 %v4558, %v4634
    %4636 = vmatmul.f32.gmra.mxu0 %v3967
    %v4637 = vpop.f32.mrf.mxu0
    %v4638 = vadd.f32 %v4561, %v4637
    %4639 = vmatmul.f32.gmra.mxu0 %v3976
    %v4640 = vpop.f32.mrf.mxu0
    %v4641 = vadd.f32 %v4564, %v4640
    %4642 = vmatmul.f32.gmra.mxu0 %v3985
    %v4643 = vpop.f32.mrf.mxu0
    %v4644 = vadd.f32 %v4567, %v4643
    %4645 = vmatmul.f32.gmra.mxu0 %v3994
    %v4646 = vpop.f32.mrf.mxu0
    %v4647 = vadd.f32 %v4570, %v4646
    %4648 = vmatmul.f32.gmra.mxu0 %v4003
    %v4649 = vpop.f32.mrf.mxu0
    %v4650 = vadd.f32 %v4573, %v4649
    %4651 = vmatmul.f32.gmra.mxu0 %v4012
    %v4652 = vpop.f32.mrf.mxu0
    %v4653 = vadd.f32 %v4576, %v4652
    %4654 = vmatmul.f32.gmra.mxu0 %v4021
    %v4655 = vpop.f32.mrf.mxu0
    %v4656 = vadd.f32 %v4579, %v4655
    %4657 = vmatmul.f32.gmra.mxu0 %v4030
    %v4658 = vpop.f32.mrf.mxu0
    %v4659 = vadd.f32 %v4582, %v4658
    %4660 = vmatmul.f32.gmra.mxu0 %v4039
    %v4661 = vpop.f32.mrf.mxu0
    %v4662 = vadd.f32 %v4585, %v4661
    %4663 = vmatmul.f32.gmra.mxu0 %v4048
    %v4664 = vpop.f32.mrf.mxu0
    %v4665 = vadd.f32 %v4588, %v4664
    %4666 = vdwg.mxu0
    %4667 = vmatpush.msra.mxu0 %v3869
    %4668 = vmatpush.msra.mxu0 %v3868
    %4669 = vmatpush.msra.mxu0 %v3867
    %4670 = vmatpush.msra.mxu0 %v3866
    %4671 = vmatpush.msra.mxu0 %v3865
    %4672 = vmatpush.msra.mxu0 %v3864
    %4673 = vmatpush.msra.mxu0 %v3863
    %4674 = vmatpush.msra.mxu0 %v3862
    %4675 = vmatpush.msra.mxu0 %v3861
    %4676 = vmatpush.msra.mxu0 %v3860
    %4677 = vmatpush.msra.mxu0 %v3859
    %4678 = vmatpush.msra.mxu0 %v3858
    %4679 = vmatpush.msra.mxu0 %v3857
    %4680 = vmatpush.msra.mxu0 %v3856
    %4681 = vmatpush.msra.mxu0 %v3855
    %4682 = vmatpush.msra.mxu0 %v3854
    %4683 = vmatmul.f32.gmra.mxu0 %v3878
    %v4684 = vpop.f32.mrf.mxu0
    %v4685 = vadd.f32 %v4608, %v4684
    %4686 = vmatmul.f32.gmra.mxu0 %v3887
    %v4687 = vpop.f32.mrf.mxu0
    %v4688 = vadd.f32 %v4611, %v4687
    %4689 = vmatmul.f32.gmra.mxu0 %v3896
    %v4690 = vpop.f32.mrf.mxu0
    %v4691 = vadd.f32 %v4614, %v4690
    %4692 = vmatmul.f32.gmra.mxu0 %v3905
    %v4693 = vpop.f32.mrf.mxu0
    %v4694 = vadd.f32 %v4617, %v4693
    %4695 = vmatmul.f32.gmra.mxu0 %v3914
    %v4696 = vpop.f32.mrf.mxu0
    %v4697 = vadd.f32 %v4620, %v4696
    %4698 = vmatmul.f32.gmra.mxu0 %v3923
    %v4699 = vpop.f32.mrf.mxu0
    %v4700 = vadd.f32 %v4623, %v4699
    %4701 = vmatmul.f32.gmra.mxu0 %v3932
    %v4702 = vpop.f32.mrf.mxu0
    %v4703 = vadd.f32 %v4626, %v4702
    %4704 = vmatmul.f32.gmra.mxu0 %v3941
    %v4705 = vpop.f32.mrf.mxu0
    %v4706 = vadd.f32 %v4629, %v4705
    %4707 = vmatmul.f32.gmra.mxu0 %v3950
    %v4708 = vpop.f32.mrf.mxu0
    %v4709 = vadd.f32 %v4632, %v4708
    %4710 = vmatmul.f32.gmra.mxu0 %v3959
    %v4711 = vpop.f32.mrf.mxu0
    %v4712 = vadd.f32 %v4635, %v4711
    %4713 = vmatmul.f32.gmra.mxu0 %v3968
    %v4714 = vpop.f32.mrf.mxu0
    %v4715 = vadd.f32 %v4638, %v4714
    %4716 = vmatmul.f32.gmra.mxu0 %v3977
    %v4717 = vpop.f32.mrf.mxu0
    %v4718 = vadd.f32 %v4641, %v4717
    %4719 = vmatmul.f32.gmra.mxu0 %v3986
    %v4720 = vpop.f32.mrf.mxu0
    %v4721 = vadd.f32 %v4644, %v4720
    %4722 = vmatmul.f32.gmra.mxu0 %v3995
    %v4723 = vpop.f32.mrf.mxu0
    %v4724 = vadd.f32 %v4647, %v4723
    %4725 = vmatmul.f32.gmra.mxu0 %v4004
    %v4726 = vpop.f32.mrf.mxu0
    %v4727 = vadd.f32 %v4650, %v4726
    %4728 = vmatmul.f32.gmra.mxu0 %v4013
    %v4729 = vpop.f32.mrf.mxu0
    %v4730 = vadd.f32 %v4653, %v4729
    %4731 = vmatmul.f32.gmra.mxu0 %v4022
    %v4732 = vpop.f32.mrf.mxu0
    %v4733 = vadd.f32 %v4656, %v4732
    %4734 = vmatmul.f32.gmra.mxu0 %v4031
    %v4735 = vpop.f32.mrf.mxu0
    %v4736 = vadd.f32 %v4659, %v4735
    %4737 = vmatmul.f32.gmra.mxu0 %v4040
    %v4738 = vpop.f32.mrf.mxu0
    %v4739 = vadd.f32 %v4662, %v4738
    %4740 = vmatmul.f32.gmra.mxu0 %v4049
    %v4741 = vpop.f32.mrf.mxu0
    %v4742 = vadd.f32 %v4665, %v4741
    %4743 = vdwg.mxu0
    %v4744 = vmax.f32 %v4685, 0.0
    %v4745 = vmax.f32 %v4688, 0.0
    %v4746 = vmax.f32 %v4691, 0.0
    %v4747 = vmax.f32 %v4694, 0.0
    %v4748 = vmax.f32 %v4697, 0.0
    %v4749 = vmax.f32 %v4700, 0.0
    %v4750 = vmax.f32 %v4703, 0.0
    %v4751 = vmax.f32 %v4706, 0.0
    %v4752 = vmax.f32 %v4709, 0.0
    %v4753 = vmax.f32 %v4712, 0.0
    %v4754 = vmax.f32 %v4715, 0.0
    %v4755 = vmax.f32 %v4718, 0.0
    %v4756 = vmax.f32 %v4721, 0.0
    %v4757 = vmax.f32 %v4724, 0.0
    %v4758 = vmax.f32 %v4727, 0.0
    %v4759 = vmax.f32 %v4730, 0.0
    %v4760 = vmax.f32 %v4733, 0.0
    %v4761 = vmax.f32 %v4736, 0.0
    %v4762 = vmax.f32 %v4739, 0.0
    %v4763 = vmax.f32 %v4742, 0.0
    %v4764 = vperm.slane %v48, 3
    %v4765 = vmul.f32 %v4744, %v4764
    %v4766 = vmul.f32 %v4745, %v4764
    %v4767 = vmul.f32 %v4746, %v4764
    %v4768 = vmul.f32 %v4747, %v4764
    %v4769 = vmul.f32 %v4748, %v4764
    %v4770 = vmul.f32 %v4749, %v4764
    %v4771 = vmul.f32 %v4750, %v4764
    %v4772 = vmul.f32 %v4751, %v4764
    %v4773 = vmul.f32 %v4752, %v4764
    %v4774 = vmul.f32 %v4753, %v4764
    %v4775 = vmul.f32 %v4754, %v4764
    %v4776 = vmul.f32 %v4755, %v4764
    %v4777 = vmul.f32 %v4756, %v4764
    %v4778 = vmul.f32 %v4757, %v4764
    %v4779 = vmul.f32 %v4758, %v4764
    %v4780 = vmul.f32 %v4759, %v4764
    %v4781 = vmul.f32 %v4760, %v4764
    %v4782 = vmul.f32 %v4761, %v4764
    %v4783 = vmul.f32 %v4762, %v4764
    %v4784 = vmul.f32 %v4763, %v4764
    %4785 = vadd.xlane.f32.xlu0 %v4765
    %v4786 = vpop.xlane.xlu0 %4785
    %4787 = vadd.xlane.f32.xlu0 %v4766
    %v4788 = vpop.xlane.xlu0 %4787
    %4789 = vadd.xlane.f32.xlu0 %v4767
    %v4790 = vpop.xlane.xlu0 %4789
    %4791 = vadd.xlane.f32.xlu0 %v4768
    %v4792 = vpop.xlane.xlu0 %4791
    %4793 = vadd.xlane.f32.xlu0 %v4769
    %v4794 = vpop.xlane.xlu0 %4793
    %4795 = vadd.xlane.f32.xlu0 %v4770
    %v4796 = vpop.xlane.xlu0 %4795
    %4797 = vadd.xlane.f32.xlu0 %v4771
    %v4798 = vpop.xlane.xlu0 %4797
    %4799 = vadd.xlane.f32.xlu0 %v4772
    %v4800 = vpop.xlane.xlu0 %4799
    %4801 = vadd.xlane.f32.xlu0 %v4773
    %v4802 = vpop.xlane.xlu0 %4801
    %4803 = vadd.xlane.f32.xlu0 %v4774
    %v4804 = vpop.xlane.xlu0 %4803
    %4805 = vadd.xlane.f32.xlu0 %v4775
    %v4806 = vpop.xlane.xlu0 %4805
    %4807 = vadd.xlane.f32.xlu0 %v4776
    %v4808 = vpop.xlane.xlu0 %4807
    %4809 = vadd.xlane.f32.xlu0 %v4777
    %v4810 = vpop.xlane.xlu0 %4809
    %4811 = vadd.xlane.f32.xlu0 %v4778
    %v4812 = vpop.xlane.xlu0 %4811
    %4813 = vadd.xlane.f32.xlu0 %v4779
    %v4814 = vpop.xlane.xlu0 %4813
    %4815 = vadd.xlane.f32.xlu0 %v4780
    %v4816 = vpop.xlane.xlu0 %4815
    %4817 = vadd.xlane.f32.xlu0 %v4781
    %v4818 = vpop.xlane.xlu0 %4817
    %4819 = vadd.xlane.f32.xlu0 %v4782
    %v4820 = vpop.xlane.xlu0 %4819
    %4821 = vadd.xlane.f32.xlu0 %v4783
    %v4822 = vpop.xlane.xlu0 %4821
    %4823 = vadd.xlane.f32.xlu0 %v4784
    %v4824 = vpop.xlane.xlu0 %4823
    %v4825 = vperm.slane %v48, 4
    %v4826 = vadd.f32 %v4786, %v4825
    %v4827 = vadd.f32 %v4788, %v4825
    %v4828 = vadd.f32 %v4790, %v4825
    %v4829 = vadd.f32 %v4792, %v4825
    %v4830 = vadd.f32 %v4794, %v4825
    %v4831 = vadd.f32 %v4796, %v4825
    %v4832 = vadd.f32 %v4798, %v4825
    %v4833 = vadd.f32 %v4800, %v4825
    %v4834 = vadd.f32 %v4802, %v4825
    %v4835 = vadd.f32 %v4804, %v4825
    %v4836 = vadd.f32 %v4806, %v4825
    %v4837 = vadd.f32 %v4808, %v4825
    %v4838 = vadd.f32 %v4810, %v4825
    %v4839 = vadd.f32 %v4812, %v4825
    %v4840 = vadd.f32 %v4814, %v4825
    %v4841 = vadd.f32 %v4816, %v4825
    %v4842 = vadd.f32 %v4818, %v4825
    %v4843 = vadd.f32 %v4820, %v4825
    %v4844 = vadd.f32 %v4822, %v4825
    %v4845 = vadd.f32 %v4824, %v4825
    %v4846 = vmax.f32 %v4826, 0.0
    %v4847 = vmax.f32 %v4827, 0.0
    %v4848 = vmax.f32 %v4828, 0.0
    %v4849 = vmax.f32 %v4829, 0.0
    %v4850 = vmax.f32 %v4830, 0.0
    %v4851 = vmax.f32 %v4831, 0.0
    %v4852 = vmax.f32 %v4832, 0.0
    %v4853 = vmax.f32 %v4833, 0.0
    %v4854 = vmax.f32 %v4834, 0.0
    %v4855 = vmax.f32 %v4835, 0.0
    %v4856 = vmax.f32 %v4836, 0.0
    %v4857 = vmax.f32 %v4837, 0.0
    %v4858 = vmax.f32 %v4838, 0.0
    %v4859 = vmax.f32 %v4839, 0.0
    %v4860 = vmax.f32 %v4840, 0.0
    %v4861 = vmax.f32 %v4841, 0.0
    %v4862 = vmax.f32 %v4842, 0.0
    %v4863 = vmax.f32 %v4843, 0.0
    %v4864 = vmax.f32 %v4844, 0.0
    %v4865 = vmax.f32 %v4845, 0.0
    %v4866 = vld [vmem:[#allocation6 + $0x910] sm:$0xff]
    %v4867 = vld [vmem:[#allocation6 + $0x918] sm:$0xff]
    %v4868 = vld [vmem:[#allocation6 + $0x920] sm:$0xff]
    %v4869 = vld [vmem:[#allocation6 + $0x928] sm:$0xff]
    %v4870 = vld [vmem:[#allocation6 + $0x930] sm:$0xff]
    %v4871 = vld [vmem:[#allocation6 + $0x938] sm:$0xff]
    %v4872 = vld [vmem:[#allocation6 + $0x940] sm:$0xff]
    %v4873 = vld [vmem:[#allocation6 + $0x948] sm:$0xff]
    %v4874 = vld [vmem:[#allocation6 + $0x950] sm:$0xff]
    %v4875 = vld [vmem:[#allocation6 + $0x958] sm:$0xff]
    %v4876 = vld [vmem:[#allocation6 + $0x960] sm:$0xff]
    %v4877 = vld [vmem:[#allocation6 + $0x968] sm:$0xff]
    %v4878 = vld [vmem:[#allocation6 + $0x970] sm:$0xff]
    %v4879 = vld [vmem:[#allocation6 + $0x978] sm:$0xff]
    %v4880 = vld [vmem:[#allocation6 + $0x980] sm:$0xff]
    %v4881 = vld [vmem:[#allocation6 + $0x988] sm:$0xff]
    %v4882 = vld [vmem:[#allocation6 + $0x990] sm:$0xff]
    %v4883 = vld [vmem:[#allocation6 + $0x998] sm:$0xff]
    %v4884 = vld [vmem:[#allocation6 + $0x9a0] sm:$0xff]
    %v4885 = vld [vmem:[#allocation6 + $0x9a8] sm:$0xff]
    %4887 = vset.pattern.permute.xlu0 0
    %4888 = vperm.xlu0 %4887, %v4846
    %v4889 = vpop.permute.xlu0 %4888
    %4892 = vset.pattern.permute.xlu0 0
    %4893 = vperm.xlu0 %4892, %v4847
    %v4894 = vpop.permute.xlu0 %4893
    %4897 = vset.pattern.permute.xlu0 0
    %4898 = vperm.xlu0 %4897, %v4848
    %v4899 = vpop.permute.xlu0 %4898
    %4902 = vset.pattern.permute.xlu0 0
    %4903 = vperm.xlu0 %4902, %v4849
    %v4904 = vpop.permute.xlu0 %4903
    %4907 = vset.pattern.permute.xlu0 0
    %4908 = vperm.xlu0 %4907, %v4850
    %v4909 = vpop.permute.xlu0 %4908
    %4912 = vset.pattern.permute.xlu0 0
    %4913 = vperm.xlu0 %4912, %v4851
    %v4914 = vpop.permute.xlu0 %4913
    %4917 = vset.pattern.permute.xlu0 0
    %4918 = vperm.xlu0 %4917, %v4852
    %v4919 = vpop.permute.xlu0 %4918
    %4922 = vset.pattern.permute.xlu0 0
    %4923 = vperm.xlu0 %4922, %v4853
    %v4924 = vpop.permute.xlu0 %4923
    %4927 = vset.pattern.permute.xlu0 0
    %4928 = vperm.xlu0 %4927, %v4854
    %v4929 = vpop.permute.xlu0 %4928
    %4932 = vset.pattern.permute.xlu0 0
    %4933 = vperm.xlu0 %4932, %v4855
    %v4934 = vpop.permute.xlu0 %4933
    %4937 = vset.pattern.permute.xlu0 0
    %4938 = vperm.xlu0 %4937, %v4856
    %v4939 = vpop.permute.xlu0 %4938
    %4942 = vset.pattern.permute.xlu0 0
    %4943 = vperm.xlu0 %4942, %v4857
    %v4944 = vpop.permute.xlu0 %4943
    %4947 = vset.pattern.permute.xlu0 0
    %4948 = vperm.xlu0 %4947, %v4858
    %v4949 = vpop.permute.xlu0 %4948
    %4952 = vset.pattern.permute.xlu0 0
    %4953 = vperm.xlu0 %4952, %v4859
    %v4954 = vpop.permute.xlu0 %4953
    %4957 = vset.pattern.permute.xlu0 0
    %4958 = vperm.xlu0 %4957, %v4860
    %v4959 = vpop.permute.xlu0 %4958
    %4962 = vset.pattern.permute.xlu0 0
    %4963 = vperm.xlu0 %4962, %v4861
    %v4964 = vpop.permute.xlu0 %4963
    %4967 = vset.pattern.permute.xlu0 0
    %4968 = vperm.xlu0 %4967, %v4862
    %v4969 = vpop.permute.xlu0 %4968
    %4972 = vset.pattern.permute.xlu0 0
    %4973 = vperm.xlu0 %4972, %v4863
    %v4974 = vpop.permute.xlu0 %4973
    %4977 = vset.pattern.permute.xlu0 0
    %4978 = vperm.xlu0 %4977, %v4864
    %v4979 = vpop.permute.xlu0 %4978
    %4982 = vset.pattern.permute.xlu0 0
    %4983 = vperm.xlu0 %4982, %v4865
    %v4984 = vpop.permute.xlu0 %4983
    %v4986 = vmul.f32 %v4889, %v4866
    %v4987 = vmul.f32 %v4894, %v4867
    %v4988 = vmul.f32 %v4899, %v4868
    %v4989 = vmul.f32 %v4904, %v4869
    %v4990 = vmul.f32 %v4909, %v4870
    %v4991 = vmul.f32 %v4914, %v4871
    %v4992 = vmul.f32 %v4919, %v4872
    %v4993 = vmul.f32 %v4924, %v4873
    %v4994 = vmul.f32 %v4929, %v4874
    %v4995 = vmul.f32 %v4934, %v4875
    %v4996 = vmul.f32 %v4939, %v4876
    %v4997 = vmul.f32 %v4944, %v4877
    %v4998 = vmul.f32 %v4949, %v4878
    %v4999 = vmul.f32 %v4954, %v4879
    %v5000 = vmul.f32 %v4959, %v4880
    %v5001 = vmul.f32 %v4964, %v4881
    %v5002 = vmul.f32 %v4969, %v4882
    %v5003 = vmul.f32 %v4974, %v4883
    %v5004 = vmul.f32 %v4979, %v4884
    %v5005 = vmul.f32 %v4984, %v4885
    %v5006 = vsel %vm204, %v4986, 0.0
    %v5007 = vsel %vm204, %v4987, 0.0
    %v5008 = vadd.f32 %v5006, %v5007
    %v5009 = vsel %vm204, %v4988, 0.0
    %v5010 = vadd.f32 %v5008, %v5009
    %v5011 = vsel %vm204, %v4989, 0.0
    %v5012 = vadd.f32 %v5010, %v5011
    %v5013 = vsel %vm204, %v4990, 0.0
    %v5014 = vadd.f32 %v5012, %v5013
    %v5015 = vsel %vm204, %v4991, 0.0
    %v5016 = vadd.f32 %v5014, %v5015
    %v5017 = vsel %vm204, %v4992, 0.0
    %v5018 = vadd.f32 %v5016, %v5017
    %v5019 = vsel %vm204, %v4993, 0.0
    %v5020 = vadd.f32 %v5018, %v5019
    %v5021 = vsel %vm204, %v4994, 0.0
    %v5022 = vadd.f32 %v5020, %v5021
    %v5023 = vsel %vm204, %v4995, 0.0
    %v5024 = vadd.f32 %v5022, %v5023
    %v5025 = vrot.slane %v5024, 4
    %v5026 = vadd.f32 %v5024, %v5025
    %v5027 = vrot.slane %v5026, 2
    %v5028 = vadd.f32 %v5026, %v5027
    %v5029 = vrot.slane %v5028, 1
    %v5030 = vadd.f32 %v5028, %v5029
    %v5031 = vsel %vm204, %v4996, 0.0
    %v5032 = vsel %vm204, %v4997, 0.0
    %v5033 = vadd.f32 %v5031, %v5032
    %v5034 = vsel %vm204, %v4998, 0.0
    %v5035 = vadd.f32 %v5033, %v5034
    %v5036 = vsel %vm204, %v4999, 0.0
    %v5037 = vadd.f32 %v5035, %v5036
    %v5038 = vsel %vm204, %v5000, 0.0
    %v5039 = vadd.f32 %v5037, %v5038
    %v5040 = vsel %vm204, %v5001, 0.0
    %v5041 = vadd.f32 %v5039, %v5040
    %v5042 = vsel %vm204, %v5002, 0.0
    %v5043 = vadd.f32 %v5041, %v5042
    %v5044 = vsel %vm204, %v5003, 0.0
    %v5045 = vadd.f32 %v5043, %v5044
    %v5046 = vsel %vm204, %v5004, 0.0
    %v5047 = vadd.f32 %v5045, %v5046
    %v5048 = vsel %vm204, %v5005, 0.0
    %v5049 = vadd.f32 %v5047, %v5048
    %v5050 = vrot.slane %v5049, 4
    %v5051 = vadd.f32 %v5049, %v5050
    %v5052 = vrot.slane %v5051, 2
    %v5053 = vadd.f32 %v5051, %v5052
    %v5054 = vrot.slane %v5053, 1
    %v5055 = vadd.f32 %v5053, %v5054
    %vm5056 = vcmask 1040384
    %v5057 = vsel %vm5056, %v5030, %v5055
    %v5058 = vperm.slane %v48, 5
    %v5059 = vadd.f32 %v5057, %v5058
    %v5060 = vmax.f32 %v5059, 0.0
    %v5061 = vld [vmem:[#allocation6 + $0xa58] sm:$0xff]
    %v5062 = vld [vmem:[#allocation6 + $0xa60] sm:$0xff]
    %v5063 = vld [vmem:[#allocation6 + $0xa68] sm:$0xff]
    %v5064 = vld [vmem:[#allocation6 + $0xa70] sm:$0xff]
    %v5065 = vld [vmem:[#allocation6 + $0xa78] sm:$0xff]
    %v5066 = vld [vmem:[#allocation6 + $0xa80] sm:$0xff]
    %v5067 = vld [vmem:[#allocation6 + $0xa88] sm:$0xff]
    %v5068 = vld [vmem:[#allocation6 + $0xa90] sm:$0xff]
    %v5069 = vperm.slane %v48, 6
    %v5071 = vsel %vm204, %v5060, 0
    %5073 = vmatpush.msra.mxu0 0.0
    %5074 = vmatpush.msra.mxu0 0.0
    %5075 = vmatpush.msra.mxu0 0.0
    %5076 = vmatpush.msra.mxu0 0.0
    %5077 = vmatpush.msra.mxu0 0.0
    %5078 = vmatpush.msra.mxu0 0.0
    %5079 = vmatpush.msra.mxu0 0.0
    %5080 = vmatpush.msra.mxu0 0.0
    %5081 = vmatpush.msra.mxu0 %v5068
    %5082 = vmatpush.msra.mxu0 %v5067
    %5083 = vmatpush.msra.mxu0 %v5066
    %5084 = vmatpush.msra.mxu0 %v5065
    %5085 = vmatpush.msra.mxu0 %v5064
    %5086 = vmatpush.msra.mxu0 %v5063
    %5087 = vmatpush.msra.mxu0 %v5062
    %5088 = vmatpush.msra.mxu0 %v5061
    %5089 = vmatmul.f32.gmra.mxu0 %v5071
    %v5090 = vpop.f32.mrf.mxu0
    %v5091 = vadd.f32 %v5069, %v5090
    %5092 = vdwg.mxu0
    %vm5093 = vcmask 25600
    %5094 = vst.msk [vmem:[#allocation9] sm:$0x3] %vm5093, %v5091
    // Predicated region
    $region14: #{forward.1} parent=1 // pred_check
      _
    $region15: #{forward.1} parent=1 // pred_check_branch
      %5096 = sbr.rel (0) target = $region17
    $region16: #{forward.1} parent=1 // pred_region
      %5098 = vsyncadd [#allocation8], 0
      %s5100 = sshll.u32 [#allocation9], 4
      %s5101 = int_to_ptr.vmem [resolvable:$true] %s5100
      %s5102 = sshll.u32 %s2, 4
      %s5103 = int_to_ptr.hbm [resolvable:$true] %s5102
      %5105 = dma.vmem_to_hbm [thread:$0]  %s5101, 32, %s5103, [#allocation8]
    $region17: #{forward.1} parent=1 // pred_fallthru
      _
    // Predicated region
    $region18: #{forward.1} parent=1 // pred_check
      _
    $region19: #{forward.1} parent=1 // pred_check_branch
      %5107 = sbr.rel (0) target = $region21
    $region20: #{forward.1} parent=1 // pred_region
      %5109 = dma.done [#allocation8], 32
    $region21: #{forward.1} parent=1 // pred_fallthru
      _
    %5110 = vsyncpa [#allocation7], 1
    %5111 = vsyncpa [#allocation8], 1

</llo_original>
